<compile_context>
chip_gen: v5e
topology: v5e:2x2
jax: 0.10.0
libtpu: 0.0.40
codegen_flags: <defaults>
</compile_context>

<pallas_src>
import functools

import jax
import jax.numpy as jnp
from jax import lax
from jax.experimental import pallas as pl
from jax.experimental.pallas import tpu as pltpu

LANE = 128          # channel padding target (TPU lane width)
TM_CONV_ROWS = 1024 # target output rows per conv row-tile
TM_ELEM = 2048      # target row tile for the fused BN + residual elementwise kernel


def _ceil_to(x, m):
    return ((x + m - 1) // m) * m


def _pick_conv_tile_h(H, W, target_rows):
    """Largest divisor TH of H with TH*W <= target_rows and (TH*W) % 8 == 0."""
    divs = [d for d in range(1, H + 1) if H % d == 0]
    ok = [d for d in divs if (d * W) % 8 == 0 or d == H]
    small = [d for d in ok if d * W <= target_rows]
    if small:
        return max(small)
    return min(ok) if ok else H


def _pick_divisor_tile(M, target, align=8):
    """Largest divisor of M that is <= target and a multiple of `align` (if possible)."""
    t = min(target, M)
    for cand in range(t, 0, -1):
        if M % cand == 0 and (cand % align == 0 or cand == M):
            return cand
    return 1


def _vmem_limit_bytes(est):
    # Explicit scoped-VMEM budget: at least 32 MiB, at most 56 MiB (v7x physical is 64 MiB).
    return int(max(32 * 2**20, min(56 * 2**20, 2 * est)))


# ----------------------------- Pallas kernels ------------------------------ #

def _conv3x3_stats_kernel(xp_ref, w_ref, b_ref, y_ref, s1_ref, s2_ref, acc_ref,
                          *, W, TH):
    """Implicit-GEMM 3x3 conv for one row tile of one image + fused BN partials.

    xp_ref : (1, H+2, W+2, Cp) bf16  spatially + channel padded image (resident across tiles)
    w_ref  : (3, 3*Cp, Cp)     bf16  per-dh weight for the dw-concatenated patch
    b_ref  : (1, Cp)           f32   bias (zeros when use_bias=False)
    y_ref  : (1, TH*W, Cp)     bf16  conv output rows of this tile
    s1_ref : (1, 1, 1, Cp)     f32   per-tile sum(y) per channel
    s2_ref : (1, 1, 1, Cp)     f32   per-tile centered sum((y - tile_mean)^2)
    acc_ref: (TH*W, Cp)        f32   VMEM scratch accumulator
    """
    t = pl.program_id(1)
    h0 = t * TH
    # Build the three width-shifted windows ONCE (3 sublane-shifted copies instead
    # of 9) and concatenate along channels -> (TH+2, W, 3*Cp).
    patch = jnp.concatenate(
        [xp_ref[0, pl.ds(h0, TH + 2), pl.ds(dw, W), :] for dw in range(3)],
        axis=-1)
    k3 = patch.shape[-1]
    # Three MXU matmuls with K = 3*Cp; the dh slice is a free leading-dim slice.
    acc_ref[...] = jnp.dot(patch[0:TH].reshape(TH * W, k3), w_ref[0],
                           preferred_element_type=jnp.float32)
    acc_ref[...] += jnp.dot(patch[1:TH + 1].reshape(TH * W, k3), w_ref[1],
                            preferred_element_type=jnp.float32)
    acc_ref[...] += jnp.dot(patch[2:TH + 2].reshape(TH * W, k3), w_ref[2],
                            preferred_element_type=jnp.float32)
    acc = acc_ref[...] + b_ref[...]                     # (TH*W, Cp) f32
    y_ref[0] = acc.astype(y_ref.dtype)                  # bf16 writeback
    # BN batch-stat partials (f32, from the f32 accumulator): per-tile sum and
    # CENTERED sum-of-squares (combined with Chan's formula in the glue).
    s1 = jnp.sum(acc, axis=0, keepdims=True)
    mu = s1 * (1.0 / (TH * W))
    d = acc - mu
    s1_ref[0, 0] = s1
    s2_ref[0, 0] = jnp.sum(d * d, axis=0, keepdims=True)


def _bn_residual_kernel(y_ref, x_ref, scale_ref, shift_ref, o_ref):
    """out = x + (y * scale + shift) — BN affine folded into scale/shift plus the
    residual add, one mem-bound elementwise pass; y is bf16, upcast in-kernel."""
    o_ref[...] = (x_ref[...] +
                  y_ref[...].astype(jnp.float32) * scale_ref[...] +
                  shift_ref[...])


# ------------------------------ kernel wrappers ----------------------------- #

def conv3x3_with_stats(xp_bf16, w_prep, b_prep, *, H, W, TH):
    """xp_bf16: (N, H+2, W+2, Cp) bf16.  Returns y (N, H*W, Cp) bf16 and per-tile
    channel sums / centered sums-of-squares, each (N, H//TH, 1, Cp) f32."""
    N = xp_bf16.shape[0]
    Cp = xp_bf16.shape[-1]
    T = H // TH
    kernel = functools.partial(_conv3x3_stats_kernel, W=W, TH=TH)
    est = (2 * (H + 2) * (W + 2) * Cp * 2      # xp (double-buffered, bf16)
           + 2 * 3 * (3 * Cp) * Cp * 2         # weights
           + 2 * Cp * 4                        # bias
           + 2 * TH * W * Cp * 2               # y out block (bf16)
           + 8 * Cp * 4                        # stats blocks
           + TH * W * Cp * 4                   # f32 accumulator scratch
           + 2 * (TH + 2) * W * 3 * Cp * 2)    # concatenated-patch temporaries
    return pl.pallas_call(
        kernel,
        out_shape=(jax.ShapeDtypeStruct((N, H * W, Cp), jnp.bfloat16),
                   jax.ShapeDtypeStruct((N, T, 1, Cp), jnp.float32),
                   jax.ShapeDtypeStruct((N, T, 1, Cp), jnp.float32)),
        grid=(N, T),
        in_specs=[
            # padded image: constant over the row-tile axis -> stays VMEM-resident
            pl.BlockSpec((1, H + 2, W + 2, Cp), lambda n, t: (n, 0, 0, 0)),
            pl.BlockSpec((3, 3 * Cp, Cp), lambda n, t: (0, 0, 0)),
            pl.BlockSpec((1, Cp), lambda n, t: (0, 0)),
        ],
        out_specs=(
            pl.BlockSpec((1, TH * W, Cp), lambda n, t: (n, t, 0)),
            pl.BlockSpec((1, 1, 1, Cp), lambda n, t: (n, t, 0, 0)),
            pl.BlockSpec((1, 1, 1, Cp), lambda n, t: (n, t, 0, 0)),
        ),
        scratch_shapes=[pltpu.VMEM((TH * W, Cp), jnp.float32)],
        compiler_params=pltpu.CompilerParams(
            dimension_semantics=("parallel", "parallel"),
            vmem_limit_bytes=_vmem_limit_bytes(est)),
    )(xp_bf16, w_prep, b_prep)


def bn_residual_add(y2, xr, scale, shift, *, tm):
    """y2: (M, Cp) bf16; xr: (M, Cp) f32; scale/shift: (1, Cp) f32.
    out = xr + y2*scale + shift   (tm divides M: no pad/slice round-trip)."""
    M, Cp = y2.shape
    assert M % tm == 0
    est = 2 * tm * Cp * (2 + 4 + 4) + 4 * Cp * 4
    return pl.pallas_call(
        _bn_residual_kernel,
        out_shape=jax.ShapeDtypeStruct((M, Cp), jnp.float32),
        grid=(M // tm,),
        in_specs=[pl.BlockSpec((tm, Cp), lambda i: (i, 0)),
                  pl.BlockSpec((tm, Cp), lambda i: (i, 0)),
                  pl.BlockSpec((1, Cp), lambda i: (0, 0)),
                  pl.BlockSpec((1, Cp), lambda i: (0, 0))],
        out_specs=pl.BlockSpec((tm, Cp), lambda i: (i, 0)),
        compiler_params=pltpu.CompilerParams(
            dimension_semantics=("parallel",),
            vmem_limit_bytes=_vmem_limit_bytes(est)),
    )(y2, xr, scale, shift)


# ----------------------------------- glue ----------------------------------- #

_PAD_MODE = {"reflect": "reflect", "replicate": "edge", "zero": "constant"}


def init_params(key, dim, *, use_bias=False):
    """Raw (unpadded, f32) parameters mirroring ResnetBlock.__init__ with
    norm_layer=BatchNorm2d (=> use_bias=False) and use_dropout=False."""
    kw, kb = jax.random.split(key)
    w = jax.random.normal(kw, (3, 3, dim, dim), jnp.float32) * 0.05      # HWIO
    b = jax.random.normal(kb, (dim,), jnp.float32) * 0.05 if use_bias else None
    gamma = jnp.ones((dim,), jnp.float32)        # fresh BatchNorm2d affine
    beta = jnp.zeros((dim,), jnp.float32)
    return dict(w=w, b=b, gamma=gamma, beta=beta)


def prepare_params(raw):
    """Pad / reshape / cast parameters ONCE outside the traced forward:
    weight -> (3, 3*Cp, Cp) bf16 (per-dh matrix over the dw-concatenated channel axis);
    bias/gamma/beta lane-padded."""
    w = raw["w"]
    dim = w.shape[2]
    Cp = _ceil_to(dim, LANE)
    w_p = jnp.pad(w, ((0, 0), (0, 0), (0, Cp - dim), (0, Cp - dim)))
    w_p = w_p.reshape(3, 3 * Cp, Cp).astype(jnp.bfloat16)   # k = dw*Cp + ci
    b = raw["b"] if raw["b"] is not None else jnp.zeros((dim,), jnp.float32)
    b_p = jnp.pad(b, (0, Cp - dim)).reshape(1, Cp)
    gamma_p = jnp.pad(raw["gamma"], (0, Cp - dim))   # padded channels -> scale 0
    beta_p = jnp.pad(raw["beta"], (0, Cp - dim))
    return dict(w=w_p, b=b_p, gamma=gamma_p, beta=beta_p, dim=dim, cp=Cp)


def resnet_block_forward(x_nchw, prep, *, padding_type="reflect", eps=1e-5):
    """out = x + BatchNorm2d(Conv2d(Pad1(x)))   (training-mode batch statistics)."""
    N, C, H, W = x_nchw.shape
    Cp = prep["cp"]

    # NCHW -> NHWC once; channel-pad to a lane multiple once (kept through both kernels).
    x_nhwc = jnp.transpose(x_nchw, (0, 2, 3, 1)).astype(jnp.float32)
    x_base = jnp.pad(x_nhwc, ((0, 0), (0, 0), (0, 0), (0, Cp - C)))
    xp = jnp.pad(x_base, ((0, 0), (1, 1), (1, 1), (0, 0)),
                 mode=_PAD_MODE[padding_type]).astype(jnp.bfloat16)

    # Kernel 1: row-tiled implicit-GEMM 3x3 conv + fused per-tile BN partials.
    TH = _pick_conv_tile_h(H, W, TM_CONV_ROWS)
    y, s1, s2 = conv3x3_with_stats(xp, prep["w"], prep["b"], H=H, W=W, TH=TH)

    # Finish BatchNorm batch statistics: Chan-combine the per-tile centered partials,
    # then fold the affine into one scale/shift (biased variance, as torch uses).
    cnt_tile = TH * W
    total = N * H * W
    s1f = s1.reshape(-1, Cp)
    s2f = s2.reshape(-1, Cp)
    mean = jnp.sum(s1f, axis=0) / total
    tile_means = s1f / cnt_tile
    ss = jnp.sum(s2f, axis=0) + cnt_tile * jnp.sum((tile_means - mean[None, :]) ** 2, axis=0)
    var = jnp.maximum(ss / total, 0.0)
    inv = lax.rsqrt(var + eps)
    scale = (prep["gamma"] * inv).reshape(1, Cp)
    shift = (prep["beta"] - mean * prep["gamma"] * inv).reshape(1, Cp)

    # Kernel 2: fused BN scale/shift + residual add; tile divides M exactly.
    M = total
    tm = _pick_divisor_tile(M, TM_ELEM)
    out = bn_residual_add(y.reshape(M, Cp), x_base.reshape(M, Cp), scale, shift, tm=tm)

    out = out.reshape(N, H, W, Cp)[:, :, :, :C]
    return jnp.transpose(out, (0, 3, 1, 2))            # NHWC -> NCHW


def resnet_block_reference(x_nchw, raw, *, padding_type="reflect", eps=1e-5):
    """Pure-JAX reference (same bf16 conv inputs, f32 accumulation)."""
    x = jnp.transpose(x_nchw, (0, 2, 3, 1)).astype(jnp.float32)
    xp = jnp.pad(x, ((0, 0), (1, 1), (1, 1), (0, 0)), mode=_PAD_MODE[padding_type])
    y = lax.conv_general_dilated(
        xp.astype(jnp.bfloat16), raw["w"].astype(jnp.bfloat16),
        window_strides=(1, 1), padding="VALID",
        dimension_numbers=("NHWC", "HWIO", "NHWC"),
        preferred_element_type=jnp.float32)
    if raw["b"] is not None:
        y = y + raw["b"]
    mean = jnp.mean(y, axis=(0, 1, 2))
    var = jnp.var(y, axis=(0, 1, 2))
    y = (y - mean) * lax.rsqrt(var + eps) * raw["gamma"] + raw["beta"]
    return jnp.transpose(x + y, (0, 3, 1, 2))


if __name__ == "__main__":
    key = jax.random.PRNGKey(0)

    def run_case(case_key, *, dim, N, H, W, padding_type):
        kx, kp = jax.random.split(case_key)
        x = jax.random.normal(kx, (N, dim, H, W), jnp.float32)
        raw = init_params(kp, dim, use_bias=False)   # BatchNorm2d => use_bias=False
        prep = prepare_params(raw)
        fwd = jax.jit(lambda xx: resnet_block_forward(xx, prep, padding_type=padding_type))
        out = fwd(x)
        jax.block_until_ready(out)
        assert out.shape == (N, dim, H, W), out.shape
        assert out.dtype == jnp.float32
        ref = resnet_block_reference(x, raw, padding_type=padding_type)
        max_err = float(jnp.max(jnp.abs(out - ref)))
        assert jnp.allclose(out, ref, atol=2e-2, rtol=2e-2), f"max abs err {max_err}"

    k1, k2 = jax.random.split(key)
    # Small ResnetBlock (single conv row-tile path).
    run_case(k1, dim=32, N=2, H=16, W=16, padding_type="reflect")
    # Larger spatial size: exercises multiple conv row tiles and 2048-row kernel-2 tiles.
    run_case(k2, dim=32, N=1, H=64, W=64, padding_type="zero")

    print("KERNEL_OK")
</pallas_src>

<mosaic_0001>
module attributes {stable_mosaic.version = 11 : i64} {
  func.func @_conv3x3_stats_kernel(%arg0: i32, %arg1: i32, %arg2: memref<1x18x18x128xbf16, #tpu.memory_space<vmem>>, %arg3: memref<3x384x128xbf16, #tpu.memory_space<vmem>>, %arg4: memref<1x128xf32, #tpu.memory_space<vmem>>, %arg5: memref<1x256x128xbf16, #tpu.memory_space<vmem>>, %arg6: memref<1x1x1x128xf32, #tpu.memory_space<vmem>>, %arg7: memref<1x1x1x128xf32, #tpu.memory_space<vmem>>, %arg8: memref<256x128xf32, #tpu.memory_space<vmem>>) attributes {dimension_semantics = [#tpu.dimension_semantics<parallel>, #tpu.dimension_semantics<parallel>], iteration_bounds = array<i64: 2, 1>, scalar_prefetch = 0 : i64, scratch_operands = 1 : i64, tpu.core_type = #tpu.core_type<tc>, window_params = [{transform_indices = @transform_0, window_bounds = array<i64: 1, 18, 18, 128>}, {pipeline_mode = #tpu.pipeline_mode<synchronous>, transform_indices = @transform_1, window_bounds = array<i64: 3, 384, 128>}, {pipeline_mode = #tpu.pipeline_mode<synchronous>, transform_indices = @transform_2, window_bounds = array<i64: 1, 128>}, {transform_indices = @transform_3, window_bounds = array<i64: 1, 256, 128>}, {transform_indices = @transform_4, window_bounds = array<i64: 1, 1, 1, 128>}, {transform_indices = @transform_5, window_bounds = array<i64: 1, 1, 1, 128>}]} {
    %c16_i32 = arith.constant 16 : i32
    %0 = arith.muli %arg1, %c16_i32 : i32
    %c0 = arith.constant 0 : index
    %1 = arith.index_cast %0 : i32 to index
    %c0_0 = arith.constant 0 : index
    %c0_1 = arith.constant 0 : index
    %2 = vector.load %arg2[%c0, %1, %c0_0, %c0_1] : memref<1x18x18x128xbf16, #tpu.memory_space<vmem>>, vector<1x18x16x128xbf16>
    %3 = vector.shape_cast %2 : vector<1x18x16x128xbf16> to vector<18x16x128xbf16>
    %c0_2 = arith.constant 0 : index
    %4 = arith.index_cast %0 : i32 to index
    %c1 = arith.constant 1 : index
    %c0_3 = arith.constant 0 : index
    %5 = vector.load %arg2[%c0_2, %4, %c1, %c0_3] : memref<1x18x18x128xbf16, #tpu.memory_space<vmem>>, vector<1x18x16x128xbf16>
    %6 = vector.shape_cast %5 : vector<1x18x16x128xbf16> to vector<18x16x128xbf16>
    %c0_4 = arith.constant 0 : index
    %7 = arith.index_cast %0 : i32 to index
    %c2 = arith.constant 2 : index
    %c0_5 = arith.constant 0 : index
    %8 = vector.load %arg2[%c0_4, %7, %c2, %c0_5] : memref<1x18x18x128xbf16, #tpu.memory_space<vmem>>, vector<1x18x16x128xbf16>
    %9 = vector.shape_cast %8 : vector<1x18x16x128xbf16> to vector<18x16x128xbf16>
    %10 = tpu.concatenate %3, %6, %9 in 2 : vector<18x16x128xbf16>, vector<18x16x128xbf16>, vector<18x16x128xbf16> -> vector<18x16x384xbf16>
    %11 = vector.extract_strided_slice %10 {offsets = [0, 0, 0], sizes = [16, 16, 384], strides = [1, 1, 1]} : vector<18x16x384xbf16> to vector<16x16x384xbf16>
    %12 = vector.shape_cast %11 : vector<16x16x384xbf16> to vector<256x384xbf16>
    %c0_6 = arith.constant 0 : index
    %c0_7 = arith.constant 0 : index
    %c0_8 = arith.constant 0 : index
    %13 = vector.load %arg3[%c0_6, %c0_7, %c0_8] : memref<3x384x128xbf16, #tpu.memory_space<vmem>>, vector<1x384x128xbf16>
    %14 = vector.shape_cast %13 : vector<1x384x128xbf16> to vector<384x128xbf16>
    %cst = arith.constant dense<0.000000e+00> : vector<256x128xf32>
    %15 = tpu.matmul %12, %14, %cst {dimension_numbers = #tpu.dot_dimension_numbers<[1], [0], [0], [1], [0, 0, 1, 1], [], []>} : vector<256x384xbf16>, vector<384x128xbf16>, vector<256x128xf32> -> vector<256x128xf32>
    %c0_9 = arith.constant 0 : index
    %c0_10 = arith.constant 0 : index
    %16 = vector.load %arg8[%c0_9, %c0_10] : memref<256x128xf32, #tpu.memory_space<vmem>>, vector<256x128xf32>
    tpu.vector_store %arg8[%c0_9, %c0_10], %15 {strides = array<i32>} : memref<256x128xf32, #tpu.memory_space<vmem>>, vector<256x128xf32>,
    %c0_11 = arith.constant 0 : index
    %c0_12 = arith.constant 0 : index
    %17 = vector.load %arg8[%c0_11, %c0_12] : memref<256x128xf32, #tpu.memory_space<vmem>>, vector<256x128xf32>
    %18 = vector.extract_strided_slice %10 {offsets = [1, 0, 0], sizes = [16, 16, 384], strides = [1, 1, 1]} : vector<18x16x384xbf16> to vector<16x16x384xbf16>
    %19 = vector.shape_cast %18 : vector<16x16x384xbf16> to vector<256x384xbf16>
    %c1_13 = arith.constant 1 : index
    %c0_14 = arith.constant 0 : index
    %c0_15 = arith.constant 0 : index
    %20 = vector.load %arg3[%c1_13, %c0_14, %c0_15] : memref<3x384x128xbf16, #tpu.memory_space<vmem>>, vector<1x384x128xbf16>
    %21 = vector.shape_cast %20 : vector<1x384x128xbf16> to vector<384x128xbf16>
    %cst_16 = arith.constant dense<0.000000e+00> : vector<256x128xf32>
    %22 = tpu.matmul %19, %21, %cst_16 {dimension_numbers = #tpu.dot_dimension_numbers<[1], [0], [0], [1], [0, 0, 1, 1], [], []>} : vector<256x384xbf16>, vector<384x128xbf16>, vector<256x128xf32> -> vector<256x128xf32>
    %23 = arith.addf %17, %22 : vector<256x128xf32>
    %c0_17 = arith.constant 0 : index
    %c0_18 = arith.constant 0 : index
    %24 = vector.load %arg8[%c0_17, %c0_18] : memref<256x128xf32, #tpu.memory_space<vmem>>, vector<256x128xf32>
    tpu.vector_store %arg8[%c0_17, %c0_18], %23 {strides = array<i32>} : memref<256x128xf32, #tpu.memory_space<vmem>>, vector<256x128xf32>,
    %c0_19 = arith.constant 0 : index
    %c0_20 = arith.constant 0 : index
    %25 = vector.load %arg8[%c0_19, %c0_20] : memref<256x128xf32, #tpu.memory_space<vmem>>, vector<256x128xf32>
    %26 = vector.extract_strided_slice %10 {offsets = [2, 0, 0], sizes = [16, 16, 384], strides = [1, 1, 1]} : vector<18x16x384xbf16> to vector<16x16x384xbf16>
    %27 = vector.shape_cast %26 : vector<16x16x384xbf16> to vector<256x384xbf16>
    %c2_21 = arith.constant 2 : index
    %c0_22 = arith.constant 0 : index
    %c0_23 = arith.constant 0 : index
    %28 = vector.load %arg3[%c2_21, %c0_22, %c0_23] : memref<3x384x128xbf16, #tpu.memory_space<vmem>>, vector<1x384x128xbf16>
    %29 = vector.shape_cast %28 : vector<1x384x128xbf16> to vector<384x128xbf16>
    %cst_24 = arith.constant dense<0.000000e+00> : vector<256x128xf32>
    %30 = tpu.matmul %27, %29, %cst_24 {dimension_numbers = #tpu.dot_dimension_numbers<[1], [0], [0], [1], [0, 0, 1, 1], [], []>} : vector<256x384xbf16>, vector<384x128xbf16>, vector<256x128xf32> -> vector<256x128xf32>
    %31 = arith.addf %25, %30 : vector<256x128xf32>
    %c0_25 = arith.constant 0 : index
    %c0_26 = arith.constant 0 : index
    %32 = vector.load %arg8[%c0_25, %c0_26] : memref<256x128xf32, #tpu.memory_space<vmem>>, vector<256x128xf32>
    tpu.vector_store %arg8[%c0_25, %c0_26], %31 {strides = array<i32>} : memref<256x128xf32, #tpu.memory_space<vmem>>, vector<256x128xf32>,
    %c0_27 = arith.constant 0 : index
    %c0_28 = arith.constant 0 : index
    %33 = vector.load %arg8[%c0_27, %c0_28] : memref<256x128xf32, #tpu.memory_space<vmem>>, vector<256x128xf32>
    %c0_29 = arith.constant 0 : index
    %c0_30 = arith.constant 0 : index
    %34 = vector.load %arg4[%c0_29, %c0_30] : memref<1x128xf32, #tpu.memory_space<vmem>>, vector<1x128xf32>
    %35 = vector.broadcast %34 : vector<1x128xf32> to vector<256x128xf32>
    %36 = arith.addf %33, %35 : vector<256x128xf32>
    %37 = arith.truncf %36 : vector<256x128xf32> to vector<256x128xbf16>
    %c0_31 = arith.constant 0 : index
    %c0_32 = arith.constant 0 : index
    %c0_33 = arith.constant 0 : index
    %38 = vector.load %arg5[%c0_31, %c0_32, %c0_33] : memref<1x256x128xbf16, #tpu.memory_space<vmem>>, vector<1x256x128xbf16>
    %39 = vector.shape_cast %38 : vector<1x256x128xbf16> to vector<256x128xbf16>
    %40 = vector.shape_cast %37 : vector<256x128xbf16> to vector<1x256x128xbf16>
    tpu.vector_store %arg5[%c0_31, %c0_32, %c0_33], %40 {strides = array<i32>} : memref<1x256x128xbf16, #tpu.memory_space<vmem>>, vector<1x256x128xbf16>,
    %cst_34 = arith.constant dense<0.000000e+00> : vector<128xf32>
    %41 = vector.multi_reduction <add>, %36, %cst_34 [0] : vector<256x128xf32> to vector<128xf32>
    %42 = vector.shape_cast %41 : vector<128xf32> to vector<1x128xf32>
    %cst_35 = arith.constant 3.906250e-03 : f32
    %43 = vector.broadcast %cst_35 : f32 to vector<1x128xf32>
    %44 = arith.mulf %42, %43 : vector<1x128xf32>
    %45 = vector.broadcast %44 : vector<1x128xf32> to vector<256x128xf32>
    %46 = arith.subf %36, %45 : vector<256x128xf32>
    %c0_36 = arith.constant 0 : index
    %c0_37 = arith.constant 0 : index
    %c0_38 = arith.constant 0 : index
    %c0_39 = arith.constant 0 : index
    %47 = vector.load %arg6[%c0_36, %c0_37, %c0_38, %c0_39] : memref<1x1x1x128xf32, #tpu.memory_space<vmem>>, vector<1x1x1x128xf32>
    %48 = vector.shape_cast %47 : vector<1x1x1x128xf32> to vector<1x128xf32>
    %49 = vector.shape_cast %42 : vector<1x128xf32> to vector<1x1x1x128xf32>
    tpu.vector_store %arg6[%c0_36, %c0_37, %c0_38, %c0_39], %49 {strides = array<i32>} : memref<1x1x1x128xf32, #tpu.memory_space<vmem>>, vector<1x1x1x128xf32>,
    %50 = arith.mulf %46, %46 : vector<256x128xf32>
    %cst_40 = arith.constant dense<0.000000e+00> : vector<128xf32>
    %51 = vector.multi_reduction <add>, %50, %cst_40 [0] : vector<256x128xf32> to vector<128xf32>
    %52 = vector.shape_cast %51 : vector<128xf32> to vector<1x128xf32>
    %c0_41 = arith.constant 0 : index
    %c0_42 = arith.constant 0 : index
    %c0_43 = arith.constant 0 : index
    %c0_44 = arith.constant 0 : index
    %53 = vector.load %arg7[%c0_41, %c0_42, %c0_43, %c0_44] : memref<1x1x1x128xf32, #tpu.memory_space<vmem>>, vector<1x1x1x128xf32>
    %54 = vector.shape_cast %53 : vector<1x1x1x128xf32> to vector<1x128xf32>
    %55 = vector.shape_cast %52 : vector<1x128xf32> to vector<1x1x1x128xf32>
    tpu.vector_store %arg7[%c0_41, %c0_42, %c0_43, %c0_44], %55 {strides = array<i32>} : memref<1x1x1x128xf32, #tpu.memory_space<vmem>>, vector<1x1x1x128xf32>,
    return
  }
  func.func @transform_0(%arg0: i32, %arg1: i32) -> (i32, i32, i32, i32) {
    %c0_i32 = arith.constant 0 : i32
    %c0_i32_0 = arith.constant 0 : i32
    %c0_i32_1 = arith.constant 0 : i32
    %c0_i32_2 = arith.constant 0 : i32
    return %arg0, %c0_i32, %c0_i32_0, %c0_i32_1 : i32, i32, i32, i32
  }
  func.func @transform_1(%arg0: i32, %arg1: i32) -> (i32, i32, i32) {
    %c0_i32 = arith.constant 0 : i32
    %c0_i32_0 = arith.constant 0 : i32
    %c0_i32_1 = arith.constant 0 : i32
    %c0_i32_2 = arith.constant 0 : i32
    return %c0_i32, %c0_i32_0, %c0_i32_1 : i32, i32, i32
  }
  func.func @transform_2(%arg0: i32, %arg1: i32) -> (i32, i32) {
    %c0_i32 = arith.constant 0 : i32
    %c0_i32_0 = arith.constant 0 : i32
    %c0_i32_1 = arith.constant 0 : i32
    return %c0_i32, %c0_i32_0 : i32, i32
  }
  func.func @transform_3(%arg0: i32, %arg1: i32) -> (i32, i32, i32) {
    %c0_i32 = arith.constant 0 : i32
    %c0_i32_0 = arith.constant 0 : i32
    return %arg0, %arg1, %c0_i32 : i32, i32, i32
  }
  func.func @transform_4(%arg0: i32, %arg1: i32) -> (i32, i32, i32, i32) {
    %c0_i32 = arith.constant 0 : i32
    %c0_i32_0 = arith.constant 0 : i32
    %c0_i32_1 = arith.constant 0 : i32
    return %arg0, %arg1, %c0_i32, %c0_i32_0 : i32, i32, i32, i32
  }
  func.func @transform_5(%arg0: i32, %arg1: i32) -> (i32, i32, i32, i32) {
    %c0_i32 = arith.constant 0 : i32
    %c0_i32_0 = arith.constant 0 : i32
    %c0_i32_1 = arith.constant 0 : i32
    return %arg0, %arg1, %c0_i32, %c0_i32_0 : i32, i32, i32, i32
  }
}

module attributes {stable_mosaic.version = 11 : i64} {
  func.func @_bn_residual_kernel(%arg0: i32, %arg1: memref<512x128xbf16, #tpu.memory_space<vmem>>, %arg2: memref<512x128xf32, #tpu.memory_space<vmem>>, %arg3: memref<1x128xf32, #tpu.memory_space<vmem>>, %arg4: memref<1x128xf32, #tpu.memory_space<vmem>>, %arg5: memref<512x128xf32, #tpu.memory_space<vmem>>) attributes {dimension_semantics = [#tpu.dimension_semantics<parallel>], iteration_bounds = array<i64: 1>, scalar_prefetch = 0 : i64, scratch_operands = 0 : i64, tpu.core_type = #tpu.core_type<tc>, window_params = [{transform_indices = @transform_0, window_bounds = array<i64: 512, 128>}, {transform_indices = @transform_1, window_bounds = array<i64: 512, 128>}, {pipeline_mode = #tpu.pipeline_mode<synchronous>, transform_indices = @transform_2, window_bounds = array<i64: 1, 128>}, {pipeline_mode = #tpu.pipeline_mode<synchronous>, transform_indices = @transform_3, window_bounds = array<i64: 1, 128>}, {transform_indices = @transform_4, window_bounds = array<i64: 512, 128>}]} {
    %c0 = arith.constant 0 : index
    %c0_0 = arith.constant 0 : index
    %0 = vector.load %arg2[%c0, %c0_0] : memref<512x128xf32, #tpu.memory_space<vmem>>, vector<512x128xf32>
    %c0_1 = arith.constant 0 : index
    %c0_2 = arith.constant 0 : index
    %1 = vector.load %arg1[%c0_1, %c0_2] : memref<512x128xbf16, #tpu.memory_space<vmem>>, vector<512x128xbf16>
    %2 = arith.extf %1 : vector<512x128xbf16> to vector<512x128xf32>
    %c0_3 = arith.constant 0 : index
    %c0_4 = arith.constant 0 : index
    %3 = vector.load %arg3[%c0_3, %c0_4] : memref<1x128xf32, #tpu.memory_space<vmem>>, vector<1x128xf32>
    %4 = vector.broadcast %3 : vector<1x128xf32> to vector<512x128xf32>
    %5 = arith.mulf %2, %4 : vector<512x128xf32>
    %6 = arith.addf %0, %5 : vector<512x128xf32>
    %c0_5 = arith.constant 0 : index
    %c0_6 = arith.constant 0 : index
    %7 = vector.load %arg4[%c0_5, %c0_6] : memref<1x128xf32, #tpu.memory_space<vmem>>, vector<1x128xf32>
    %8 = vector.broadcast %7 : vector<1x128xf32> to vector<512x128xf32>
    %9 = arith.addf %6, %8 : vector<512x128xf32>
    %c0_7 = arith.constant 0 : index
    %c0_8 = arith.constant 0 : index
    %10 = vector.load %arg5[%c0_7, %c0_8] : memref<512x128xf32, #tpu.memory_space<vmem>>, vector<512x128xf32>
    tpu.vector_store %arg5[%c0_7, %c0_8], %9 {strides = array<i32>} : memref<512x128xf32, #tpu.memory_space<vmem>>, vector<512x128xf32>,
    return
  }
  func.func @transform_0(%arg0: i32) -> (i32, i32) {
    %c0_i32 = arith.constant 0 : i32
    %c0_i32_0 = arith.constant 0 : i32
    return %arg0, %c0_i32 : i32, i32
  }
  func.func @transform_1(%arg0: i32) -> (i32, i32) {
    %c0_i32 = arith.constant 0 : i32
    %c0_i32_0 = arith.constant 0 : i32
    return %arg0, %c0_i32 : i32, i32
  }
  func.func @transform_2(%arg0: i32) -> (i32, i32) {
    %c0_i32 = arith.constant 0 : i32
    %c0_i32_0 = arith.constant 0 : i32
    %c0_i32_1 = arith.constant 0 : i32
    return %c0_i32, %c0_i32_0 : i32, i32
  }
  func.func @transform_3(%arg0: i32) -> (i32, i32) {
    %c0_i32 = arith.constant 0 : i32
    %c0_i32_0 = arith.constant 0 : i32
    %c0_i32_1 = arith.constant 0 : i32
    return %c0_i32, %c0_i32_0 : i32, i32
  }
  func.func @transform_4(%arg0: i32) -> (i32, i32) {
    %c0_i32 = arith.constant 0 : i32
    %c0_i32_0 = arith.constant 0 : i32
    return %arg0, %c0_i32 : i32, i32
  }
}

</mosaic_0001>

<llo_original>
// kernel: _lambda_.3
$region0: #{_lambda_.3}
  #allocation0 [shape = 'u32[]', space=smem, size = 0x4, offset = 0x4, fixed_abs, tag = 'smem constant byte address 0x4 - core index']
  #allocation1 [shape = 'u32[72,128]{1,0:T(1,128)}', space=vmem, size = 0x9000, scoped, tag = 'internal scratch']
  %s0 = inlined_call_operand.vmem [shape: bf16[512,128], index: 0, kind: input, shape index: {}]
  %s1 = inlined_call_operand.vmem [shape: f32[512,128], index: 1, kind: input, shape index: {}]
  %s2 = inlined_call_operand.vmem [shape: f32[1,128], index: 2, kind: input, shape index: {}]
  %s3 = inlined_call_operand.vmem [shape: f32[1,128], index: 3, kind: input, shape index: {}]
  %s4 = inlined_call_operand.vmem [shape: f32[512,128], index: 4, kind: output, shape index: {}]
  %s5 = sld [smem:[#allocation0]]
  $region26: #{_lambda_.3} parent=0
    _
  %s7 = ssub.s32 1, %s5
  %s8 = scalar_select 0, %s7, %s5
  // Predicated region
  $region2: #{_lambda_.3} parent=0 // pred_check
    _
  $region3: #{_lambda_.3} parent=0 // pred_check_branch
    %10 = sbr.rel (0) target = $region5
  $region4: #{_lambda_.3} parent=0 // pred_region
    _
  $region5: #{_lambda_.3} parent=0 // pred_fallthru
    _
  // Predicated region
  $region6: #{_lambda_.3} parent=0 // pred_check
    _
  $region7: #{_lambda_.3} parent=0 // pred_check_branch
    %12 = sbr.rel (0) target = $region9
  $region8: #{_lambda_.3} parent=0 // pred_region
    _
  $region9: #{_lambda_.3} parent=0 // pred_fallthru
    _
  // Predicated region
  $region10: #{_lambda_.3} parent=0 // pred_check
    _
  $region11: #{_lambda_.3} parent=0 // pred_check_branch
    %14 = sbr.rel (0) target = $region13
  $region12: #{_lambda_.3} parent=0 // pred_region
    _
  $region13: #{_lambda_.3} parent=0 // pred_fallthru
    _
  // Predicated region
  $region14: #{_lambda_.3} parent=0 // pred_check
    _
  $region15: #{_lambda_.3} parent=0 // pred_check_branch
    %16 = sbr.rel (0) target = $region17
  $region16: #{_lambda_.3} parent=0 // pred_region
    _
  $region17: #{_lambda_.3} parent=0 // pred_fallthru
    _
  %v17 = vld [vmem:[%s1] sm:$0xff]
  %v18 = vld [vmem:[%s1 + $0x8] sm:$0xff]
  %v19 = vld [vmem:[%s1 + $0x10] sm:$0xff]
  %v20 = vld [vmem:[%s1 + $0x18] sm:$0xff]
  %v21 = vld [vmem:[%s1 + $0x20] sm:$0xff]
  %v22 = vld [vmem:[%s1 + $0x28] sm:$0xff]
  %v23 = vld [vmem:[%s1 + $0x30] sm:$0xff]
  %v24 = vld [vmem:[%s1 + $0x38] sm:$0xff]
  %v25 = vld [vmem:[%s1 + $0x40] sm:$0xff]
  %v26 = vld [vmem:[%s1 + $0x48] sm:$0xff]
  %v27 = vld [vmem:[%s1 + $0x50] sm:$0xff]
  %v28 = vld [vmem:[%s1 + $0x58] sm:$0xff]
  %v29 = vld [vmem:[%s1 + $0x60] sm:$0xff]
  %v30 = vld [vmem:[%s1 + $0x68] sm:$0xff]
  %v31 = vld [vmem:[%s1 + $0x70] sm:$0xff]
  %v32 = vld [vmem:[%s1 + $0x78] sm:$0xff]
  %v33 = vld [vmem:[%s1 + $0x80] sm:$0xff]
  %v34 = vld [vmem:[%s1 + $0x88] sm:$0xff]
  %v35 = vld [vmem:[%s1 + $0x90] sm:$0xff]
  %v36 = vld [vmem:[%s1 + $0x98] sm:$0xff]
  %v37 = vld [vmem:[%s1 + $0xa0] sm:$0xff]
  %v38 = vld [vmem:[%s1 + $0xa8] sm:$0xff]
  %v39 = vld [vmem:[%s1 + $0xb0] sm:$0xff]
  %v40 = vld [vmem:[%s1 + $0xb8] sm:$0xff]
  %v41 = vld [vmem:[%s1 + $0xc0] sm:$0xff]
  %v42 = vld [vmem:[%s1 + $0xc8] sm:$0xff]
  %v43 = vld [vmem:[%s1 + $0xd0] sm:$0xff]
  %v44 = vld [vmem:[%s1 + $0xd8] sm:$0xff]
  %v45 = vld [vmem:[%s1 + $0xe0] sm:$0xff]
  %v46 = vld [vmem:[%s1 + $0xe8] sm:$0xff]
  %v47 = vld [vmem:[%s1 + $0xf0] sm:$0xff]
  %v48 = vld [vmem:[%s1 + $0xf8] sm:$0xff]
  %v49 = vld [vmem:[%s1 + $0x100] sm:$0xff]
  %v50 = vld [vmem:[%s1 + $0x108] sm:$0xff]
  %v51 = vld [vmem:[%s1 + $0x110] sm:$0xff]
  %v52 = vld [vmem:[%s1 + $0x118] sm:$0xff]
  %v53 = vld [vmem:[%s1 + $0x120] sm:$0xff]
  %v54 = vld [vmem:[%s1 + $0x128] sm:$0xff]
  %v55 = vld [vmem:[%s1 + $0x130] sm:$0xff]
  %v56 = vld [vmem:[%s1 + $0x138] sm:$0xff]
  %v57 = vld [vmem:[%s1 + $0x140] sm:$0xff]
  %v58 = vld [vmem:[%s1 + $0x148] sm:$0xff]
  %v59 = vld [vmem:[%s1 + $0x150] sm:$0xff]
  %v60 = vld [vmem:[%s1 + $0x158] sm:$0xff]
  %v61 = vld [vmem:[%s1 + $0x160] sm:$0xff]
  %v62 = vld [vmem:[%s1 + $0x168] sm:$0xff]
  %v63 = vld [vmem:[%s1 + $0x170] sm:$0xff]
  %v64 = vld [vmem:[%s1 + $0x178] sm:$0xff]
  %v65 = vld [vmem:[%s1 + $0x180] sm:$0xff]
  %v66 = vld [vmem:[%s1 + $0x188] sm:$0xff]
  %v67 = vld [vmem:[%s1 + $0x190] sm:$0xff]
  %v68 = vld [vmem:[%s1 + $0x198] sm:$0xff]
  %v69 = vld [vmem:[%s1 + $0x1a0] sm:$0xff]
  %v70 = vld [vmem:[%s1 + $0x1a8] sm:$0xff]
  %v71 = vld [vmem:[%s1 + $0x1b0] sm:$0xff]
  %v72 = vld [vmem:[%s1 + $0x1b8] sm:$0xff]
  %v73 = vld [vmem:[%s1 + $0x1c0] sm:$0xff]
  %v74 = vld [vmem:[%s1 + $0x1c8] sm:$0xff]
  %v75 = vld [vmem:[%s1 + $0x1d0] sm:$0xff]
  %v76 = vld [vmem:[%s1 + $0x1d8] sm:$0xff]
  %v77 = vld [vmem:[%s1 + $0x1e0] sm:$0xff]
  %v78 = vld [vmem:[%s1 + $0x1e8] sm:$0xff]
  %v79 = vld [vmem:[%s1 + $0x1f0] sm:$0xff]
  %v80 = vld [vmem:[%s1 + $0x1f8] sm:$0xff]
  %v81 = vld [vmem:[%s0] sm:$0xf]
  %v82 = vld [vmem:[%s0 + $0x4] sm:$0xf]
  %v83 = vld [vmem:[%s0 + $0x8] sm:$0xf]
  %v84 = vld [vmem:[%s0 + $0xc] sm:$0xf]
  %v85 = vld [vmem:[%s0 + $0x10] sm:$0xf]
  %v86 = vld [vmem:[%s0 + $0x14] sm:$0xf]
  %v87 = vld [vmem:[%s0 + $0x18] sm:$0xf]
  %v88 = vld [vmem:[%s0 + $0x1c] sm:$0xf]
  %v89 = vld [vmem:[%s0 + $0x20] sm:$0xf]
  %v90 = vld [vmem:[%s0 + $0x24] sm:$0xf]
  %v91 = vld [vmem:[%s0 + $0x28] sm:$0xf]
  %v92 = vld [vmem:[%s0 + $0x2c] sm:$0xf]
  %v93 = vld [vmem:[%s0 + $0x30] sm:$0xf]
  %v94 = vld [vmem:[%s0 + $0x34] sm:$0xf]
  %v95 = vld [vmem:[%s0 + $0x38] sm:$0xf]
  %v96 = vld [vmem:[%s0 + $0x3c] sm:$0xf]
  %v97 = vld [vmem:[%s0 + $0x40] sm:$0xf]
  %v98 = vld [vmem:[%s0 + $0x44] sm:$0xf]
  %v99 = vld [vmem:[%s0 + $0x48] sm:$0xf]
  %v100 = vld [vmem:[%s0 + $0x4c] sm:$0xf]
  %v101 = vld [vmem:[%s0 + $0x50] sm:$0xf]
  %v102 = vld [vmem:[%s0 + $0x54] sm:$0xf]
  %v103 = vld [vmem:[%s0 + $0x58] sm:$0xf]
  %v104 = vld [vmem:[%s0 + $0x5c] sm:$0xf]
  %v105 = vld [vmem:[%s0 + $0x60] sm:$0xf]
  %v106 = vld [vmem:[%s0 + $0x64] sm:$0xf]
  %v107 = vld [vmem:[%s0 + $0x68] sm:$0xf]
  %v108 = vld [vmem:[%s0 + $0x6c] sm:$0xf]
  %v109 = vld [vmem:[%s0 + $0x70] sm:$0xf]
  %v110 = vld [vmem:[%s0 + $0x74] sm:$0xf]
  %v111 = vld [vmem:[%s0 + $0x78] sm:$0xf]
  %v112 = vld [vmem:[%s0 + $0x7c] sm:$0xf]
  %v113 = vld [vmem:[%s0 + $0x80] sm:$0xf]
  %v114 = vld [vmem:[%s0 + $0x84] sm:$0xf]
  %v115 = vld [vmem:[%s0 + $0x88] sm:$0xf]
  %v116 = vld [vmem:[%s0 + $0x8c] sm:$0xf]
  %v117 = vld [vmem:[%s0 + $0x90] sm:$0xf]
  %v118 = vld [vmem:[%s0 + $0x94] sm:$0xf]
  %v119 = vld [vmem:[%s0 + $0x98] sm:$0xf]
  %v120 = vld [vmem:[%s0 + $0x9c] sm:$0xf]
  %v121 = vld [vmem:[%s0 + $0xa0] sm:$0xf]
  %v122 = vld [vmem:[%s0 + $0xa4] sm:$0xf]
  %v123 = vld [vmem:[%s0 + $0xa8] sm:$0xf]
  %v124 = vld [vmem:[%s0 + $0xac] sm:$0xf]
  %v125 = vld [vmem:[%s0 + $0xb0] sm:$0xf]
  %v126 = vld [vmem:[%s0 + $0xb4] sm:$0xf]
  %v127 = vld [vmem:[%s0 + $0xb8] sm:$0xf]
  %v128 = vld [vmem:[%s0 + $0xbc] sm:$0xf]
  %v129 = vld [vmem:[%s0 + $0xc0] sm:$0xf]
  %v130 = vld [vmem:[%s0 + $0xc4] sm:$0xf]
  %v131 = vld [vmem:[%s0 + $0xc8] sm:$0xf]
  %v132 = vld [vmem:[%s0 + $0xcc] sm:$0xf]
  %v133 = vld [vmem:[%s0 + $0xd0] sm:$0xf]
  %v134 = vld [vmem:[%s0 + $0xd4] sm:$0xf]
  %v135 = vld [vmem:[%s0 + $0xd8] sm:$0xf]
  %v136 = vld [vmem:[%s0 + $0xdc] sm:$0xf]
  %v137 = vld [vmem:[%s0 + $0xe0] sm:$0xf]
  %v138 = vld [vmem:[%s0 + $0xe4] sm:$0xf]
  %v139 = vld [vmem:[%s0 + $0xe8] sm:$0xf]
  %v140 = vld [vmem:[%s0 + $0xec] sm:$0xf]
  %v141 = vld [vmem:[%s0 + $0xf0] sm:$0xf]
  %v142 = vld [vmem:[%s0 + $0xf4] sm:$0xf]
  %v143 = vld [vmem:[%s0 + $0xf8] sm:$0xf]
  %v144 = vld [vmem:[%s0 + $0xfc] sm:$0xf]
  %v145 = vunpack.c.l.bf16 %v81
  %v146 = vunpack.c.l.bf16 %v82
  %v147 = vunpack.c.l.bf16 %v83
  %v148 = vunpack.c.l.bf16 %v84
  %v149 = vunpack.c.l.bf16 %v85
  %v150 = vunpack.c.l.bf16 %v86
  %v151 = vunpack.c.l.bf16 %v87
  %v152 = vunpack.c.l.bf16 %v88
  %v153 = vunpack.c.l.bf16 %v89
  %v154 = vunpack.c.l.bf16 %v90
  %v155 = vunpack.c.l.bf16 %v91
  %v156 = vunpack.c.l.bf16 %v92
  %v157 = vunpack.c.l.bf16 %v93
  %v158 = vunpack.c.l.bf16 %v94
  %v159 = vunpack.c.l.bf16 %v95
  %v160 = vunpack.c.l.bf16 %v96
  %v161 = vunpack.c.l.bf16 %v97
  %v162 = vunpack.c.l.bf16 %v98
  %v163 = vunpack.c.l.bf16 %v99
  %v164 = vunpack.c.l.bf16 %v100
  %v165 = vunpack.c.l.bf16 %v101
  %v166 = vunpack.c.l.bf16 %v102
  %v167 = vunpack.c.l.bf16 %v103
  %v168 = vunpack.c.l.bf16 %v104
  %v169 = vunpack.c.l.bf16 %v105
  %v170 = vunpack.c.l.bf16 %v106
  %v171 = vunpack.c.l.bf16 %v107
  %v172 = vunpack.c.l.bf16 %v108
  %v173 = vunpack.c.l.bf16 %v109
  %v174 = vunpack.c.l.bf16 %v110
  %v175 = vunpack.c.l.bf16 %v111
  %v176 = vunpack.c.l.bf16 %v112
  %v177 = vunpack.c.l.bf16 %v113
  %v178 = vunpack.c.l.bf16 %v114
  %v179 = vunpack.c.l.bf16 %v115
  %v180 = vunpack.c.l.bf16 %v116
  %v181 = vunpack.c.l.bf16 %v117
  %v182 = vunpack.c.l.bf16 %v118
  %v183 = vunpack.c.l.bf16 %v119
  %v184 = vunpack.c.l.bf16 %v120
  %v185 = vunpack.c.l.bf16 %v121
  %v186 = vunpack.c.l.bf16 %v122
  %v187 = vunpack.c.l.bf16 %v123
  %v188 = vunpack.c.l.bf16 %v124
  %v189 = vunpack.c.l.bf16 %v125
  %v190 = vunpack.c.l.bf16 %v126
  %v191 = vunpack.c.l.bf16 %v127
  %v192 = vunpack.c.l.bf16 %v128
  %v193 = vunpack.c.l.bf16 %v129
  %v194 = vunpack.c.l.bf16 %v130
  %v195 = vunpack.c.l.bf16 %v131
  %v196 = vunpack.c.l.bf16 %v132
  %v197 = vunpack.c.l.bf16 %v133
  %v198 = vunpack.c.l.bf16 %v134
  %v199 = vunpack.c.l.bf16 %v135
  %v200 = vunpack.c.l.bf16 %v136
  %v201 = vunpack.c.l.bf16 %v137
  %v202 = vunpack.c.l.bf16 %v138
  %v203 = vunpack.c.l.bf16 %v139
  %v204 = vunpack.c.l.bf16 %v140
  %v205 = vunpack.c.l.bf16 %v141
  %v206 = vunpack.c.l.bf16 %v142
  %v207 = vunpack.c.l.bf16 %v143
  %v208 = vunpack.c.l.bf16 %v144
  %v209 = vld [vmem:[%s2] sm:$0x1]
  %v211 = vperm.slane %v209, 0
  %v213 = vmul.f32 %v145, %v211
  %v214 = vmul.f32 %v146, %v211
  %v215 = vmul.f32 %v147, %v211
  %v216 = vmul.f32 %v148, %v211
  %v217 = vmul.f32 %v149, %v211
  %v218 = vmul.f32 %v150, %v211
  %v219 = vmul.f32 %v151, %v211
  %v220 = vmul.f32 %v152, %v211
  %v221 = vmul.f32 %v153, %v211
  %v222 = vmul.f32 %v154, %v211
  %v223 = vmul.f32 %v155, %v211
  %v224 = vmul.f32 %v156, %v211
  %v225 = vmul.f32 %v157, %v211
  %v226 = vmul.f32 %v158, %v211
  %v227 = vmul.f32 %v159, %v211
  %v228 = vmul.f32 %v160, %v211
  %v229 = vmul.f32 %v161, %v211
  %v230 = vmul.f32 %v162, %v211
  %v231 = vmul.f32 %v163, %v211
  %v232 = vmul.f32 %v164, %v211
  %v233 = vmul.f32 %v165, %v211
  %v234 = vmul.f32 %v166, %v211
  %v235 = vmul.f32 %v167, %v211
  %v236 = vmul.f32 %v168, %v211
  %v237 = vmul.f32 %v169, %v211
  %v238 = vmul.f32 %v170, %v211
  %v239 = vmul.f32 %v171, %v211
  %v240 = vmul.f32 %v172, %v211
  %v241 = vmul.f32 %v173, %v211
  %v242 = vmul.f32 %v174, %v211
  %v243 = vmul.f32 %v175, %v211
  %v244 = vmul.f32 %v176, %v211
  %v245 = vmul.f32 %v177, %v211
  %v246 = vmul.f32 %v178, %v211
  %v247 = vmul.f32 %v179, %v211
  %v248 = vmul.f32 %v180, %v211
  %v249 = vmul.f32 %v181, %v211
  %v250 = vmul.f32 %v182, %v211
  %v251 = vmul.f32 %v183, %v211
  %v252 = vmul.f32 %v184, %v211
  %v253 = vmul.f32 %v185, %v211
  %v254 = vmul.f32 %v186, %v211
  %v255 = vmul.f32 %v187, %v211
  %v256 = vmul.f32 %v188, %v211
  %v257 = vmul.f32 %v189, %v211
  %v258 = vmul.f32 %v190, %v211
  %v259 = vmul.f32 %v191, %v211
  %v260 = vmul.f32 %v192, %v211
  %v261 = vmul.f32 %v193, %v211
  %v262 = vmul.f32 %v194, %v211
  %v263 = vmul.f32 %v195, %v211
  %v264 = vmul.f32 %v196, %v211
  %v265 = vmul.f32 %v197, %v211
  %v266 = vmul.f32 %v198, %v211
  %v267 = vmul.f32 %v199, %v211
  %v268 = vmul.f32 %v200, %v211
  %v269 = vmul.f32 %v201, %v211
  %v270 = vmul.f32 %v202, %v211
  %v271 = vmul.f32 %v203, %v211
  %v272 = vmul.f32 %v204, %v211
  %v273 = vmul.f32 %v205, %v211
  %v274 = vmul.f32 %v206, %v211
  %v275 = vmul.f32 %v207, %v211
  %v276 = vmul.f32 %v208, %v211
  %v277 = vadd.f32 %v17, %v213
  %v278 = vadd.f32 %v18, %v214
  %v279 = vadd.f32 %v19, %v215
  %v280 = vadd.f32 %v20, %v216
  %v281 = vadd.f32 %v21, %v217
  %v282 = vadd.f32 %v22, %v218
  %v283 = vadd.f32 %v23, %v219
  %v284 = vadd.f32 %v24, %v220
  %v285 = vadd.f32 %v25, %v221
  %v286 = vadd.f32 %v26, %v222
  %v287 = vadd.f32 %v27, %v223
  %v288 = vadd.f32 %v28, %v224
  %v289 = vadd.f32 %v29, %v225
  %v290 = vadd.f32 %v30, %v226
  %v291 = vadd.f32 %v31, %v227
  %v292 = vadd.f32 %v32, %v228
  %v293 = vadd.f32 %v33, %v229
  %v294 = vadd.f32 %v34, %v230
  %v295 = vadd.f32 %v35, %v231
  %v296 = vadd.f32 %v36, %v232
  %v297 = vadd.f32 %v37, %v233
  %v298 = vadd.f32 %v38, %v234
  %v299 = vadd.f32 %v39, %v235
  %v300 = vadd.f32 %v40, %v236
  %v301 = vadd.f32 %v41, %v237
  %v302 = vadd.f32 %v42, %v238
  %v303 = vadd.f32 %v43, %v239
  %v304 = vadd.f32 %v44, %v240
  %v305 = vadd.f32 %v45, %v241
  %v306 = vadd.f32 %v46, %v242
  %v307 = vadd.f32 %v47, %v243
  %v308 = vadd.f32 %v48, %v244
  %v309 = vadd.f32 %v49, %v245
  %v310 = vadd.f32 %v50, %v246
  %v311 = vadd.f32 %v51, %v247
  %v312 = vadd.f32 %v52, %v248
  %v313 = vadd.f32 %v53, %v249
  %v314 = vadd.f32 %v54, %v250
  %v315 = vadd.f32 %v55, %v251
  %v316 = vadd.f32 %v56, %v252
  %v317 = vadd.f32 %v57, %v253
  %v318 = vadd.f32 %v58, %v254
  %v319 = vadd.f32 %v59, %v255
  %v320 = vadd.f32 %v60, %v256
  %v321 = vadd.f32 %v61, %v257
  %v322 = vadd.f32 %v62, %v258
  %v323 = vadd.f32 %v63, %v259
  %v324 = vadd.f32 %v64, %v260
  %v325 = vadd.f32 %v65, %v261
  %v326 = vadd.f32 %v66, %v262
  %v327 = vadd.f32 %v67, %v263
  %v328 = vadd.f32 %v68, %v264
  %v329 = vadd.f32 %v69, %v265
  %v330 = vadd.f32 %v70, %v266
  %v331 = vadd.f32 %v71, %v267
  %v332 = vadd.f32 %v72, %v268
  %v333 = vadd.f32 %v73, %v269
  %v334 = vadd.f32 %v74, %v270
  %v335 = vadd.f32 %v75, %v271
  %v336 = vadd.f32 %v76, %v272
  %v337 = vadd.f32 %v77, %v273
  %v338 = vadd.f32 %v78, %v274
  %v339 = vadd.f32 %v79, %v275
  %v340 = vadd.f32 %v80, %v276
  %v341 = vld [vmem:[%s3] sm:$0x1]
  %v343 = vperm.slane %v341, 0
  %v345 = vadd.f32 %v277, %v343
  %v346 = vadd.f32 %v278, %v343
  %v347 = vadd.f32 %v279, %v343
  %v348 = vadd.f32 %v280, %v343
  %v349 = vadd.f32 %v281, %v343
  %v350 = vadd.f32 %v282, %v343
  %v351 = vadd.f32 %v283, %v343
  %v352 = vadd.f32 %v284, %v343
  %v353 = vadd.f32 %v285, %v343
  %v354 = vadd.f32 %v286, %v343
  %v355 = vadd.f32 %v287, %v343
  %v356 = vadd.f32 %v288, %v343
  %v357 = vadd.f32 %v289, %v343
  %v358 = vadd.f32 %v290, %v343
  %v359 = vadd.f32 %v291, %v343
  %v360 = vadd.f32 %v292, %v343
  %v361 = vadd.f32 %v293, %v343
  %v362 = vadd.f32 %v294, %v343
  %v363 = vadd.f32 %v295, %v343
  %v364 = vadd.f32 %v296, %v343
  %v365 = vadd.f32 %v297, %v343
  %v366 = vadd.f32 %v298, %v343
  %v367 = vadd.f32 %v299, %v343
  %v368 = vadd.f32 %v300, %v343
  %v369 = vadd.f32 %v301, %v343
  %v370 = vadd.f32 %v302, %v343
  %v371 = vadd.f32 %v303, %v343
  %v372 = vadd.f32 %v304, %v343
  %v373 = vadd.f32 %v305, %v343
  %v374 = vadd.f32 %v306, %v343
  %v375 = vadd.f32 %v307, %v343
  %v376 = vadd.f32 %v308, %v343
  %v377 = vadd.f32 %v309, %v343
  %v378 = vadd.f32 %v310, %v343
  %v379 = vadd.f32 %v311, %v343
  %v380 = vadd.f32 %v312, %v343
  %v381 = vadd.f32 %v313, %v343
  %v382 = vadd.f32 %v314, %v343
  %v383 = vadd.f32 %v315, %v343
  %v384 = vadd.f32 %v316, %v343
  %v385 = vadd.f32 %v317, %v343
  %v386 = vadd.f32 %v318, %v343
  %v387 = vadd.f32 %v319, %v343
  %v388 = vadd.f32 %v320, %v343
  %v389 = vadd.f32 %v321, %v343
  %v390 = vadd.f32 %v322, %v343
  %v391 = vadd.f32 %v323, %v343
  %v392 = vadd.f32 %v324, %v343
  %v393 = vadd.f32 %v325, %v343
  %v394 = vadd.f32 %v326, %v343
  %v395 = vadd.f32 %v327, %v343
  %v396 = vadd.f32 %v328, %v343
  %v397 = vadd.f32 %v329, %v343
  %v398 = vadd.f32 %v330, %v343
  %v399 = vadd.f32 %v331, %v343
  %v400 = vadd.f32 %v332, %v343
  %v401 = vadd.f32 %v333, %v343
  %v402 = vadd.f32 %v334, %v343
  %v403 = vadd.f32 %v335, %v343
  %v404 = vadd.f32 %v336, %v343
  %v405 = vadd.f32 %v337, %v343
  %v406 = vadd.f32 %v338, %v343
  %v407 = vadd.f32 %v339, %v343
  %v408 = vadd.f32 %v340, %v343
  %409 = vst [vmem:[%s4] sm:$0xff] %v345
  %410 = vst [vmem:[%s4 + $0x8] sm:$0xff] %v346
  %411 = vst [vmem:[%s4 + $0x10] sm:$0xff] %v347
  %412 = vst [vmem:[%s4 + $0x18] sm:$0xff] %v348
  %413 = vst [vmem:[%s4 + $0x20] sm:$0xff] %v349
  %414 = vst [vmem:[%s4 + $0x28] sm:$0xff] %v350
  %415 = vst [vmem:[%s4 + $0x30] sm:$0xff] %v351
  %416 = vst [vmem:[%s4 + $0x38] sm:$0xff] %v352
  %417 = vst [vmem:[%s4 + $0x40] sm:$0xff] %v353
  %418 = vst [vmem:[%s4 + $0x48] sm:$0xff] %v354
  %419 = vst [vmem:[%s4 + $0x50] sm:$0xff] %v355
  %420 = vst [vmem:[%s4 + $0x58] sm:$0xff] %v356
  %421 = vst [vmem:[%s4 + $0x60] sm:$0xff] %v357
  %422 = vst [vmem:[%s4 + $0x68] sm:$0xff] %v358
  %423 = vst [vmem:[%s4 + $0x70] sm:$0xff] %v359
  %424 = vst [vmem:[%s4 + $0x78] sm:$0xff] %v360
  %425 = vst [vmem:[%s4 + $0x80] sm:$0xff] %v361
  %426 = vst [vmem:[%s4 + $0x88] sm:$0xff] %v362
  %427 = vst [vmem:[%s4 + $0x90] sm:$0xff] %v363
  %428 = vst [vmem:[%s4 + $0x98] sm:$0xff] %v364
  %429 = vst [vmem:[%s4 + $0xa0] sm:$0xff] %v365
  %430 = vst [vmem:[%s4 + $0xa8] sm:$0xff] %v366
  %431 = vst [vmem:[%s4 + $0xb0] sm:$0xff] %v367
  %432 = vst [vmem:[%s4 + $0xb8] sm:$0xff] %v368
  %433 = vst [vmem:[%s4 + $0xc0] sm:$0xff] %v369
  %434 = vst [vmem:[%s4 + $0xc8] sm:$0xff] %v370
  %435 = vst [vmem:[%s4 + $0xd0] sm:$0xff] %v371
  %436 = vst [vmem:[%s4 + $0xd8] sm:$0xff] %v372
  %437 = vst [vmem:[%s4 + $0xe0] sm:$0xff] %v373
  %438 = vst [vmem:[%s4 + $0xe8] sm:$0xff] %v374
  %439 = vst [vmem:[%s4 + $0xf0] sm:$0xff] %v375
  %440 = vst [vmem:[%s4 + $0xf8] sm:$0xff] %v376
  %441 = vst [vmem:[%s4 + $0x100] sm:$0xff] %v377
  %442 = vst [vmem:[%s4 + $0x108] sm:$0xff] %v378
  %443 = vst [vmem:[%s4 + $0x110] sm:$0xff] %v379
  %444 = vst [vmem:[%s4 + $0x118] sm:$0xff] %v380
  %445 = vst [vmem:[%s4 + $0x120] sm:$0xff] %v381
  %446 = vst [vmem:[%s4 + $0x128] sm:$0xff] %v382
  %447 = vst [vmem:[%s4 + $0x130] sm:$0xff] %v383
  %448 = vst [vmem:[%s4 + $0x138] sm:$0xff] %v384
  %449 = vst [vmem:[%s4 + $0x140] sm:$0xff] %v385
  %450 = vst [vmem:[%s4 + $0x148] sm:$0xff] %v386
  %451 = vst [vmem:[%s4 + $0x150] sm:$0xff] %v387
  %452 = vst [vmem:[%s4 + $0x158] sm:$0xff] %v388
  %453 = vst [vmem:[%s4 + $0x160] sm:$0xff] %v389
  %454 = vst [vmem:[%s4 + $0x168] sm:$0xff] %v390
  %455 = vst [vmem:[%s4 + $0x170] sm:$0xff] %v391
  %456 = vst [vmem:[%s4 + $0x178] sm:$0xff] %v392
  %457 = vst [vmem:[%s4 + $0x180] sm:$0xff] %v393
  %458 = vst [vmem:[%s4 + $0x188] sm:$0xff] %v394
  %459 = vst [vmem:[%s4 + $0x190] sm:$0xff] %v395
  %460 = vst [vmem:[%s4 + $0x198] sm:$0xff] %v396
  %461 = vst [vmem:[%s4 + $0x1a0] sm:$0xff] %v397
  %462 = vst [vmem:[%s4 + $0x1a8] sm:$0xff] %v398
  %463 = vst [vmem:[%s4 + $0x1b0] sm:$0xff] %v399
  %464 = vst [vmem:[%s4 + $0x1b8] sm:$0xff] %v400
  %465 = vst [vmem:[%s4 + $0x1c0] sm:$0xff] %v401
  %466 = vst [vmem:[%s4 + $0x1c8] sm:$0xff] %v402
  %467 = vst [vmem:[%s4 + $0x1d0] sm:$0xff] %v403
  %468 = vst [vmem:[%s4 + $0x1d8] sm:$0xff] %v404
  %469 = vst [vmem:[%s4 + $0x1e0] sm:$0xff] %v405
  %470 = vst [vmem:[%s4 + $0x1e8] sm:$0xff] %v406
  %471 = vst [vmem:[%s4 + $0x1f0] sm:$0xff] %v407
  %472 = vst [vmem:[%s4 + $0x1f8] sm:$0xff] %v408
  // Predicated region
  $region18: #{_lambda_.3} parent=0 // pred_check
    _
  $region19: #{_lambda_.3} parent=0 // pred_check_branch
    %474 = sbr.rel (0) target = $region21
  $region20: #{_lambda_.3} parent=0 // pred_region
    _
  $region21: #{_lambda_.3} parent=0 // pred_fallthru
    _
  // Predicated region
  $region22: #{_lambda_.3} parent=0 // pred_check
    _
  $region23: #{_lambda_.3} parent=0 // pred_check_branch
    %476 = sbr.rel (0) target = $region25
  $region24: #{_lambda_.3} parent=0 // pred_region
    _
  $region25: #{_lambda_.3} parent=0 // pred_fallthru
    _

// kernel: _lambda_.2
$region0: #{_lambda_.2}
  #allocation0 [shape = 'u32[]', space=smem, size = 0x4, offset = 0x4, fixed_abs, tag = 'smem constant byte address 0x4 - core index']
  #allocation1 [shape = 'u32[72,128]{1,0:T(1,128)}', space=vmem, size = 0x9000, scoped, tag = 'internal scratch']
  #allocation2 [shape = 'f32[256,128]{1,0:T(8,128)}', space=vmem, size = 0x20000, scoped, tag = 'scratch operand']
  %s0 = inlined_call_operand.vmem [shape: bf16[2,18,18,128], index: 0, kind: input, shape index: {}]
  %s1 = inlined_call_operand.vmem [shape: bf16[3,384,128], index: 1, kind: input, shape index: {}]
  %s2 = inlined_call_operand.vmem [shape: f32[1,128], index: 2, kind: input, shape index: {}]
  %s3 = inlined_call_operand.vmem [shape: bf16[2,256,128], index: 3, kind: output, shape index: {0}]
  %s4 = inlined_call_operand.vmem [shape: f32[2,1,1,128], index: 4, kind: output, shape index: {1}]
  %s5 = inlined_call_operand.vmem [shape: f32[2,1,1,128], index: 5, kind: output, shape index: {2}]
  %6 = xla_tuple %s3, %s4, %s5
  %s7 = sld [smem:[#allocation0]]
  $region61: #{_lambda_.2} parent=0
    _
  %s9 = ssub.s32 1, %s7
  %s10 = scalar_select 0, %s9, %s7
  loop: start=0, step=1, limit=4
  $region2: #{_lambda_.2} parent=0 // loop_pre_header
    _
  $region3: #{_lambda_.2} parent=0 // loop_header
    %s12 = sphi 0, %s16
    %p13 = scmp.ge.s32.totalorder %s12, 4
    %s19 = sphi 0, %s31
    %s20 = sphi 0, %s27
    %s21 = sphi 0, %s19
    %s22 = sphi 0, %s20
    %s23 = sphi 0, %s21
    %s24 = sphi 0, %s22
    %s34 = sphi 0, %s36
    %s37 = sphi 0, %s34
    %s38 = sphi 0, %s37
    %s54 = sphi 0, %s38
    %s58 = sphi 0, %s58
    %s60 = sphi 0, %s58
    %s61 = sphi 0, %s60
    %s75 = sphi 0, %s61
    %s79 = sphi 0, %s79
    %s81 = sphi 0, %s79
    %s82 = sphi 0, %s81
    %s96 = sphi 0, %s82
    %s104 = sphi 0, %s106
    %s107 = sphi 0, %s104
    %s108 = sphi 0, %s107
    %s124 = sphi 0, %s108
    %s132 = sphi 0, %s134
    %s135 = sphi 0, %s132
    %s136 = sphi 0, %s135
    %s152 = sphi 0, %s136
    %s160 = sphi 0, %s162
    %s163 = sphi 0, %s160
    %s164 = sphi 0, %s163
    %s180 = sphi 0, %s164
  $region4: #{_lambda_.2} parent=0 // loop_header_branch
    %15 = sbr.rel (%p13) target = $region8
  $region5: #{_lambda_.2} parent=0 // loop_body
    %s17 = ssub.s32 %s12, 1
    %s18 = ssub.s32 %s12, 2
    %s25 = sadd.s32 1, %s20
    %p26 = scmp.ge.s32.totalorder %s25, 1
    %s27 = scalar_select %p26, 0, %s25
    %s28 = sadd.s32 1, %s19
    %s29 = scalar_select %p26, %s28, %s19
    %p30 = scmp.ge.s32.totalorder %s29, 2
    %s31 = scalar_select %p30, 0, %s29
    %s32 = ssub.s32 %s19, %s31
    %p33 = scmp.eq.s32.totalorder %s32, 0
    %s35 = sadd.s32 %s34, 1
    %s36 = scalar_select %p33, %s34, %s35
    %p39 = pneg %p33
    %p40 = scmp.eq.s32.totalorder %s12, 1
    %p41 = por %p39, %p40
    %p42 = scmp.ne.s32.totalorder %s34, %s37
    %p43 = scmp.eq.s32.totalorder %s12, 0
    %p44 = por %p42, %p43
    %p45 = scmp.ne.s32.totalorder %s34, %s37
    %p46 = scmp.eq.s32.totalorder %s17, 1
    %p47 = por %p45, %p46
    %p48 = scmp.ne.s32.totalorder %s37, %s38
    %p49 = scmp.eq.s32.totalorder %s17, 0
    %p50 = por %p48, %p49
    %p51 = scmp.ne.s32.totalorder %s37, %s38
    %p52 = scmp.eq.s32.totalorder %s18, 1
    %p53 = por %p51, %p52
    %p55 = scmp.ne.s32.totalorder %s38, %s54
    %p56 = scmp.eq.s32.totalorder %s18, 0
    %p57 = por %p55, %p56
    %s59 = sadd.s32 %s58, 1
    %p62 = scmp.eq.s32.totalorder %s12, 1
    %p63 = scmp.ne.s32.totalorder %s58, %s60
    %p64 = scmp.eq.s32.totalorder %s12, 0
    %p65 = por %p63, %p64
    %p66 = scmp.ne.s32.totalorder %s58, %s60
    %p67 = scmp.eq.s32.totalorder %s17, 1
    %p68 = por %p66, %p67
    %p69 = scmp.ne.s32.totalorder %s60, %s61
    %p70 = scmp.eq.s32.totalorder %s17, 0
    %p71 = por %p69, %p70
    %p72 = scmp.ne.s32.totalorder %s60, %s61
    %p73 = scmp.eq.s32.totalorder %s18, 1
    %p74 = por %p72, %p73
    %p76 = scmp.ne.s32.totalorder %s61, %s75
    %p77 = scmp.eq.s32.totalorder %s18, 0
    %p78 = por %p76, %p77
    %s80 = sadd.s32 %s79, 1
    %p83 = scmp.eq.s32.totalorder %s12, 1
    %p84 = scmp.ne.s32.totalorder %s79, %s81
    %p85 = scmp.eq.s32.totalorder %s12, 0
    %p86 = por %p84, %p85
    %p87 = scmp.ne.s32.totalorder %s79, %s81
    %p88 = scmp.eq.s32.totalorder %s17, 1
    %p89 = por %p87, %p88
    %p90 = scmp.ne.s32.totalorder %s81, %s82
    %p91 = scmp.eq.s32.totalorder %s17, 0
    %p92 = por %p90, %p91
    %p93 = scmp.ne.s32.totalorder %s81, %s82
    %p94 = scmp.eq.s32.totalorder %s18, 1
    %p95 = por %p93, %p94
    %p97 = scmp.ne.s32.totalorder %s82, %s96
    %p98 = scmp.eq.s32.totalorder %s18, 0
    %p99 = por %p97, %p98
    %s100 = ssub.s32 %s19, %s31
    %s101 = ssub.s32 %s20, %s27
    %s102 = sor.u32 %s100, %s101
    %p103 = scmp.eq.s32.totalorder %s102, 0
    %s105 = sadd.s32 %s104, 1
    %s106 = scalar_select %p103, %s104, %s105
    %p109 = pneg %p103
    %p110 = scmp.eq.s32.totalorder %s12, 1
    %p111 = por %p109, %p110
    %p112 = scmp.ne.s32.totalorder %s104, %s107
    %p113 = scmp.eq.s32.totalorder %s12, 0
    %p114 = por %p112, %p113
    %p115 = scmp.ne.s32.totalorder %s104, %s107
    %p116 = scmp.eq.s32.totalorder %s17, 1
    %p117 = por %p115, %p116
    %p118 = scmp.ne.s32.totalorder %s107, %s108
    %p119 = scmp.eq.s32.totalorder %s17, 0
    %p120 = por %p118, %p119
    %p121 = scmp.ne.s32.totalorder %s107, %s108
    %p122 = scmp.eq.s32.totalorder %s18, 1
    %p123 = por %p121, %p122
    %p125 = scmp.ne.s32.totalorder %s108, %s124
    %p126 = scmp.eq.s32.totalorder %s18, 0
    %p127 = por %p125, %p126
    %s128 = ssub.s32 %s19, %s31
    %s129 = ssub.s32 %s20, %s27
    %s130 = sor.u32 %s128, %s129
    %p131 = scmp.eq.s32.totalorder %s130, 0
    %s133 = sadd.s32 %s132, 1
    %s134 = scalar_select %p131, %s132, %s133
    %p137 = pneg %p131
    %p138 = scmp.eq.s32.totalorder %s12, 1
    %p139 = por %p137, %p138
    %p140 = scmp.ne.s32.totalorder %s132, %s135
    %p141 = scmp.eq.s32.totalorder %s12, 0
    %p142 = por %p140, %p141
    %p143 = scmp.ne.s32.totalorder %s132, %s135
    %p144 = scmp.eq.s32.totalorder %s17, 1
    %p145 = por %p143, %p144
    %p146 = scmp.ne.s32.totalorder %s135, %s136
    %p147 = scmp.eq.s32.totalorder %s17, 0
    %p148 = por %p146, %p147
    %p149 = scmp.ne.s32.totalorder %s135, %s136
    %p150 = scmp.eq.s32.totalorder %s18, 1
    %p151 = por %p149, %p150
    %p153 = scmp.ne.s32.totalorder %s136, %s152
    %p154 = scmp.eq.s32.totalorder %s18, 0
    %p155 = por %p153, %p154
    %s156 = ssub.s32 %s19, %s31
    %s157 = ssub.s32 %s20, %s27
    %s158 = sor.u32 %s156, %s157
    %p159 = scmp.eq.s32.totalorder %s158, 0
    %s161 = sadd.s32 %s160, 1
    %s162 = scalar_select %p159, %s160, %s161
    %p165 = pneg %p159
    %p166 = scmp.eq.s32.totalorder %s12, 1
    %p167 = por %p165, %p166
    %p168 = scmp.ne.s32.totalorder %s160, %s163
    %p169 = scmp.eq.s32.totalorder %s12, 0
    %p170 = por %p168, %p169
    %p171 = scmp.ne.s32.totalorder %s160, %s163
    %p172 = scmp.eq.s32.totalorder %s17, 1
    %p173 = por %p171, %p172
    %p174 = scmp.ne.s32.totalorder %s163, %s164
    %p175 = scmp.eq.s32.totalorder %s17, 0
    %p176 = por %p174, %p175
    %p177 = scmp.ne.s32.totalorder %s163, %s164
    %p178 = scmp.eq.s32.totalorder %s18, 1
    %p179 = por %p177, %p178
    %p181 = scmp.ne.s32.totalorder %s164, %s180
    %p182 = scmp.eq.s32.totalorder %s18, 0
    %p183 = por %p181, %p182
    %p184 = scmp.le.s32.totalorder 1, %s12
    %p185 = scmp.lt.s32.totalorder %s12, 3
    %p186 = pnand %p184, %p185
    %p187 = pneg %p186
    // Predicated region
    $region9: #{_lambda_.2} parent=5 // pred_check
      _
    $region10: #{_lambda_.2} parent=5 // pred_check_branch
      %189 = sbr.rel (%p186) target = $region12
    $region11: #{_lambda_.2} parent=5 // pred_region
      %s190 = ssub.s32 %s12, 1
      // Predicated region
      $region13: #{_lambda_.2} parent=11 // pred_check
        %p191 = pneg %p71
      $region14: #{_lambda_.2} parent=11 // pred_check_branch
        %193 = sbr.rel (%p191) target = $region16
      $region15: #{_lambda_.2} parent=11 // pred_region
        _
      $region16: #{_lambda_.2} parent=11 // pred_fallthru
        _
      // Predicated region
      $region17: #{_lambda_.2} parent=11 // pred_check
        %p194 = pneg %p92
      $region18: #{_lambda_.2} parent=11 // pred_check_branch
        %196 = sbr.rel (%p194) target = $region20
      $region19: #{_lambda_.2} parent=11 // pred_region
        _
      $region20: #{_lambda_.2} parent=11 // pred_fallthru
        _
    $region12: #{_lambda_.2} parent=5 // pred_fallthru
      _
    %p197 = scmp.lt.s32.totalorder %s12, 2
    // Predicated region
    $region21: #{_lambda_.2} parent=5 // pred_check
      %p198 = pneg %p197
    $region22: #{_lambda_.2} parent=5 // pred_check_branch
      %200 = sbr.rel (%p198) target = $region24
    $region23: #{_lambda_.2} parent=5 // pred_region
      // Predicated region
      $region25: #{_lambda_.2} parent=23 // pred_check
        %p201 = pneg %p44
      $region26: #{_lambda_.2} parent=23 // pred_check_branch
        %203 = sbr.rel (%p201) target = $region28
      $region27: #{_lambda_.2} parent=23 // pred_region
        %p204 = scmp.lt.s32.totalorder %s19, 1
        %s205 = scalar_select %p204, %s19, 1
        %s206 = smul.addr %s205, 54
        %s207 = smul.addr %s206, 4
        %s208 = scalar_lea.vmem %s0, %s207
      $region28: #{_lambda_.2} parent=23 // pred_fallthru
        _
    $region24: #{_lambda_.2} parent=5 // pred_fallthru
      _
    %p209 = scmp.le.s32.totalorder 1, %s12
    %p210 = scmp.lt.s32.totalorder %s12, 3
    %p211 = pnand %p209, %p210
    %p212 = pneg %p211
    // Predicated region
    $region29: #{_lambda_.2} parent=5 // pred_check
      _
    $region30: #{_lambda_.2} parent=5 // pred_check_branch
      %214 = sbr.rel (%p211) target = $region32
    $region31: #{_lambda_.2} parent=5 // pred_region
      %s215 = ssub.s32 %s12, 1
      %p216 = scmp.lt.s32.totalorder %s21, 1
      %s217 = scalar_select %p216, %s21, 1
      %s218 = smul.addr %s217, 54
      %s219 = smul.addr %s218, 4
      %s220 = scalar_lea.vmem %s0, %s219
      %p221 = pneg %p50
      %p222 = pneg %p47
      %p223 = pneg %p71
      %p224 = pneg %p68
      %p225 = pneg %p92
      %p226 = pneg %p89
      %p227 = pneg %p120
      %p228 = pneg %p117
      %s229 = smul.u32 32, %s22
      %p230 = scmp.lt.s32.totalorder %s21, 1
      %s231 = scalar_select %p230, %s21, 1
      %p232 = scmp.lt.s32.totalorder %s229, 31
      %s233 = scalar_select %p232, %s229, 31
      %s234 = smul.addr %s231, 32
      %s235 = sadd.s32 %s233, %s234
      %s236 = smul.addr %s235, 4
      %s237 = scalar_lea.vmem %s3, %s236
      %p238 = pneg %p148
      %p239 = pneg %p145
      %p240 = scmp.lt.s32.totalorder %s21, 1
      %s241 = scalar_select %p240, %s21, 1
      %p242 = scmp.lt.s32.totalorder %s22, 0
      %s243 = scalar_select %p242, %s22, 0
      %s244 = sadd.s32 %s243, %s241
      %s245 = scalar_lea.vmem %s4, %s244
      %p246 = pneg %p176
      %p247 = pneg %p173
      %p248 = scmp.lt.s32.totalorder %s21, 1
      %s249 = scalar_select %p248, %s21, 1
      %p250 = scmp.lt.s32.totalorder %s22, 0
      %s251 = scalar_select %p250, %s22, 0
      %s252 = sadd.s32 %s251, %s249
      %s253 = scalar_lea.vmem %s5, %s252
      %p254 = scmp.lt.s32.totalorder %s21, 1
      %s255 = scalar_select %p254, %s21, 1
      %s256 = smul.addr %s255, 54
      %s257 = smul.addr %s256, 4
      %s258 = scalar_lea.vmem %s0, %s257
      %s259 = smul.u32 32, %s22
      %p260 = scmp.lt.s32.totalorder %s21, 1
      %s261 = scalar_select %p260, %s21, 1
      %p262 = scmp.lt.s32.totalorder %s259, 31
      %s263 = scalar_select %p262, %s259, 31
      %s264 = smul.addr %s261, 32
      %s265 = sadd.s32 %s263, %s264
      %s266 = smul.addr %s265, 4
      %s267 = scalar_lea.vmem %s3, %s266
      %s268 = smul.u32 32, %s22
      %p269 = scmp.lt.s32.totalorder %s21, 1
      %s270 = scalar_select %p269, %s21, 1
      %p271 = scmp.lt.s32.totalorder %s22, 0
      %s272 = scalar_select %p271, %s22, 0
      %s273 = sadd.s32 %s272, %s270
      %s274 = scalar_lea.vmem %s4, %s273
      %p275 = scmp.lt.s32.totalorder %s21, 1
      %s276 = scalar_select %p275, %s21, 1
      %p277 = scmp.lt.s32.totalorder %s22, 0
      %s278 = scalar_select %p277, %s22, 0
      %s279 = sadd.s32 %s278, %s276
      %s280 = scalar_lea.vmem %s5, %s279
      %s281 = smul.u32 %s22, 16
      %s282 = smul.u32 %s281, 3
      %s283 = smul.addr %s282, 4
      %s284 = scalar_lea.vmem %s258, %s283
      %v285 = vld [vmem:[%s284] sm:$0xf]
      %v286 = vld [vmem:[%s284 + $0x4] sm:$0xf]
      %v287 = vld [vmem:[%s284 + $0xc] sm:$0xf]
      %v288 = vld [vmem:[%s284 + $0x10] sm:$0xf]
      %v289 = vld [vmem:[%s284 + $0x18] sm:$0xf]
      %v290 = vld [vmem:[%s284 + $0x1c] sm:$0xf]
      %v291 = vld [vmem:[%s284 + $0x24] sm:$0xf]
      %v292 = vld [vmem:[%s284 + $0x28] sm:$0xf]
      %v293 = vld [vmem:[%s284 + $0x30] sm:$0xf]
      %v294 = vld [vmem:[%s284 + $0x34] sm:$0xf]
      %v295 = vld [vmem:[%s284 + $0x3c] sm:$0xf]
      %v296 = vld [vmem:[%s284 + $0x40] sm:$0xf]
      %v297 = vld [vmem:[%s284 + $0x48] sm:$0xf]
      %v298 = vld [vmem:[%s284 + $0x4c] sm:$0xf]
      %v299 = vld [vmem:[%s284 + $0x54] sm:$0xf]
      %v300 = vld [vmem:[%s284 + $0x58] sm:$0xf]
      %v301 = vld [vmem:[%s284 + $0x60] sm:$0xf]
      %v302 = vld [vmem:[%s284 + $0x64] sm:$0xf]
      %v303 = vld [vmem:[%s284 + $0x6c] sm:$0xf]
      %v304 = vld [vmem:[%s284 + $0x70] sm:$0xf]
      %v305 = vld [vmem:[%s284 + $0x78] sm:$0xf]
      %v306 = vld [vmem:[%s284 + $0x7c] sm:$0xf]
      %v307 = vld [vmem:[%s284 + $0x84] sm:$0xf]
      %v308 = vld [vmem:[%s284 + $0x88] sm:$0xf]
      %v309 = vld [vmem:[%s284 + $0x90] sm:$0xf]
      %v310 = vld [vmem:[%s284 + $0x94] sm:$0xf]
      %v311 = vld [vmem:[%s284 + $0x9c] sm:$0xf]
      %v312 = vld [vmem:[%s284 + $0xa0] sm:$0xf]
      %v313 = vld [vmem:[%s284 + $0xa8] sm:$0xf]
      %v314 = vld [vmem:[%s284 + $0xac] sm:$0xf]
      %v315 = vld [vmem:[%s284 + $0xb4] sm:$0xf]
      %v316 = vld [vmem:[%s284 + $0xb8] sm:$0xf]
      %v317 = vld [vmem:[%s284 + $0xc0] sm:$0xf]
      %v318 = vld [vmem:[%s284 + $0xc4] sm:$0xf]
      %v319 = vld [vmem:[%s284 + $0xcc] sm:$0xf]
      %v320 = vld [vmem:[%s284 + $0xd0] sm:$0xf]
      %v321 = vld [vmem:[%s284 + $0x8] sm:$0x1]
      %v322 = vld [vmem:[%s284 + $0x14] sm:$0x1]
      %v323 = vld [vmem:[%s284 + $0x20] sm:$0x1]
      %v324 = vld [vmem:[%s284 + $0x2c] sm:$0x1]
      %v325 = vld [vmem:[%s284 + $0x38] sm:$0x1]
      %v326 = vld [vmem:[%s284 + $0x44] sm:$0x1]
      %v327 = vld [vmem:[%s284 + $0x50] sm:$0x1]
      %v328 = vld [vmem:[%s284 + $0x5c] sm:$0x1]
      %v329 = vld [vmem:[%s284 + $0x68] sm:$0x1]
      %v330 = vld [vmem:[%s284 + $0x74] sm:$0x1]
      %v331 = vld [vmem:[%s284 + $0x80] sm:$0x1]
      %v332 = vld [vmem:[%s284 + $0x8c] sm:$0x1]
      %v333 = vld [vmem:[%s284 + $0x98] sm:$0x1]
      %v334 = vld [vmem:[%s284 + $0xa4] sm:$0x1]
      %v335 = vld [vmem:[%s284 + $0xb0] sm:$0x1]
      %v336 = vld [vmem:[%s284 + $0xbc] sm:$0x1]
      %v337 = vld [vmem:[%s284 + $0xc8] sm:$0x1]
      %v338 = vld [vmem:[%s284 + $0xd4] sm:$0x1]
      %v339 = vld [vmem:[%s284] sm:$0xe]
      %v340 = vld [vmem:[%s284 + $0xc] sm:$0xe]
      %v341 = vld [vmem:[%s284 + $0x18] sm:$0xe]
      %v342 = vld [vmem:[%s284 + $0x24] sm:$0xe]
      %v343 = vld [vmem:[%s284 + $0x30] sm:$0xe]
      %v344 = vld [vmem:[%s284 + $0x3c] sm:$0xe]
      %v345 = vld [vmem:[%s284 + $0x48] sm:$0xe]
      %v346 = vld [vmem:[%s284 + $0x54] sm:$0xe]
      %v347 = vld [vmem:[%s284 + $0x60] sm:$0xe]
      %v348 = vld [vmem:[%s284 + $0x6c] sm:$0xe]
      %v349 = vld [vmem:[%s284 + $0x78] sm:$0xe]
      %v350 = vld [vmem:[%s284 + $0x84] sm:$0xe]
      %v351 = vld [vmem:[%s284 + $0x90] sm:$0xe]
      %v352 = vld [vmem:[%s284 + $0x9c] sm:$0xe]
      %v353 = vld [vmem:[%s284 + $0xa8] sm:$0xe]
      %v354 = vld [vmem:[%s284 + $0xb4] sm:$0xe]
      %v355 = vld [vmem:[%s284 + $0xc0] sm:$0xe]
      %v356 = vld [vmem:[%s284 + $0xcc] sm:$0xe]
      %v393 = vunpack.c.l.b16 %v285
      %v394 = vunpack.c.l.b16 %v286
      %v395 = vunpack.c.l.b16 %v287
      %v396 = vunpack.c.l.b16 %v288
      %v397 = vunpack.c.l.b16 %v289
      %v398 = vunpack.c.l.b16 %v290
      %v399 = vunpack.c.l.b16 %v291
      %v400 = vunpack.c.l.b16 %v292
      %v401 = vunpack.c.l.b16 %v293
      %v402 = vunpack.c.l.b16 %v294
      %v403 = vunpack.c.l.b16 %v295
      %v404 = vunpack.c.l.b16 %v296
      %v405 = vunpack.c.l.b16 %v297
      %v406 = vunpack.c.l.b16 %v298
      %v407 = vunpack.c.l.b16 %v299
      %v408 = vunpack.c.l.b16 %v300
      %v409 = vunpack.c.l.b16 %v301
      %v410 = vunpack.c.l.b16 %v302
      %v411 = vunpack.c.l.b16 %v303
      %v412 = vunpack.c.l.b16 %v304
      %v413 = vunpack.c.l.b16 %v305
      %v414 = vunpack.c.l.b16 %v306
      %v415 = vunpack.c.l.b16 %v307
      %v416 = vunpack.c.l.b16 %v308
      %v417 = vunpack.c.l.b16 %v309
      %v418 = vunpack.c.l.b16 %v310
      %v419 = vunpack.c.l.b16 %v311
      %v420 = vunpack.c.l.b16 %v312
      %v421 = vunpack.c.l.b16 %v313
      %v422 = vunpack.c.l.b16 %v314
      %v423 = vunpack.c.l.b16 %v315
      %v424 = vunpack.c.l.b16 %v316
      %v425 = vunpack.c.l.b16 %v317
      %v426 = vunpack.c.l.b16 %v318
      %v427 = vunpack.c.l.b16 %v319
      %v428 = vunpack.c.l.b16 %v320
      %v429 = vpack.c.b16 %v394, %v393
      %v430 = vpack.c.b16 %v396, %v395
      %v431 = vpack.c.b16 %v398, %v397
      %v432 = vpack.c.b16 %v400, %v399
      %v433 = vpack.c.b16 %v402, %v401
      %v434 = vpack.c.b16 %v404, %v403
      %v435 = vpack.c.b16 %v406, %v405
      %v436 = vpack.c.b16 %v408, %v407
      %v437 = vpack.c.b16 %v410, %v409
      %v438 = vpack.c.b16 %v412, %v411
      %v439 = vpack.c.b16 %v414, %v413
      %v440 = vpack.c.b16 %v416, %v415
      %v441 = vpack.c.b16 %v418, %v417
      %v442 = vpack.c.b16 %v420, %v419
      %v443 = vpack.c.b16 %v422, %v421
      %v444 = vpack.c.b16 %v424, %v423
      %v445 = vpack.c.b16 %v426, %v425
      %v446 = vpack.c.b16 %v428, %v427
      %v483 = vunpack.c.l.b16 %v321
      %v484 = vunpack.c.l.b16 %v322
      %v485 = vunpack.c.l.b16 %v323
      %v486 = vunpack.c.l.b16 %v324
      %v487 = vunpack.c.l.b16 %v325
      %v488 = vunpack.c.l.b16 %v326
      %v489 = vunpack.c.l.b16 %v327
      %v490 = vunpack.c.l.b16 %v328
      %v491 = vunpack.c.l.b16 %v329
      %v492 = vunpack.c.l.b16 %v330
      %v493 = vunpack.c.l.b16 %v331
      %v494 = vunpack.c.l.b16 %v332
      %v495 = vunpack.c.l.b16 %v333
      %v496 = vunpack.c.l.b16 %v334
      %v497 = vunpack.c.l.b16 %v335
      %v498 = vunpack.c.l.b16 %v336
      %v499 = vunpack.c.l.b16 %v337
      %v500 = vunpack.c.l.b16 %v338
      %v501 = vpack.c.b16 %v483, %v483
      %v502 = vpack.c.b16 %v484, %v484
      %v503 = vpack.c.b16 %v485, %v485
      %v504 = vpack.c.b16 %v486, %v486
      %v505 = vpack.c.b16 %v487, %v487
      %v506 = vpack.c.b16 %v488, %v488
      %v507 = vpack.c.b16 %v489, %v489
      %v508 = vpack.c.b16 %v490, %v490
      %v509 = vpack.c.b16 %v491, %v491
      %v510 = vpack.c.b16 %v492, %v492
      %v511 = vpack.c.b16 %v493, %v493
      %v512 = vpack.c.b16 %v494, %v494
      %v513 = vpack.c.b16 %v495, %v495
      %v514 = vpack.c.b16 %v496, %v496
      %v515 = vpack.c.b16 %v497, %v497
      %v516 = vpack.c.b16 %v498, %v498
      %v517 = vpack.c.b16 %v499, %v499
      %v518 = vpack.c.b16 %v500, %v500
      %vm519 = vsmask.f32 7424
      %v521 = vshrl.u32 %v429, 16
      %v523 = vshll.u32 %v429, 16
      %v525 = vrot.slane %v523, 1
      %v526 = vor.u32 %v521, %v525
      %v528 = vshll.u32 %v501, 16
      %v530 = vrot.slane %v528, 1
      %v531 = vsel %vm519, %v526, %v530
      %v533 = vshrl.u32 %v430, 16
      %v535 = vshll.u32 %v430, 16
      %v537 = vrot.slane %v535, 1
      %v538 = vor.u32 %v533, %v537
      %v540 = vshll.u32 %v502, 16
      %v542 = vrot.slane %v540, 1
      %v543 = vsel %vm519, %v538, %v542
      %v545 = vshrl.u32 %v431, 16
      %v547 = vshll.u32 %v431, 16
      %v549 = vrot.slane %v547, 1
      %v550 = vor.u32 %v545, %v549
      %v552 = vshll.u32 %v503, 16
      %v554 = vrot.slane %v552, 1
      %v555 = vsel %vm519, %v550, %v554
      %v557 = vshrl.u32 %v432, 16
      %v559 = vshll.u32 %v432, 16
      %v561 = vrot.slane %v559, 1
      %v562 = vor.u32 %v557, %v561
      %v564 = vshll.u32 %v504, 16
      %v566 = vrot.slane %v564, 1
      %v567 = vsel %vm519, %v562, %v566
      %v569 = vshrl.u32 %v433, 16
      %v571 = vshll.u32 %v433, 16
      %v573 = vrot.slane %v571, 1
      %v574 = vor.u32 %v569, %v573
      %v576 = vshll.u32 %v505, 16
      %v578 = vrot.slane %v576, 1
      %v579 = vsel %vm519, %v574, %v578
      %v581 = vshrl.u32 %v434, 16
      %v583 = vshll.u32 %v434, 16
      %v585 = vrot.slane %v583, 1
      %v586 = vor.u32 %v581, %v585
      %v588 = vshll.u32 %v506, 16
      %v590 = vrot.slane %v588, 1
      %v591 = vsel %vm519, %v586, %v590
      %v593 = vshrl.u32 %v435, 16
      %v595 = vshll.u32 %v435, 16
      %v597 = vrot.slane %v595, 1
      %v598 = vor.u32 %v593, %v597
      %v600 = vshll.u32 %v507, 16
      %v602 = vrot.slane %v600, 1
      %v603 = vsel %vm519, %v598, %v602
      %v605 = vshrl.u32 %v436, 16
      %v607 = vshll.u32 %v436, 16
      %v609 = vrot.slane %v607, 1
      %v610 = vor.u32 %v605, %v609
      %v612 = vshll.u32 %v508, 16
      %v614 = vrot.slane %v612, 1
      %v615 = vsel %vm519, %v610, %v614
      %v617 = vshrl.u32 %v437, 16
      %v619 = vshll.u32 %v437, 16
      %v621 = vrot.slane %v619, 1
      %v622 = vor.u32 %v617, %v621
      %v624 = vshll.u32 %v509, 16
      %v626 = vrot.slane %v624, 1
      %v627 = vsel %vm519, %v622, %v626
      %v629 = vshrl.u32 %v438, 16
      %v631 = vshll.u32 %v438, 16
      %v633 = vrot.slane %v631, 1
      %v634 = vor.u32 %v629, %v633
      %v636 = vshll.u32 %v510, 16
      %v638 = vrot.slane %v636, 1
      %v639 = vsel %vm519, %v634, %v638
      %v641 = vshrl.u32 %v439, 16
      %v643 = vshll.u32 %v439, 16
      %v645 = vrot.slane %v643, 1
      %v646 = vor.u32 %v641, %v645
      %v648 = vshll.u32 %v511, 16
      %v650 = vrot.slane %v648, 1
      %v651 = vsel %vm519, %v646, %v650
      %v653 = vshrl.u32 %v440, 16
      %v655 = vshll.u32 %v440, 16
      %v657 = vrot.slane %v655, 1
      %v658 = vor.u32 %v653, %v657
      %v660 = vshll.u32 %v512, 16
      %v662 = vrot.slane %v660, 1
      %v663 = vsel %vm519, %v658, %v662
      %v665 = vshrl.u32 %v441, 16
      %v667 = vshll.u32 %v441, 16
      %v669 = vrot.slane %v667, 1
      %v670 = vor.u32 %v665, %v669
      %v672 = vshll.u32 %v513, 16
      %v674 = vrot.slane %v672, 1
      %v675 = vsel %vm519, %v670, %v674
      %v677 = vshrl.u32 %v442, 16
      %v679 = vshll.u32 %v442, 16
      %v681 = vrot.slane %v679, 1
      %v682 = vor.u32 %v677, %v681
      %v684 = vshll.u32 %v514, 16
      %v686 = vrot.slane %v684, 1
      %v687 = vsel %vm519, %v682, %v686
      %v689 = vshrl.u32 %v443, 16
      %v691 = vshll.u32 %v443, 16
      %v693 = vrot.slane %v691, 1
      %v694 = vor.u32 %v689, %v693
      %v696 = vshll.u32 %v515, 16
      %v698 = vrot.slane %v696, 1
      %v699 = vsel %vm519, %v694, %v698
      %v701 = vshrl.u32 %v444, 16
      %v703 = vshll.u32 %v444, 16
      %v705 = vrot.slane %v703, 1
      %v706 = vor.u32 %v701, %v705
      %v708 = vshll.u32 %v516, 16
      %v710 = vrot.slane %v708, 1
      %v711 = vsel %vm519, %v706, %v710
      %v713 = vshrl.u32 %v445, 16
      %v715 = vshll.u32 %v445, 16
      %v717 = vrot.slane %v715, 1
      %v718 = vor.u32 %v713, %v717
      %v720 = vshll.u32 %v517, 16
      %v722 = vrot.slane %v720, 1
      %v723 = vsel %vm519, %v718, %v722
      %v725 = vshrl.u32 %v446, 16
      %v727 = vshll.u32 %v446, 16
      %v729 = vrot.slane %v727, 1
      %v730 = vor.u32 %v725, %v729
      %v732 = vshll.u32 %v518, 16
      %v734 = vrot.slane %v732, 1
      %v735 = vsel %vm519, %v730, %v734
      %v772 = vunpack.c.l.b16 %v339
      %v773 = vunpack.c.l.b16 %v340
      %v774 = vunpack.c.l.b16 %v341
      %v775 = vunpack.c.l.b16 %v342
      %v776 = vunpack.c.l.b16 %v343
      %v777 = vunpack.c.l.b16 %v344
      %v778 = vunpack.c.l.b16 %v345
      %v779 = vunpack.c.l.b16 %v346
      %v780 = vunpack.c.l.b16 %v347
      %v781 = vunpack.c.l.b16 %v348
      %v782 = vunpack.c.l.b16 %v349
      %v783 = vunpack.c.l.b16 %v350
      %v784 = vunpack.c.l.b16 %v351
      %v785 = vunpack.c.l.b16 %v352
      %v786 = vunpack.c.l.b16 %v353
      %v787 = vunpack.c.l.b16 %v354
      %v788 = vunpack.c.l.b16 %v355
      %v789 = vunpack.c.l.b16 %v356
      %v790 = vpack.c.b16 %v394, %v772
      %v791 = vpack.c.b16 %v396, %v773
      %v792 = vpack.c.b16 %v398, %v774
      %v793 = vpack.c.b16 %v400, %v775
      %v794 = vpack.c.b16 %v402, %v776
      %v795 = vpack.c.b16 %v404, %v777
      %v796 = vpack.c.b16 %v406, %v778
      %v797 = vpack.c.b16 %v408, %v779
      %v798 = vpack.c.b16 %v410, %v780
      %v799 = vpack.c.b16 %v412, %v781
      %v800 = vpack.c.b16 %v414, %v782
      %v801 = vpack.c.b16 %v416, %v783
      %v802 = vpack.c.b16 %v418, %v784
      %v803 = vpack.c.b16 %v420, %v785
      %v804 = vpack.c.b16 %v422, %v786
      %v805 = vpack.c.b16 %v424, %v787
      %v806 = vpack.c.b16 %v426, %v788
      %v807 = vpack.c.b16 %v428, %v789
      %vm808 = vcmask 1046528
      %v809 = vrot.slane %v790, 1
      %v810 = vrot.slane %v501, 1
      %v811 = vsel %vm808, %v809, %v810
      %v812 = vrot.slane %v791, 1
      %v813 = vrot.slane %v502, 1
      %v814 = vsel %vm808, %v812, %v813
      %v815 = vrot.slane %v792, 1
      %v816 = vrot.slane %v503, 1
      %v817 = vsel %vm808, %v815, %v816
      %v818 = vrot.slane %v793, 1
      %v819 = vrot.slane %v504, 1
      %v820 = vsel %vm808, %v818, %v819
      %v821 = vrot.slane %v794, 1
      %v822 = vrot.slane %v505, 1
      %v823 = vsel %vm808, %v821, %v822
      %v824 = vrot.slane %v795, 1
      %v825 = vrot.slane %v506, 1
      %v826 = vsel %vm808, %v824, %v825
      %v827 = vrot.slane %v796, 1
      %v828 = vrot.slane %v507, 1
      %v829 = vsel %vm808, %v827, %v828
      %v830 = vrot.slane %v797, 1
      %v831 = vrot.slane %v508, 1
      %v832 = vsel %vm808, %v830, %v831
      %v833 = vrot.slane %v798, 1
      %v834 = vrot.slane %v509, 1
      %v835 = vsel %vm808, %v833, %v834
      %v836 = vrot.slane %v799, 1
      %v837 = vrot.slane %v510, 1
      %v838 = vsel %vm808, %v836, %v837
      %v839 = vrot.slane %v800, 1
      %v840 = vrot.slane %v511, 1
      %v841 = vsel %vm808, %v839, %v840
      %v842 = vrot.slane %v801, 1
      %v843 = vrot.slane %v512, 1
      %v844 = vsel %vm808, %v842, %v843
      %v845 = vrot.slane %v802, 1
      %v846 = vrot.slane %v513, 1
      %v847 = vsel %vm808, %v845, %v846
      %v848 = vrot.slane %v803, 1
      %v849 = vrot.slane %v514, 1
      %v850 = vsel %vm808, %v848, %v849
      %v851 = vrot.slane %v804, 1
      %v852 = vrot.slane %v515, 1
      %v853 = vsel %vm808, %v851, %v852
      %v854 = vrot.slane %v805, 1
      %v855 = vrot.slane %v516, 1
      %v856 = vsel %vm808, %v854, %v855
      %v857 = vrot.slane %v806, 1
      %v858 = vrot.slane %v517, 1
      %v859 = vsel %vm808, %v857, %v858
      %v860 = vrot.slane %v807, 1
      %v861 = vrot.slane %v518, 1
      %v862 = vsel %vm808, %v860, %v861
      %v881 = vld [vmem:[%s1] sm:$0xf]
      %v882 = vld [vmem:[%s1 + $0x4] sm:$0xf]
      %v883 = vld [vmem:[%s1 + $0x8] sm:$0xf]
      %v884 = vld [vmem:[%s1 + $0xc] sm:$0xf]
      %v885 = vld [vmem:[%s1 + $0x10] sm:$0xf]
      %v886 = vld [vmem:[%s1 + $0x14] sm:$0xf]
      %v887 = vld [vmem:[%s1 + $0x18] sm:$0xf]
      %v888 = vld [vmem:[%s1 + $0x1c] sm:$0xf]
      %v889 = vld [vmem:[%s1 + $0x20] sm:$0xf]
      %v890 = vld [vmem:[%s1 + $0x24] sm:$0xf]
      %v891 = vld [vmem:[%s1 + $0x28] sm:$0xf]
      %v892 = vld [vmem:[%s1 + $0x2c] sm:$0xf]
      %v893 = vld [vmem:[%s1 + $0x30] sm:$0xf]
      %v894 = vld [vmem:[%s1 + $0x34] sm:$0xf]
      %v895 = vld [vmem:[%s1 + $0x38] sm:$0xf]
      %v896 = vld [vmem:[%s1 + $0x3c] sm:$0xf]
      %v897 = vld [vmem:[%s1 + $0x40] sm:$0xf]
      %v898 = vld [vmem:[%s1 + $0x44] sm:$0xf]
      %v899 = vld [vmem:[%s1 + $0x48] sm:$0xf]
      %v900 = vld [vmem:[%s1 + $0x4c] sm:$0xf]
      %v901 = vld [vmem:[%s1 + $0x50] sm:$0xf]
      %v902 = vld [vmem:[%s1 + $0x54] sm:$0xf]
      %v903 = vld [vmem:[%s1 + $0x58] sm:$0xf]
      %v904 = vld [vmem:[%s1 + $0x5c] sm:$0xf]
      %v905 = vld [vmem:[%s1 + $0x60] sm:$0xf]
      %v906 = vld [vmem:[%s1 + $0x64] sm:$0xf]
      %v907 = vld [vmem:[%s1 + $0x68] sm:$0xf]
      %v908 = vld [vmem:[%s1 + $0x6c] sm:$0xf]
      %v909 = vld [vmem:[%s1 + $0x70] sm:$0xf]
      %v910 = vld [vmem:[%s1 + $0x74] sm:$0xf]
      %v911 = vld [vmem:[%s1 + $0x78] sm:$0xf]
      %v912 = vld [vmem:[%s1 + $0x7c] sm:$0xf]
      %v913 = vld [vmem:[%s1 + $0x80] sm:$0xf]
      %v914 = vld [vmem:[%s1 + $0x84] sm:$0xf]
      %v915 = vld [vmem:[%s1 + $0x88] sm:$0xf]
      %v916 = vld [vmem:[%s1 + $0x8c] sm:$0xf]
      %v917 = vld [vmem:[%s1 + $0x90] sm:$0xf]
      %v918 = vld [vmem:[%s1 + $0x94] sm:$0xf]
      %v919 = vld [vmem:[%s1 + $0x98] sm:$0xf]
      %v920 = vld [vmem:[%s1 + $0x9c] sm:$0xf]
      %v921 = vld [vmem:[%s1 + $0xa0] sm:$0xf]
      %v922 = vld [vmem:[%s1 + $0xa4] sm:$0xf]
      %v923 = vld [vmem:[%s1 + $0xa8] sm:$0xf]
      %v924 = vld [vmem:[%s1 + $0xac] sm:$0xf]
      %v925 = vld [vmem:[%s1 + $0xb0] sm:$0xf]
      %v926 = vld [vmem:[%s1 + $0xb4] sm:$0xf]
      %v927 = vld [vmem:[%s1 + $0xb8] sm:$0xf]
      %v928 = vld [vmem:[%s1 + $0xbc] sm:$0xf]
      %v977 = vunpack.c.l.b16 %v881
      %v978 = vunpack.c.l.b16 %v882
      %v979 = vunpack.c.l.b16 %v883
      %v980 = vunpack.c.l.b16 %v884
      %v981 = vunpack.c.l.b16 %v885
      %v982 = vunpack.c.l.b16 %v886
      %v983 = vunpack.c.l.b16 %v887
      %v984 = vunpack.c.l.b16 %v888
      %v985 = vunpack.c.l.b16 %v889
      %v986 = vunpack.c.l.b16 %v890
      %v987 = vunpack.c.l.b16 %v891
      %v988 = vunpack.c.l.b16 %v892
      %v989 = vunpack.c.l.b16 %v893
      %v990 = vunpack.c.l.b16 %v894
      %v991 = vunpack.c.l.b16 %v895
      %v992 = vunpack.c.l.b16 %v896
      %v993 = vunpack.c.l.b16 %v897
      %v994 = vunpack.c.l.b16 %v898
      %v995 = vunpack.c.l.b16 %v899
      %v996 = vunpack.c.l.b16 %v900
      %v997 = vunpack.c.l.b16 %v901
      %v998 = vunpack.c.l.b16 %v902
      %v999 = vunpack.c.l.b16 %v903
      %v1000 = vunpack.c.l.b16 %v904
      %v1001 = vunpack.c.l.b16 %v905
      %v1002 = vunpack.c.l.b16 %v906
      %v1003 = vunpack.c.l.b16 %v907
      %v1004 = vunpack.c.l.b16 %v908
      %v1005 = vunpack.c.l.b16 %v909
      %v1006 = vunpack.c.l.b16 %v910
      %v1007 = vunpack.c.l.b16 %v911
      %v1008 = vunpack.c.l.b16 %v912
      %v1009 = vunpack.c.l.b16 %v913
      %v1010 = vunpack.c.l.b16 %v914
      %v1011 = vunpack.c.l.b16 %v915
      %v1012 = vunpack.c.l.b16 %v916
      %v1013 = vunpack.c.l.b16 %v917
      %v1014 = vunpack.c.l.b16 %v918
      %v1015 = vunpack.c.l.b16 %v919
      %v1016 = vunpack.c.l.b16 %v920
      %v1017 = vunpack.c.l.b16 %v921
      %v1018 = vunpack.c.l.b16 %v922
      %v1019 = vunpack.c.l.b16 %v923
      %v1020 = vunpack.c.l.b16 %v924
      %v1021 = vunpack.c.l.b16 %v925
      %v1022 = vunpack.c.l.b16 %v926
      %v1023 = vunpack.c.l.b16 %v927
      %v1024 = vunpack.c.l.b16 %v928
      %v1025 = vpack.c.b16 %v978, %v977
      %v1026 = vpack.c.b16 %v980, %v979
      %v1027 = vpack.c.b16 %v982, %v981
      %v1028 = vpack.c.b16 %v984, %v983
      %v1029 = vpack.c.b16 %v986, %v985
      %v1030 = vpack.c.b16 %v988, %v987
      %v1031 = vpack.c.b16 %v990, %v989
      %v1032 = vpack.c.b16 %v992, %v991
      %v1033 = vpack.c.b16 %v994, %v993
      %v1034 = vpack.c.b16 %v996, %v995
      %v1035 = vpack.c.b16 %v998, %v997
      %v1036 = vpack.c.b16 %v1000, %v999
      %v1037 = vpack.c.b16 %v1002, %v1001
      %v1038 = vpack.c.b16 %v1004, %v1003
      %v1039 = vpack.c.b16 %v1006, %v1005
      %v1040 = vpack.c.b16 %v1008, %v1007
      %v1041 = vpack.c.b16 %v1010, %v1009
      %v1042 = vpack.c.b16 %v1012, %v1011
      %v1043 = vpack.c.b16 %v1014, %v1013
      %v1044 = vpack.c.b16 %v1016, %v1015
      %v1045 = vpack.c.b16 %v1018, %v1017
      %v1046 = vpack.c.b16 %v1020, %v1019
      %v1047 = vpack.c.b16 %v1022, %v1021
      %v1048 = vpack.c.b16 %v1024, %v1023
      %1073 = vmatpush.bf16.msra.mxu0 %v1032
      %1074 = vmatpush.bf16.msra.mxu0 %v1031
      %1075 = vmatpush.bf16.msra.mxu0 %v1030
      %1076 = vmatpush.bf16.msra.mxu0 %v1029
      %1077 = vmatpush.bf16.msra.mxu0 %v1028
      %1078 = vmatpush.bf16.msra.mxu0 %v1027
      %1079 = vmatpush.bf16.msra.mxu0 %v1026
      %1080 = vmatpush.bf16.msra.mxu0 %v1025
      %1081 = vmatmul.bf16.gmra.mxu0 %v429
      %v1082 = vpop.f32.mrf.mxu0
      %v1083 = vadd.f32 0.0, %v1082
      %v1084 = vpop.f32.mrf.mxu0
      %v1085 = vadd.f32 0.0, %v1084
      %1086 = vmatmul.bf16.gmra.mxu0 %v430
      %v1087 = vpop.f32.mrf.mxu0
      %v1088 = vadd.f32 0.0, %v1087
      %v1089 = vpop.f32.mrf.mxu0
      %v1090 = vadd.f32 0.0, %v1089
      %1091 = vmatmul.bf16.gmra.mxu0 %v431
      %v1092 = vpop.f32.mrf.mxu0
      %v1093 = vadd.f32 0.0, %v1092
      %v1094 = vpop.f32.mrf.mxu0
      %v1095 = vadd.f32 0.0, %v1094
      %1096 = vmatmul.bf16.gmra.mxu0 %v432
      %v1097 = vpop.f32.mrf.mxu0
      %v1098 = vadd.f32 0.0, %v1097
      %v1099 = vpop.f32.mrf.mxu0
      %v1100 = vadd.f32 0.0, %v1099
      %1101 = vmatmul.bf16.gmra.mxu0 %v433
      %v1102 = vpop.f32.mrf.mxu0
      %v1103 = vadd.f32 0.0, %v1102
      %v1104 = vpop.f32.mrf.mxu0
      %v1105 = vadd.f32 0.0, %v1104
      %1106 = vmatmul.bf16.gmra.mxu0 %v434
      %v1107 = vpop.f32.mrf.mxu0
      %v1108 = vadd.f32 0.0, %v1107
      %v1109 = vpop.f32.mrf.mxu0
      %v1110 = vadd.f32 0.0, %v1109
      %1111 = vmatmul.bf16.gmra.mxu0 %v435
      %v1112 = vpop.f32.mrf.mxu0
      %v1113 = vadd.f32 0.0, %v1112
      %v1114 = vpop.f32.mrf.mxu0
      %v1115 = vadd.f32 0.0, %v1114
      %1116 = vmatmul.bf16.gmra.mxu0 %v436
      %v1117 = vpop.f32.mrf.mxu0
      %v1118 = vadd.f32 0.0, %v1117
      %v1119 = vpop.f32.mrf.mxu0
      %v1120 = vadd.f32 0.0, %v1119
      %1121 = vmatmul.bf16.gmra.mxu0 %v437
      %v1122 = vpop.f32.mrf.mxu0
      %v1123 = vadd.f32 0.0, %v1122
      %v1124 = vpop.f32.mrf.mxu0
      %v1125 = vadd.f32 0.0, %v1124
      %1126 = vmatmul.bf16.gmra.mxu0 %v438
      %v1127 = vpop.f32.mrf.mxu0
      %v1128 = vadd.f32 0.0, %v1127
      %v1129 = vpop.f32.mrf.mxu0
      %v1130 = vadd.f32 0.0, %v1129
      %1131 = vmatmul.bf16.gmra.mxu0 %v439
      %v1132 = vpop.f32.mrf.mxu0
      %v1133 = vadd.f32 0.0, %v1132
      %v1134 = vpop.f32.mrf.mxu0
      %v1135 = vadd.f32 0.0, %v1134
      %1136 = vmatmul.bf16.gmra.mxu0 %v440
      %v1137 = vpop.f32.mrf.mxu0
      %v1138 = vadd.f32 0.0, %v1137
      %v1139 = vpop.f32.mrf.mxu0
      %v1140 = vadd.f32 0.0, %v1139
      %1141 = vmatmul.bf16.gmra.mxu0 %v441
      %v1142 = vpop.f32.mrf.mxu0
      %v1143 = vadd.f32 0.0, %v1142
      %v1144 = vpop.f32.mrf.mxu0
      %v1145 = vadd.f32 0.0, %v1144
      %1146 = vmatmul.bf16.gmra.mxu0 %v442
      %v1147 = vpop.f32.mrf.mxu0
      %v1148 = vadd.f32 0.0, %v1147
      %v1149 = vpop.f32.mrf.mxu0
      %v1150 = vadd.f32 0.0, %v1149
      %1151 = vmatmul.bf16.gmra.mxu0 %v443
      %v1152 = vpop.f32.mrf.mxu0
      %v1153 = vadd.f32 0.0, %v1152
      %v1154 = vpop.f32.mrf.mxu0
      %v1155 = vadd.f32 0.0, %v1154
      %1156 = vmatmul.bf16.gmra.mxu0 %v444
      %v1157 = vpop.f32.mrf.mxu0
      %v1158 = vadd.f32 0.0, %v1157
      %v1159 = vpop.f32.mrf.mxu0
      %v1160 = vadd.f32 0.0, %v1159
      %1161 = vdwg.mxu0
      %1162 = vmatpush.bf16.msra.mxu0 %v1040
      %1163 = vmatpush.bf16.msra.mxu0 %v1039
      %1164 = vmatpush.bf16.msra.mxu0 %v1038
      %1165 = vmatpush.bf16.msra.mxu0 %v1037
      %1166 = vmatpush.bf16.msra.mxu0 %v1036
      %1167 = vmatpush.bf16.msra.mxu0 %v1035
      %1168 = vmatpush.bf16.msra.mxu0 %v1034
      %1169 = vmatpush.bf16.msra.mxu0 %v1033
      %1170 = vmatmul.bf16.gmra.mxu0 %v531
      %v1171 = vpop.f32.mrf.mxu0
      %v1172 = vadd.f32 %v1083, %v1171
      %v1173 = vpop.f32.mrf.mxu0
      %v1174 = vadd.f32 %v1085, %v1173
      %1175 = vmatmul.bf16.gmra.mxu0 %v543
      %v1176 = vpop.f32.mrf.mxu0
      %v1177 = vadd.f32 %v1088, %v1176
      %v1178 = vpop.f32.mrf.mxu0
      %v1179 = vadd.f32 %v1090, %v1178
      %1180 = vmatmul.bf16.gmra.mxu0 %v555
      %v1181 = vpop.f32.mrf.mxu0
      %v1182 = vadd.f32 %v1093, %v1181
      %v1183 = vpop.f32.mrf.mxu0
      %v1184 = vadd.f32 %v1095, %v1183
      %1185 = vmatmul.bf16.gmra.mxu0 %v567
      %v1186 = vpop.f32.mrf.mxu0
      %v1187 = vadd.f32 %v1098, %v1186
      %v1188 = vpop.f32.mrf.mxu0
      %v1189 = vadd.f32 %v1100, %v1188
      %1190 = vmatmul.bf16.gmra.mxu0 %v579
      %v1191 = vpop.f32.mrf.mxu0
      %v1192 = vadd.f32 %v1103, %v1191
      %v1193 = vpop.f32.mrf.mxu0
      %v1194 = vadd.f32 %v1105, %v1193
      %1195 = vmatmul.bf16.gmra.mxu0 %v591
      %v1196 = vpop.f32.mrf.mxu0
      %v1197 = vadd.f32 %v1108, %v1196
      %v1198 = vpop.f32.mrf.mxu0
      %v1199 = vadd.f32 %v1110, %v1198
      %1200 = vmatmul.bf16.gmra.mxu0 %v603
      %v1201 = vpop.f32.mrf.mxu0
      %v1202 = vadd.f32 %v1113, %v1201
      %v1203 = vpop.f32.mrf.mxu0
      %v1204 = vadd.f32 %v1115, %v1203
      %1205 = vmatmul.bf16.gmra.mxu0 %v615
      %v1206 = vpop.f32.mrf.mxu0
      %v1207 = vadd.f32 %v1118, %v1206
      %v1208 = vpop.f32.mrf.mxu0
      %v1209 = vadd.f32 %v1120, %v1208
      %1210 = vmatmul.bf16.gmra.mxu0 %v627
      %v1211 = vpop.f32.mrf.mxu0
      %v1212 = vadd.f32 %v1123, %v1211
      %v1213 = vpop.f32.mrf.mxu0
      %v1214 = vadd.f32 %v1125, %v1213
      %1215 = vmatmul.bf16.gmra.mxu0 %v639
      %v1216 = vpop.f32.mrf.mxu0
      %v1217 = vadd.f32 %v1128, %v1216
      %v1218 = vpop.f32.mrf.mxu0
      %v1219 = vadd.f32 %v1130, %v1218
      %1220 = vmatmul.bf16.gmra.mxu0 %v651
      %v1221 = vpop.f32.mrf.mxu0
      %v1222 = vadd.f32 %v1133, %v1221
      %v1223 = vpop.f32.mrf.mxu0
      %v1224 = vadd.f32 %v1135, %v1223
      %1225 = vmatmul.bf16.gmra.mxu0 %v663
      %v1226 = vpop.f32.mrf.mxu0
      %v1227 = vadd.f32 %v1138, %v1226
      %v1228 = vpop.f32.mrf.mxu0
      %v1229 = vadd.f32 %v1140, %v1228
      %1230 = vmatmul.bf16.gmra.mxu0 %v675
      %v1231 = vpop.f32.mrf.mxu0
      %v1232 = vadd.f32 %v1143, %v1231
      %v1233 = vpop.f32.mrf.mxu0
      %v1234 = vadd.f32 %v1145, %v1233
      %1235 = vmatmul.bf16.gmra.mxu0 %v687
      %v1236 = vpop.f32.mrf.mxu0
      %v1237 = vadd.f32 %v1148, %v1236
      %v1238 = vpop.f32.mrf.mxu0
      %v1239 = vadd.f32 %v1150, %v1238
      %1240 = vmatmul.bf16.gmra.mxu0 %v699
      %v1241 = vpop.f32.mrf.mxu0
      %v1242 = vadd.f32 %v1153, %v1241
      %v1243 = vpop.f32.mrf.mxu0
      %v1244 = vadd.f32 %v1155, %v1243
      %1245 = vmatmul.bf16.gmra.mxu0 %v711
      %v1246 = vpop.f32.mrf.mxu0
      %v1247 = vadd.f32 %v1158, %v1246
      %v1248 = vpop.f32.mrf.mxu0
      %v1249 = vadd.f32 %v1160, %v1248
      %1250 = vdwg.mxu0
      %1251 = vmatpush.bf16.msra.mxu0 %v1048
      %1252 = vmatpush.bf16.msra.mxu0 %v1047
      %1253 = vmatpush.bf16.msra.mxu0 %v1046
      %1254 = vmatpush.bf16.msra.mxu0 %v1045
      %1255 = vmatpush.bf16.msra.mxu0 %v1044
      %1256 = vmatpush.bf16.msra.mxu0 %v1043
      %1257 = vmatpush.bf16.msra.mxu0 %v1042
      %1258 = vmatpush.bf16.msra.mxu0 %v1041
      %1259 = vmatmul.bf16.gmra.mxu0 %v811
      %v1260 = vpop.f32.mrf.mxu0
      %v1261 = vadd.f32 %v1172, %v1260
      %v1262 = vpop.f32.mrf.mxu0
      %v1263 = vadd.f32 %v1174, %v1262
      %1264 = vmatmul.bf16.gmra.mxu0 %v814
      %v1265 = vpop.f32.mrf.mxu0
      %v1266 = vadd.f32 %v1177, %v1265
      %v1267 = vpop.f32.mrf.mxu0
      %v1268 = vadd.f32 %v1179, %v1267
      %1269 = vmatmul.bf16.gmra.mxu0 %v817
      %v1270 = vpop.f32.mrf.mxu0
      %v1271 = vadd.f32 %v1182, %v1270
      %v1272 = vpop.f32.mrf.mxu0
      %v1273 = vadd.f32 %v1184, %v1272
      %1274 = vmatmul.bf16.gmra.mxu0 %v820
      %v1275 = vpop.f32.mrf.mxu0
      %v1276 = vadd.f32 %v1187, %v1275
      %v1277 = vpop.f32.mrf.mxu0
      %v1278 = vadd.f32 %v1189, %v1277
      %1279 = vmatmul.bf16.gmra.mxu0 %v823
      %v1280 = vpop.f32.mrf.mxu0
      %v1281 = vadd.f32 %v1192, %v1280
      %v1282 = vpop.f32.mrf.mxu0
      %v1283 = vadd.f32 %v1194, %v1282
      %1284 = vmatmul.bf16.gmra.mxu0 %v826
      %v1285 = vpop.f32.mrf.mxu0
      %v1286 = vadd.f32 %v1197, %v1285
      %v1287 = vpop.f32.mrf.mxu0
      %v1288 = vadd.f32 %v1199, %v1287
      %1289 = vmatmul.bf16.gmra.mxu0 %v829
      %v1290 = vpop.f32.mrf.mxu0
      %v1291 = vadd.f32 %v1202, %v1290
      %v1292 = vpop.f32.mrf.mxu0
      %v1293 = vadd.f32 %v1204, %v1292
      %1294 = vmatmul.bf16.gmra.mxu0 %v832
      %v1295 = vpop.f32.mrf.mxu0
      %v1296 = vadd.f32 %v1207, %v1295
      %v1297 = vpop.f32.mrf.mxu0
      %v1298 = vadd.f32 %v1209, %v1297
      %1299 = vmatmul.bf16.gmra.mxu0 %v835
      %v1300 = vpop.f32.mrf.mxu0
      %v1301 = vadd.f32 %v1212, %v1300
      %v1302 = vpop.f32.mrf.mxu0
      %v1303 = vadd.f32 %v1214, %v1302
      %1304 = vmatmul.bf16.gmra.mxu0 %v838
      %v1305 = vpop.f32.mrf.mxu0
      %v1306 = vadd.f32 %v1217, %v1305
      %v1307 = vpop.f32.mrf.mxu0
      %v1308 = vadd.f32 %v1219, %v1307
      %1309 = vmatmul.bf16.gmra.mxu0 %v841
      %v1310 = vpop.f32.mrf.mxu0
      %v1311 = vadd.f32 %v1222, %v1310
      %v1312 = vpop.f32.mrf.mxu0
      %v1313 = vadd.f32 %v1224, %v1312
      %1314 = vmatmul.bf16.gmra.mxu0 %v844
      %v1315 = vpop.f32.mrf.mxu0
      %v1316 = vadd.f32 %v1227, %v1315
      %v1317 = vpop.f32.mrf.mxu0
      %v1318 = vadd.f32 %v1229, %v1317
      %1319 = vmatmul.bf16.gmra.mxu0 %v847
      %v1320 = vpop.f32.mrf.mxu0
      %v1321 = vadd.f32 %v1232, %v1320
      %v1322 = vpop.f32.mrf.mxu0
      %v1323 = vadd.f32 %v1234, %v1322
      %1324 = vmatmul.bf16.gmra.mxu0 %v850
      %v1325 = vpop.f32.mrf.mxu0
      %v1326 = vadd.f32 %v1237, %v1325
      %v1327 = vpop.f32.mrf.mxu0
      %v1328 = vadd.f32 %v1239, %v1327
      %1329 = vmatmul.bf16.gmra.mxu0 %v853
      %v1330 = vpop.f32.mrf.mxu0
      %v1331 = vadd.f32 %v1242, %v1330
      %v1332 = vpop.f32.mrf.mxu0
      %v1333 = vadd.f32 %v1244, %v1332
      %1334 = vmatmul.bf16.gmra.mxu0 %v856
      %v1335 = vpop.f32.mrf.mxu0
      %v1336 = vadd.f32 %v1247, %v1335
      %v1337 = vpop.f32.mrf.mxu0
      %v1338 = vadd.f32 %v1249, %v1337
      %1339 = vdwg.mxu0
      %1340 = vst [vmem:[#allocation2] sm:$0xff] %v1261
      %1341 = vst [vmem:[#allocation2 + $0x8] sm:$0xff] %v1263
      %1342 = vst [vmem:[#allocation2 + $0x10] sm:$0xff] %v1266
      %1343 = vst [vmem:[#allocation2 + $0x18] sm:$0xff] %v1268
      %1344 = vst [vmem:[#allocation2 + $0x20] sm:$0xff] %v1271
      %1345 = vst [vmem:[#allocation2 + $0x28] sm:$0xff] %v1273
      %1346 = vst [vmem:[#allocation2 + $0x30] sm:$0xff] %v1276
      %1347 = vst [vmem:[#allocation2 + $0x38] sm:$0xff] %v1278
      %1348 = vst [vmem:[#allocation2 + $0x40] sm:$0xff] %v1281
      %1349 = vst [vmem:[#allocation2 + $0x48] sm:$0xff] %v1283
      %1350 = vst [vmem:[#allocation2 + $0x50] sm:$0xff] %v1286
      %1351 = vst [vmem:[#allocation2 + $0x58] sm:$0xff] %v1288
      %1352 = vst [vmem:[#allocation2 + $0x60] sm:$0xff] %v1291
      %1353 = vst [vmem:[#allocation2 + $0x68] sm:$0xff] %v1293
      %1354 = vst [vmem:[#allocation2 + $0x70] sm:$0xff] %v1296
      %1355 = vst [vmem:[#allocation2 + $0x78] sm:$0xff] %v1298
      %1356 = vst [vmem:[#allocation2 + $0x80] sm:$0xff] %v1301
      %1357 = vst [vmem:[#allocation2 + $0x88] sm:$0xff] %v1303
      %1358 = vst [vmem:[#allocation2 + $0x90] sm:$0xff] %v1306
      %1359 = vst [vmem:[#allocation2 + $0x98] sm:$0xff] %v1308
      %1360 = vst [vmem:[#allocation2 + $0xa0] sm:$0xff] %v1311
      %1361 = vst [vmem:[#allocation2 + $0xa8] sm:$0xff] %v1313
      %1362 = vst [vmem:[#allocation2 + $0xb0] sm:$0xff] %v1316
      %1363 = vst [vmem:[#allocation2 + $0xb8] sm:$0xff] %v1318
      %1364 = vst [vmem:[#allocation2 + $0xc0] sm:$0xff] %v1321
      %1365 = vst [vmem:[#allocation2 + $0xc8] sm:$0xff] %v1323
      %1366 = vst [vmem:[#allocation2 + $0xd0] sm:$0xff] %v1326
      %1367 = vst [vmem:[#allocation2 + $0xd8] sm:$0xff] %v1328
      %1368 = vst [vmem:[#allocation2 + $0xe0] sm:$0xff] %v1331
      %1369 = vst [vmem:[#allocation2 + $0xe8] sm:$0xff] %v1333
      %1370 = vst [vmem:[#allocation2 + $0xf0] sm:$0xff] %v1336
      %1371 = vst [vmem:[#allocation2 + $0xf8] sm:$0xff] %v1338
      %v1372 = vld [vmem:[#allocation2] sm:$0xff]
      %v1373 = vld [vmem:[#allocation2 + $0x8] sm:$0xff]
      %v1374 = vld [vmem:[#allocation2 + $0x10] sm:$0xff]
      %v1375 = vld [vmem:[#allocation2 + $0x18] sm:$0xff]
      %v1376 = vld [vmem:[#allocation2 + $0x20] sm:$0xff]
      %v1377 = vld [vmem:[#allocation2 + $0x28] sm:$0xff]
      %v1378 = vld [vmem:[#allocation2 + $0x30] sm:$0xff]
      %v1379 = vld [vmem:[#allocation2 + $0x38] sm:$0xff]
      %v1380 = vld [vmem:[#allocation2 + $0x40] sm:$0xff]
      %v1381 = vld [vmem:[#allocation2 + $0x48] sm:$0xff]
      %v1382 = vld [vmem:[#allocation2 + $0x50] sm:$0xff]
      %v1383 = vld [vmem:[#allocation2 + $0x58] sm:$0xff]
      %v1384 = vld [vmem:[#allocation2 + $0x60] sm:$0xff]
      %v1385 = vld [vmem:[#allocation2 + $0x68] sm:$0xff]
      %v1386 = vld [vmem:[#allocation2 + $0x70] sm:$0xff]
      %v1387 = vld [vmem:[#allocation2 + $0x78] sm:$0xff]
      %v1388 = vld [vmem:[#allocation2 + $0x80] sm:$0xff]
      %v1389 = vld [vmem:[#allocation2 + $0x88] sm:$0xff]
      %v1390 = vld [vmem:[#allocation2 + $0x90] sm:$0xff]
      %v1391 = vld [vmem:[#allocation2 + $0x98] sm:$0xff]
      %v1392 = vld [vmem:[#allocation2 + $0xa0] sm:$0xff]
      %v1393 = vld [vmem:[#allocation2 + $0xa8] sm:$0xff]
      %v1394 = vld [vmem:[#allocation2 + $0xb0] sm:$0xff]
      %v1395 = vld [vmem:[#allocation2 + $0xb8] sm:$0xff]
      %v1396 = vld [vmem:[#allocation2 + $0xc0] sm:$0xff]
      %v1397 = vld [vmem:[#allocation2 + $0xc8] sm:$0xff]
      %v1398 = vld [vmem:[#allocation2 + $0xd0] sm:$0xff]
      %v1399 = vld [vmem:[#allocation2 + $0xd8] sm:$0xff]
      %v1400 = vld [vmem:[#allocation2 + $0xe0] sm:$0xff]
      %v1401 = vld [vmem:[#allocation2 + $0xe8] sm:$0xff]
      %v1402 = vld [vmem:[#allocation2 + $0xf0] sm:$0xff]
      %v1403 = vld [vmem:[#allocation2 + $0xf8] sm:$0xff]
      %s1404 = scalar_lea.vmem %s1, 192
      %v1405 = vld [vmem:[%s1404] sm:$0xf]
      %v1406 = vld [vmem:[%s1404 + $0x4] sm:$0xf]
      %v1407 = vld [vmem:[%s1404 + $0x8] sm:$0xf]
      %v1408 = vld [vmem:[%s1404 + $0xc] sm:$0xf]
      %v1409 = vld [vmem:[%s1404 + $0x10] sm:$0xf]
      %v1410 = vld [vmem:[%s1404 + $0x14] sm:$0xf]
      %v1411 = vld [vmem:[%s1404 + $0x18] sm:$0xf]
      %v1412 = vld [vmem:[%s1404 + $0x1c] sm:$0xf]
      %v1413 = vld [vmem:[%s1404 + $0x20] sm:$0xf]
      %v1414 = vld [vmem:[%s1404 + $0x24] sm:$0xf]
      %v1415 = vld [vmem:[%s1404 + $0x28] sm:$0xf]
      %v1416 = vld [vmem:[%s1404 + $0x2c] sm:$0xf]
      %v1417 = vld [vmem:[%s1404 + $0x30] sm:$0xf]
      %v1418 = vld [vmem:[%s1404 + $0x34] sm:$0xf]
      %v1419 = vld [vmem:[%s1404 + $0x38] sm:$0xf]
      %v1420 = vld [vmem:[%s1404 + $0x3c] sm:$0xf]
      %v1421 = vld [vmem:[%s1404 + $0x40] sm:$0xf]
      %v1422 = vld [vmem:[%s1404 + $0x44] sm:$0xf]
      %v1423 = vld [vmem:[%s1404 + $0x48] sm:$0xf]
      %v1424 = vld [vmem:[%s1404 + $0x4c] sm:$0xf]
      %v1425 = vld [vmem:[%s1404 + $0x50] sm:$0xf]
      %v1426 = vld [vmem:[%s1404 + $0x54] sm:$0xf]
      %v1427 = vld [vmem:[%s1404 + $0x58] sm:$0xf]
      %v1428 = vld [vmem:[%s1404 + $0x5c] sm:$0xf]
      %v1429 = vld [vmem:[%s1404 + $0x60] sm:$0xf]
      %v1430 = vld [vmem:[%s1404 + $0x64] sm:$0xf]
      %v1431 = vld [vmem:[%s1404 + $0x68] sm:$0xf]
      %v1432 = vld [vmem:[%s1404 + $0x6c] sm:$0xf]
      %v1433 = vld [vmem:[%s1404 + $0x70] sm:$0xf]
      %v1434 = vld [vmem:[%s1404 + $0x74] sm:$0xf]
      %v1435 = vld [vmem:[%s1404 + $0x78] sm:$0xf]
      %v1436 = vld [vmem:[%s1404 + $0x7c] sm:$0xf]
      %v1437 = vld [vmem:[%s1404 + $0x80] sm:$0xf]
      %v1438 = vld [vmem:[%s1404 + $0x84] sm:$0xf]
      %v1439 = vld [vmem:[%s1404 + $0x88] sm:$0xf]
      %v1440 = vld [vmem:[%s1404 + $0x8c] sm:$0xf]
      %v1441 = vld [vmem:[%s1404 + $0x90] sm:$0xf]
      %v1442 = vld [vmem:[%s1404 + $0x94] sm:$0xf]
      %v1443 = vld [vmem:[%s1404 + $0x98] sm:$0xf]
      %v1444 = vld [vmem:[%s1404 + $0x9c] sm:$0xf]
      %v1445 = vld [vmem:[%s1404 + $0xa0] sm:$0xf]
      %v1446 = vld [vmem:[%s1404 + $0xa4] sm:$0xf]
      %v1447 = vld [vmem:[%s1404 + $0xa8] sm:$0xf]
      %v1448 = vld [vmem:[%s1404 + $0xac] sm:$0xf]
      %v1449 = vld [vmem:[%s1404 + $0xb0] sm:$0xf]
      %v1450 = vld [vmem:[%s1404 + $0xb4] sm:$0xf]
      %v1451 = vld [vmem:[%s1404 + $0xb8] sm:$0xf]
      %v1452 = vld [vmem:[%s1404 + $0xbc] sm:$0xf]
      %v1501 = vunpack.c.l.b16 %v1405
      %v1502 = vunpack.c.l.b16 %v1406
      %v1503 = vunpack.c.l.b16 %v1407
      %v1504 = vunpack.c.l.b16 %v1408
      %v1505 = vunpack.c.l.b16 %v1409
      %v1506 = vunpack.c.l.b16 %v1410
      %v1507 = vunpack.c.l.b16 %v1411
      %v1508 = vunpack.c.l.b16 %v1412
      %v1509 = vunpack.c.l.b16 %v1413
      %v1510 = vunpack.c.l.b16 %v1414
      %v1511 = vunpack.c.l.b16 %v1415
      %v1512 = vunpack.c.l.b16 %v1416
      %v1513 = vunpack.c.l.b16 %v1417
      %v1514 = vunpack.c.l.b16 %v1418
      %v1515 = vunpack.c.l.b16 %v1419
      %v1516 = vunpack.c.l.b16 %v1420
      %v1517 = vunpack.c.l.b16 %v1421
      %v1518 = vunpack.c.l.b16 %v1422
      %v1519 = vunpack.c.l.b16 %v1423
      %v1520 = vunpack.c.l.b16 %v1424
      %v1521 = vunpack.c.l.b16 %v1425
      %v1522 = vunpack.c.l.b16 %v1426
      %v1523 = vunpack.c.l.b16 %v1427
      %v1524 = vunpack.c.l.b16 %v1428
      %v1525 = vunpack.c.l.b16 %v1429
      %v1526 = vunpack.c.l.b16 %v1430
      %v1527 = vunpack.c.l.b16 %v1431
      %v1528 = vunpack.c.l.b16 %v1432
      %v1529 = vunpack.c.l.b16 %v1433
      %v1530 = vunpack.c.l.b16 %v1434
      %v1531 = vunpack.c.l.b16 %v1435
      %v1532 = vunpack.c.l.b16 %v1436
      %v1533 = vunpack.c.l.b16 %v1437
      %v1534 = vunpack.c.l.b16 %v1438
      %v1535 = vunpack.c.l.b16 %v1439
      %v1536 = vunpack.c.l.b16 %v1440
      %v1537 = vunpack.c.l.b16 %v1441
      %v1538 = vunpack.c.l.b16 %v1442
      %v1539 = vunpack.c.l.b16 %v1443
      %v1540 = vunpack.c.l.b16 %v1444
      %v1541 = vunpack.c.l.b16 %v1445
      %v1542 = vunpack.c.l.b16 %v1446
      %v1543 = vunpack.c.l.b16 %v1447
      %v1544 = vunpack.c.l.b16 %v1448
      %v1545 = vunpack.c.l.b16 %v1449
      %v1546 = vunpack.c.l.b16 %v1450
      %v1547 = vunpack.c.l.b16 %v1451
      %v1548 = vunpack.c.l.b16 %v1452
      %v1549 = vpack.c.b16 %v1502, %v1501
      %v1550 = vpack.c.b16 %v1504, %v1503
      %v1551 = vpack.c.b16 %v1506, %v1505
      %v1552 = vpack.c.b16 %v1508, %v1507
      %v1553 = vpack.c.b16 %v1510, %v1509
      %v1554 = vpack.c.b16 %v1512, %v1511
      %v1555 = vpack.c.b16 %v1514, %v1513
      %v1556 = vpack.c.b16 %v1516, %v1515
      %v1557 = vpack.c.b16 %v1518, %v1517
      %v1558 = vpack.c.b16 %v1520, %v1519
      %v1559 = vpack.c.b16 %v1522, %v1521
      %v1560 = vpack.c.b16 %v1524, %v1523
      %v1561 = vpack.c.b16 %v1526, %v1525
      %v1562 = vpack.c.b16 %v1528, %v1527
      %v1563 = vpack.c.b16 %v1530, %v1529
      %v1564 = vpack.c.b16 %v1532, %v1531
      %v1565 = vpack.c.b16 %v1534, %v1533
      %v1566 = vpack.c.b16 %v1536, %v1535
      %v1567 = vpack.c.b16 %v1538, %v1537
      %v1568 = vpack.c.b16 %v1540, %v1539
      %v1569 = vpack.c.b16 %v1542, %v1541
      %v1570 = vpack.c.b16 %v1544, %v1543
      %v1571 = vpack.c.b16 %v1546, %v1545
      %v1572 = vpack.c.b16 %v1548, %v1547
      %1597 = vmatpush.bf16.msra.mxu0 %v1556
      %1598 = vmatpush.bf16.msra.mxu0 %v1555
      %1599 = vmatpush.bf16.msra.mxu0 %v1554
      %1600 = vmatpush.bf16.msra.mxu0 %v1553
      %1601 = vmatpush.bf16.msra.mxu0 %v1552
      %1602 = vmatpush.bf16.msra.mxu0 %v1551
      %1603 = vmatpush.bf16.msra.mxu0 %v1550
      %1604 = vmatpush.bf16.msra.mxu0 %v1549
      %1605 = vmatmul.bf16.gmra.mxu0 %v430
      %v1606 = vpop.f32.mrf.mxu0
      %v1607 = vadd.f32 0.0, %v1606
      %v1608 = vpop.f32.mrf.mxu0
      %v1609 = vadd.f32 0.0, %v1608
      %1610 = vmatmul.bf16.gmra.mxu0 %v431
      %v1611 = vpop.f32.mrf.mxu0
      %v1612 = vadd.f32 0.0, %v1611
      %v1613 = vpop.f32.mrf.mxu0
      %v1614 = vadd.f32 0.0, %v1613
      %1615 = vmatmul.bf16.gmra.mxu0 %v432
      %v1616 = vpop.f32.mrf.mxu0
      %v1617 = vadd.f32 0.0, %v1616
      %v1618 = vpop.f32.mrf.mxu0
      %v1619 = vadd.f32 0.0, %v1618
      %1620 = vmatmul.bf16.gmra.mxu0 %v433
      %v1621 = vpop.f32.mrf.mxu0
      %v1622 = vadd.f32 0.0, %v1621
      %v1623 = vpop.f32.mrf.mxu0
      %v1624 = vadd.f32 0.0, %v1623
      %1625 = vmatmul.bf16.gmra.mxu0 %v434
      %v1626 = vpop.f32.mrf.mxu0
      %v1627 = vadd.f32 0.0, %v1626
      %v1628 = vpop.f32.mrf.mxu0
      %v1629 = vadd.f32 0.0, %v1628
      %1630 = vmatmul.bf16.gmra.mxu0 %v435
      %v1631 = vpop.f32.mrf.mxu0
      %v1632 = vadd.f32 0.0, %v1631
      %v1633 = vpop.f32.mrf.mxu0
      %v1634 = vadd.f32 0.0, %v1633
      %1635 = vmatmul.bf16.gmra.mxu0 %v436
      %v1636 = vpop.f32.mrf.mxu0
      %v1637 = vadd.f32 0.0, %v1636
      %v1638 = vpop.f32.mrf.mxu0
      %v1639 = vadd.f32 0.0, %v1638
      %1640 = vmatmul.bf16.gmra.mxu0 %v437
      %v1641 = vpop.f32.mrf.mxu0
      %v1642 = vadd.f32 0.0, %v1641
      %v1643 = vpop.f32.mrf.mxu0
      %v1644 = vadd.f32 0.0, %v1643
      %1645 = vmatmul.bf16.gmra.mxu0 %v438
      %v1646 = vpop.f32.mrf.mxu0
      %v1647 = vadd.f32 0.0, %v1646
      %v1648 = vpop.f32.mrf.mxu0
      %v1649 = vadd.f32 0.0, %v1648
      %1650 = vmatmul.bf16.gmra.mxu0 %v439
      %v1651 = vpop.f32.mrf.mxu0
      %v1652 = vadd.f32 0.0, %v1651
      %v1653 = vpop.f32.mrf.mxu0
      %v1654 = vadd.f32 0.0, %v1653
      %1655 = vmatmul.bf16.gmra.mxu0 %v440
      %v1656 = vpop.f32.mrf.mxu0
      %v1657 = vadd.f32 0.0, %v1656
      %v1658 = vpop.f32.mrf.mxu0
      %v1659 = vadd.f32 0.0, %v1658
      %1660 = vmatmul.bf16.gmra.mxu0 %v441
      %v1661 = vpop.f32.mrf.mxu0
      %v1662 = vadd.f32 0.0, %v1661
      %v1663 = vpop.f32.mrf.mxu0
      %v1664 = vadd.f32 0.0, %v1663
      %1665 = vmatmul.bf16.gmra.mxu0 %v442
      %v1666 = vpop.f32.mrf.mxu0
      %v1667 = vadd.f32 0.0, %v1666
      %v1668 = vpop.f32.mrf.mxu0
      %v1669 = vadd.f32 0.0, %v1668
      %1670 = vmatmul.bf16.gmra.mxu0 %v443
      %v1671 = vpop.f32.mrf.mxu0
      %v1672 = vadd.f32 0.0, %v1671
      %v1673 = vpop.f32.mrf.mxu0
      %v1674 = vadd.f32 0.0, %v1673
      %1675 = vmatmul.bf16.gmra.mxu0 %v444
      %v1676 = vpop.f32.mrf.mxu0
      %v1677 = vadd.f32 0.0, %v1676
      %v1678 = vpop.f32.mrf.mxu0
      %v1679 = vadd.f32 0.0, %v1678
      %1680 = vmatmul.bf16.gmra.mxu0 %v445
      %v1681 = vpop.f32.mrf.mxu0
      %v1682 = vadd.f32 0.0, %v1681
      %v1683 = vpop.f32.mrf.mxu0
      %v1684 = vadd.f32 0.0, %v1683
      %1685 = vdwg.mxu0
      %1686 = vmatpush.bf16.msra.mxu0 %v1564
      %1687 = vmatpush.bf16.msra.mxu0 %v1563
      %1688 = vmatpush.bf16.msra.mxu0 %v1562
      %1689 = vmatpush.bf16.msra.mxu0 %v1561
      %1690 = vmatpush.bf16.msra.mxu0 %v1560
      %1691 = vmatpush.bf16.msra.mxu0 %v1559
      %1692 = vmatpush.bf16.msra.mxu0 %v1558
      %1693 = vmatpush.bf16.msra.mxu0 %v1557
      %1694 = vmatmul.bf16.gmra.mxu0 %v543
      %v1695 = vpop.f32.mrf.mxu0
      %v1696 = vadd.f32 %v1607, %v1695
      %v1697 = vpop.f32.mrf.mxu0
      %v1698 = vadd.f32 %v1609, %v1697
      %1699 = vmatmul.bf16.gmra.mxu0 %v555
      %v1700 = vpop.f32.mrf.mxu0
      %v1701 = vadd.f32 %v1612, %v1700
      %v1702 = vpop.f32.mrf.mxu0
      %v1703 = vadd.f32 %v1614, %v1702
      %1704 = vmatmul.bf16.gmra.mxu0 %v567
      %v1705 = vpop.f32.mrf.mxu0
      %v1706 = vadd.f32 %v1617, %v1705
      %v1707 = vpop.f32.mrf.mxu0
      %v1708 = vadd.f32 %v1619, %v1707
      %1709 = vmatmul.bf16.gmra.mxu0 %v579
      %v1710 = vpop.f32.mrf.mxu0
      %v1711 = vadd.f32 %v1622, %v1710
      %v1712 = vpop.f32.mrf.mxu0
      %v1713 = vadd.f32 %v1624, %v1712
      %1714 = vmatmul.bf16.gmra.mxu0 %v591
      %v1715 = vpop.f32.mrf.mxu0
      %v1716 = vadd.f32 %v1627, %v1715
      %v1717 = vpop.f32.mrf.mxu0
      %v1718 = vadd.f32 %v1629, %v1717
      %1719 = vmatmul.bf16.gmra.mxu0 %v603
      %v1720 = vpop.f32.mrf.mxu0
      %v1721 = vadd.f32 %v1632, %v1720
      %v1722 = vpop.f32.mrf.mxu0
      %v1723 = vadd.f32 %v1634, %v1722
      %1724 = vmatmul.bf16.gmra.mxu0 %v615
      %v1725 = vpop.f32.mrf.mxu0
      %v1726 = vadd.f32 %v1637, %v1725
      %v1727 = vpop.f32.mrf.mxu0
      %v1728 = vadd.f32 %v1639, %v1727
      %1729 = vmatmul.bf16.gmra.mxu0 %v627
      %v1730 = vpop.f32.mrf.mxu0
      %v1731 = vadd.f32 %v1642, %v1730
      %v1732 = vpop.f32.mrf.mxu0
      %v1733 = vadd.f32 %v1644, %v1732
      %1734 = vmatmul.bf16.gmra.mxu0 %v639
      %v1735 = vpop.f32.mrf.mxu0
      %v1736 = vadd.f32 %v1647, %v1735
      %v1737 = vpop.f32.mrf.mxu0
      %v1738 = vadd.f32 %v1649, %v1737
      %1739 = vmatmul.bf16.gmra.mxu0 %v651
      %v1740 = vpop.f32.mrf.mxu0
      %v1741 = vadd.f32 %v1652, %v1740
      %v1742 = vpop.f32.mrf.mxu0
      %v1743 = vadd.f32 %v1654, %v1742
      %1744 = vmatmul.bf16.gmra.mxu0 %v663
      %v1745 = vpop.f32.mrf.mxu0
      %v1746 = vadd.f32 %v1657, %v1745
      %v1747 = vpop.f32.mrf.mxu0
      %v1748 = vadd.f32 %v1659, %v1747
      %1749 = vmatmul.bf16.gmra.mxu0 %v675
      %v1750 = vpop.f32.mrf.mxu0
      %v1751 = vadd.f32 %v1662, %v1750
      %v1752 = vpop.f32.mrf.mxu0
      %v1753 = vadd.f32 %v1664, %v1752
      %1754 = vmatmul.bf16.gmra.mxu0 %v687
      %v1755 = vpop.f32.mrf.mxu0
      %v1756 = vadd.f32 %v1667, %v1755
      %v1757 = vpop.f32.mrf.mxu0
      %v1758 = vadd.f32 %v1669, %v1757
      %1759 = vmatmul.bf16.gmra.mxu0 %v699
      %v1760 = vpop.f32.mrf.mxu0
      %v1761 = vadd.f32 %v1672, %v1760
      %v1762 = vpop.f32.mrf.mxu0
      %v1763 = vadd.f32 %v1674, %v1762
      %1764 = vmatmul.bf16.gmra.mxu0 %v711
      %v1765 = vpop.f32.mrf.mxu0
      %v1766 = vadd.f32 %v1677, %v1765
      %v1767 = vpop.f32.mrf.mxu0
      %v1768 = vadd.f32 %v1679, %v1767
      %1769 = vmatmul.bf16.gmra.mxu0 %v723
      %v1770 = vpop.f32.mrf.mxu0
      %v1771 = vadd.f32 %v1682, %v1770
      %v1772 = vpop.f32.mrf.mxu0
      %v1773 = vadd.f32 %v1684, %v1772
      %1774 = vdwg.mxu0
      %1775 = vmatpush.bf16.msra.mxu0 %v1572
      %1776 = vmatpush.bf16.msra.mxu0 %v1571
      %1777 = vmatpush.bf16.msra.mxu0 %v1570
      %1778 = vmatpush.bf16.msra.mxu0 %v1569
      %1779 = vmatpush.bf16.msra.mxu0 %v1568
      %1780 = vmatpush.bf16.msra.mxu0 %v1567
      %1781 = vmatpush.bf16.msra.mxu0 %v1566
      %1782 = vmatpush.bf16.msra.mxu0 %v1565
      %1783 = vmatmul.bf16.gmra.mxu0 %v814
      %v1784 = vpop.f32.mrf.mxu0
      %v1785 = vadd.f32 %v1696, %v1784
      %v1786 = vpop.f32.mrf.mxu0
      %v1787 = vadd.f32 %v1698, %v1786
      %1788 = vmatmul.bf16.gmra.mxu0 %v817
      %v1789 = vpop.f32.mrf.mxu0
      %v1790 = vadd.f32 %v1701, %v1789
      %v1791 = vpop.f32.mrf.mxu0
      %v1792 = vadd.f32 %v1703, %v1791
      %1793 = vmatmul.bf16.gmra.mxu0 %v820
      %v1794 = vpop.f32.mrf.mxu0
      %v1795 = vadd.f32 %v1706, %v1794
      %v1796 = vpop.f32.mrf.mxu0
      %v1797 = vadd.f32 %v1708, %v1796
      %1798 = vmatmul.bf16.gmra.mxu0 %v823
      %v1799 = vpop.f32.mrf.mxu0
      %v1800 = vadd.f32 %v1711, %v1799
      %v1801 = vpop.f32.mrf.mxu0
      %v1802 = vadd.f32 %v1713, %v1801
      %1803 = vmatmul.bf16.gmra.mxu0 %v826
      %v1804 = vpop.f32.mrf.mxu0
      %v1805 = vadd.f32 %v1716, %v1804
      %v1806 = vpop.f32.mrf.mxu0
      %v1807 = vadd.f32 %v1718, %v1806
      %1808 = vmatmul.bf16.gmra.mxu0 %v829
      %v1809 = vpop.f32.mrf.mxu0
      %v1810 = vadd.f32 %v1721, %v1809
      %v1811 = vpop.f32.mrf.mxu0
      %v1812 = vadd.f32 %v1723, %v1811
      %1813 = vmatmul.bf16.gmra.mxu0 %v832
      %v1814 = vpop.f32.mrf.mxu0
      %v1815 = vadd.f32 %v1726, %v1814
      %v1816 = vpop.f32.mrf.mxu0
      %v1817 = vadd.f32 %v1728, %v1816
      %1818 = vmatmul.bf16.gmra.mxu0 %v835
      %v1819 = vpop.f32.mrf.mxu0
      %v1820 = vadd.f32 %v1731, %v1819
      %v1821 = vpop.f32.mrf.mxu0
      %v1822 = vadd.f32 %v1733, %v1821
      %1823 = vmatmul.bf16.gmra.mxu0 %v838
      %v1824 = vpop.f32.mrf.mxu0
      %v1825 = vadd.f32 %v1736, %v1824
      %v1826 = vpop.f32.mrf.mxu0
      %v1827 = vadd.f32 %v1738, %v1826
      %1828 = vmatmul.bf16.gmra.mxu0 %v841
      %v1829 = vpop.f32.mrf.mxu0
      %v1830 = vadd.f32 %v1741, %v1829
      %v1831 = vpop.f32.mrf.mxu0
      %v1832 = vadd.f32 %v1743, %v1831
      %1833 = vmatmul.bf16.gmra.mxu0 %v844
      %v1834 = vpop.f32.mrf.mxu0
      %v1835 = vadd.f32 %v1746, %v1834
      %v1836 = vpop.f32.mrf.mxu0
      %v1837 = vadd.f32 %v1748, %v1836
      %1838 = vmatmul.bf16.gmra.mxu0 %v847
      %v1839 = vpop.f32.mrf.mxu0
      %v1840 = vadd.f32 %v1751, %v1839
      %v1841 = vpop.f32.mrf.mxu0
      %v1842 = vadd.f32 %v1753, %v1841
      %1843 = vmatmul.bf16.gmra.mxu0 %v850
      %v1844 = vpop.f32.mrf.mxu0
      %v1845 = vadd.f32 %v1756, %v1844
      %v1846 = vpop.f32.mrf.mxu0
      %v1847 = vadd.f32 %v1758, %v1846
      %1848 = vmatmul.bf16.gmra.mxu0 %v853
      %v1849 = vpop.f32.mrf.mxu0
      %v1850 = vadd.f32 %v1761, %v1849
      %v1851 = vpop.f32.mrf.mxu0
      %v1852 = vadd.f32 %v1763, %v1851
      %1853 = vmatmul.bf16.gmra.mxu0 %v856
      %v1854 = vpop.f32.mrf.mxu0
      %v1855 = vadd.f32 %v1766, %v1854
      %v1856 = vpop.f32.mrf.mxu0
      %v1857 = vadd.f32 %v1768, %v1856
      %1858 = vmatmul.bf16.gmra.mxu0 %v859
      %v1859 = vpop.f32.mrf.mxu0
      %v1860 = vadd.f32 %v1771, %v1859
      %v1861 = vpop.f32.mrf.mxu0
      %v1862 = vadd.f32 %v1773, %v1861
      %1863 = vdwg.mxu0
      %v1864 = vadd.f32 %v1372, %v1785
      %v1865 = vadd.f32 %v1373, %v1787
      %v1866 = vadd.f32 %v1374, %v1790
      %v1867 = vadd.f32 %v1375, %v1792
      %v1868 = vadd.f32 %v1376, %v1795
      %v1869 = vadd.f32 %v1377, %v1797
      %v1870 = vadd.f32 %v1378, %v1800
      %v1871 = vadd.f32 %v1379, %v1802
      %v1872 = vadd.f32 %v1380, %v1805
      %v1873 = vadd.f32 %v1381, %v1807
      %v1874 = vadd.f32 %v1382, %v1810
      %v1875 = vadd.f32 %v1383, %v1812
      %v1876 = vadd.f32 %v1384, %v1815
      %v1877 = vadd.f32 %v1385, %v1817
      %v1878 = vadd.f32 %v1386, %v1820
      %v1879 = vadd.f32 %v1387, %v1822
      %v1880 = vadd.f32 %v1388, %v1825
      %v1881 = vadd.f32 %v1389, %v1827
      %v1882 = vadd.f32 %v1390, %v1830
      %v1883 = vadd.f32 %v1391, %v1832
      %v1884 = vadd.f32 %v1392, %v1835
      %v1885 = vadd.f32 %v1393, %v1837
      %v1886 = vadd.f32 %v1394, %v1840
      %v1887 = vadd.f32 %v1395, %v1842
      %v1888 = vadd.f32 %v1396, %v1845
      %v1889 = vadd.f32 %v1397, %v1847
      %v1890 = vadd.f32 %v1398, %v1850
      %v1891 = vadd.f32 %v1399, %v1852
      %v1892 = vadd.f32 %v1400, %v1855
      %v1893 = vadd.f32 %v1401, %v1857
      %v1894 = vadd.f32 %v1402, %v1860
      %v1895 = vadd.f32 %v1403, %v1862
      %1896 = vst [vmem:[#allocation2] sm:$0xff] %v1864
      %1897 = vst [vmem:[#allocation2 + $0x8] sm:$0xff] %v1865
      %1898 = vst [vmem:[#allocation2 + $0x10] sm:$0xff] %v1866
      %1899 = vst [vmem:[#allocation2 + $0x18] sm:$0xff] %v1867
      %1900 = vst [vmem:[#allocation2 + $0x20] sm:$0xff] %v1868
      %1901 = vst [vmem:[#allocation2 + $0x28] sm:$0xff] %v1869
      %1902 = vst [vmem:[#allocation2 + $0x30] sm:$0xff] %v1870
      %1903 = vst [vmem:[#allocation2 + $0x38] sm:$0xff] %v1871
      %1904 = vst [vmem:[#allocation2 + $0x40] sm:$0xff] %v1872
      %1905 = vst [vmem:[#allocation2 + $0x48] sm:$0xff] %v1873
      %1906 = vst [vmem:[#allocation2 + $0x50] sm:$0xff] %v1874
      %1907 = vst [vmem:[#allocation2 + $0x58] sm:$0xff] %v1875
      %1908 = vst [vmem:[#allocation2 + $0x60] sm:$0xff] %v1876
      %1909 = vst [vmem:[#allocation2 + $0x68] sm:$0xff] %v1877
      %1910 = vst [vmem:[#allocation2 + $0x70] sm:$0xff] %v1878
      %1911 = vst [vmem:[#allocation2 + $0x78] sm:$0xff] %v1879
      %1912 = vst [vmem:[#allocation2 + $0x80] sm:$0xff] %v1880
      %1913 = vst [vmem:[#allocation2 + $0x88] sm:$0xff] %v1881
      %1914 = vst [vmem:[#allocation2 + $0x90] sm:$0xff] %v1882
      %1915 = vst [vmem:[#allocation2 + $0x98] sm:$0xff] %v1883
      %1916 = vst [vmem:[#allocation2 + $0xa0] sm:$0xff] %v1884
      %1917 = vst [vmem:[#allocation2 + $0xa8] sm:$0xff] %v1885
      %1918 = vst [vmem:[#allocation2 + $0xb0] sm:$0xff] %v1886
      %1919 = vst [vmem:[#allocation2 + $0xb8] sm:$0xff] %v1887
      %1920 = vst [vmem:[#allocation2 + $0xc0] sm:$0xff] %v1888
      %1921 = vst [vmem:[#allocation2 + $0xc8] sm:$0xff] %v1889
      %1922 = vst [vmem:[#allocation2 + $0xd0] sm:$0xff] %v1890
      %1923 = vst [vmem:[#allocation2 + $0xd8] sm:$0xff] %v1891
      %1924 = vst [vmem:[#allocation2 + $0xe0] sm:$0xff] %v1892
      %1925 = vst [vmem:[#allocation2 + $0xe8] sm:$0xff] %v1893
      %1926 = vst [vmem:[#allocation2 + $0xf0] sm:$0xff] %v1894
      %1927 = vst [vmem:[#allocation2 + $0xf8] sm:$0xff] %v1895
      %v1928 = vld [vmem:[#allocation2] sm:$0xff]
      %v1929 = vld [vmem:[#allocation2 + $0x8] sm:$0xff]
      %v1930 = vld [vmem:[#allocation2 + $0x10] sm:$0xff]
      %v1931 = vld [vmem:[#allocation2 + $0x18] sm:$0xff]
      %v1932 = vld [vmem:[#allocation2 + $0x20] sm:$0xff]
      %v1933 = vld [vmem:[#allocation2 + $0x28] sm:$0xff]
      %v1934 = vld [vmem:[#allocation2 + $0x30] sm:$0xff]
      %v1935 = vld [vmem:[#allocation2 + $0x38] sm:$0xff]
      %v1936 = vld [vmem:[#allocation2 + $0x40] sm:$0xff]
      %v1937 = vld [vmem:[#allocation2 + $0x48] sm:$0xff]
      %v1938 = vld [vmem:[#allocation2 + $0x50] sm:$0xff]
      %v1939 = vld [vmem:[#allocation2 + $0x58] sm:$0xff]
      %v1940 = vld [vmem:[#allocation2 + $0x60] sm:$0xff]
      %v1941 = vld [vmem:[#allocation2 + $0x68] sm:$0xff]
      %v1942 = vld [vmem:[#allocation2 + $0x70] sm:$0xff]
      %v1943 = vld [vmem:[#allocation2 + $0x78] sm:$0xff]
      %v1944 = vld [vmem:[#allocation2 + $0x80] sm:$0xff]
      %v1945 = vld [vmem:[#allocation2 + $0x88] sm:$0xff]
      %v1946 = vld [vmem:[#allocation2 + $0x90] sm:$0xff]
      %v1947 = vld [vmem:[#allocation2 + $0x98] sm:$0xff]
      %v1948 = vld [vmem:[#allocation2 + $0xa0] sm:$0xff]
      %v1949 = vld [vmem:[#allocation2 + $0xa8] sm:$0xff]
      %v1950 = vld [vmem:[#allocation2 + $0xb0] sm:$0xff]
      %v1951 = vld [vmem:[#allocation2 + $0xb8] sm:$0xff]
      %v1952 = vld [vmem:[#allocation2 + $0xc0] sm:$0xff]
      %v1953 = vld [vmem:[#allocation2 + $0xc8] sm:$0xff]
      %v1954 = vld [vmem:[#allocation2 + $0xd0] sm:$0xff]
      %v1955 = vld [vmem:[#allocation2 + $0xd8] sm:$0xff]
      %v1956 = vld [vmem:[#allocation2 + $0xe0] sm:$0xff]
      %v1957 = vld [vmem:[#allocation2 + $0xe8] sm:$0xff]
      %v1958 = vld [vmem:[#allocation2 + $0xf0] sm:$0xff]
      %v1959 = vld [vmem:[#allocation2 + $0xf8] sm:$0xff]
      %s1960 = scalar_lea.vmem %s1, 384
      %v1961 = vld [vmem:[%s1960] sm:$0xf]
      %v1962 = vld [vmem:[%s1960 + $0x4] sm:$0xf]
      %v1963 = vld [vmem:[%s1960 + $0x8] sm:$0xf]
      %v1964 = vld [vmem:[%s1960 + $0xc] sm:$0xf]
      %v1965 = vld [vmem:[%s1960 + $0x10] sm:$0xf]
      %v1966 = vld [vmem:[%s1960 + $0x14] sm:$0xf]
      %v1967 = vld [vmem:[%s1960 + $0x18] sm:$0xf]
      %v1968 = vld [vmem:[%s1960 + $0x1c] sm:$0xf]
      %v1969 = vld [vmem:[%s1960 + $0x20] sm:$0xf]
      %v1970 = vld [vmem:[%s1960 + $0x24] sm:$0xf]
      %v1971 = vld [vmem:[%s1960 + $0x28] sm:$0xf]
      %v1972 = vld [vmem:[%s1960 + $0x2c] sm:$0xf]
      %v1973 = vld [vmem:[%s1960 + $0x30] sm:$0xf]
      %v1974 = vld [vmem:[%s1960 + $0x34] sm:$0xf]
      %v1975 = vld [vmem:[%s1960 + $0x38] sm:$0xf]
      %v1976 = vld [vmem:[%s1960 + $0x3c] sm:$0xf]
      %v1977 = vld [vmem:[%s1960 + $0x40] sm:$0xf]
      %v1978 = vld [vmem:[%s1960 + $0x44] sm:$0xf]
      %v1979 = vld [vmem:[%s1960 + $0x48] sm:$0xf]
      %v1980 = vld [vmem:[%s1960 + $0x4c] sm:$0xf]
      %v1981 = vld [vmem:[%s1960 + $0x50] sm:$0xf]
      %v1982 = vld [vmem:[%s1960 + $0x54] sm:$0xf]
      %v1983 = vld [vmem:[%s1960 + $0x58] sm:$0xf]
      %v1984 = vld [vmem:[%s1960 + $0x5c] sm:$0xf]
      %v1985 = vld [vmem:[%s1960 + $0x60] sm:$0xf]
      %v1986 = vld [vmem:[%s1960 + $0x64] sm:$0xf]
      %v1987 = vld [vmem:[%s1960 + $0x68] sm:$0xf]
      %v1988 = vld [vmem:[%s1960 + $0x6c] sm:$0xf]
      %v1989 = vld [vmem:[%s1960 + $0x70] sm:$0xf]
      %v1990 = vld [vmem:[%s1960 + $0x74] sm:$0xf]
      %v1991 = vld [vmem:[%s1960 + $0x78] sm:$0xf]
      %v1992 = vld [vmem:[%s1960 + $0x7c] sm:$0xf]
      %v1993 = vld [vmem:[%s1960 + $0x80] sm:$0xf]
      %v1994 = vld [vmem:[%s1960 + $0x84] sm:$0xf]
      %v1995 = vld [vmem:[%s1960 + $0x88] sm:$0xf]
      %v1996 = vld [vmem:[%s1960 + $0x8c] sm:$0xf]
      %v1997 = vld [vmem:[%s1960 + $0x90] sm:$0xf]
      %v1998 = vld [vmem:[%s1960 + $0x94] sm:$0xf]
      %v1999 = vld [vmem:[%s1960 + $0x98] sm:$0xf]
      %v2000 = vld [vmem:[%s1960 + $0x9c] sm:$0xf]
      %v2001 = vld [vmem:[%s1960 + $0xa0] sm:$0xf]
      %v2002 = vld [vmem:[%s1960 + $0xa4] sm:$0xf]
      %v2003 = vld [vmem:[%s1960 + $0xa8] sm:$0xf]
      %v2004 = vld [vmem:[%s1960 + $0xac] sm:$0xf]
      %v2005 = vld [vmem:[%s1960 + $0xb0] sm:$0xf]
      %v2006 = vld [vmem:[%s1960 + $0xb4] sm:$0xf]
      %v2007 = vld [vmem:[%s1960 + $0xb8] sm:$0xf]
      %v2008 = vld [vmem:[%s1960 + $0xbc] sm:$0xf]
      %v2057 = vunpack.c.l.b16 %v1961
      %v2058 = vunpack.c.l.b16 %v1962
      %v2059 = vunpack.c.l.b16 %v1963
      %v2060 = vunpack.c.l.b16 %v1964
      %v2061 = vunpack.c.l.b16 %v1965
      %v2062 = vunpack.c.l.b16 %v1966
      %v2063 = vunpack.c.l.b16 %v1967
      %v2064 = vunpack.c.l.b16 %v1968
      %v2065 = vunpack.c.l.b16 %v1969
      %v2066 = vunpack.c.l.b16 %v1970
      %v2067 = vunpack.c.l.b16 %v1971
      %v2068 = vunpack.c.l.b16 %v1972
      %v2069 = vunpack.c.l.b16 %v1973
      %v2070 = vunpack.c.l.b16 %v1974
      %v2071 = vunpack.c.l.b16 %v1975
      %v2072 = vunpack.c.l.b16 %v1976
      %v2073 = vunpack.c.l.b16 %v1977
      %v2074 = vunpack.c.l.b16 %v1978
      %v2075 = vunpack.c.l.b16 %v1979
      %v2076 = vunpack.c.l.b16 %v1980
      %v2077 = vunpack.c.l.b16 %v1981
      %v2078 = vunpack.c.l.b16 %v1982
      %v2079 = vunpack.c.l.b16 %v1983
      %v2080 = vunpack.c.l.b16 %v1984
      %v2081 = vunpack.c.l.b16 %v1985
      %v2082 = vunpack.c.l.b16 %v1986
      %v2083 = vunpack.c.l.b16 %v1987
      %v2084 = vunpack.c.l.b16 %v1988
      %v2085 = vunpack.c.l.b16 %v1989
      %v2086 = vunpack.c.l.b16 %v1990
      %v2087 = vunpack.c.l.b16 %v1991
      %v2088 = vunpack.c.l.b16 %v1992
      %v2089 = vunpack.c.l.b16 %v1993
      %v2090 = vunpack.c.l.b16 %v1994
      %v2091 = vunpack.c.l.b16 %v1995
      %v2092 = vunpack.c.l.b16 %v1996
      %v2093 = vunpack.c.l.b16 %v1997
      %v2094 = vunpack.c.l.b16 %v1998
      %v2095 = vunpack.c.l.b16 %v1999
      %v2096 = vunpack.c.l.b16 %v2000
      %v2097 = vunpack.c.l.b16 %v2001
      %v2098 = vunpack.c.l.b16 %v2002
      %v2099 = vunpack.c.l.b16 %v2003
      %v2100 = vunpack.c.l.b16 %v2004
      %v2101 = vunpack.c.l.b16 %v2005
      %v2102 = vunpack.c.l.b16 %v2006
      %v2103 = vunpack.c.l.b16 %v2007
      %v2104 = vunpack.c.l.b16 %v2008
      %v2105 = vpack.c.b16 %v2058, %v2057
      %v2106 = vpack.c.b16 %v2060, %v2059
      %v2107 = vpack.c.b16 %v2062, %v2061
      %v2108 = vpack.c.b16 %v2064, %v2063
      %v2109 = vpack.c.b16 %v2066, %v2065
      %v2110 = vpack.c.b16 %v2068, %v2067
      %v2111 = vpack.c.b16 %v2070, %v2069
      %v2112 = vpack.c.b16 %v2072, %v2071
      %v2113 = vpack.c.b16 %v2074, %v2073
      %v2114 = vpack.c.b16 %v2076, %v2075
      %v2115 = vpack.c.b16 %v2078, %v2077
      %v2116 = vpack.c.b16 %v2080, %v2079
      %v2117 = vpack.c.b16 %v2082, %v2081
      %v2118 = vpack.c.b16 %v2084, %v2083
      %v2119 = vpack.c.b16 %v2086, %v2085
      %v2120 = vpack.c.b16 %v2088, %v2087
      %v2121 = vpack.c.b16 %v2090, %v2089
      %v2122 = vpack.c.b16 %v2092, %v2091
      %v2123 = vpack.c.b16 %v2094, %v2093
      %v2124 = vpack.c.b16 %v2096, %v2095
      %v2125 = vpack.c.b16 %v2098, %v2097
      %v2126 = vpack.c.b16 %v2100, %v2099
      %v2127 = vpack.c.b16 %v2102, %v2101
      %v2128 = vpack.c.b16 %v2104, %v2103
      %2153 = vmatpush.bf16.msra.mxu0 %v2112
      %2154 = vmatpush.bf16.msra.mxu0 %v2111
      %2155 = vmatpush.bf16.msra.mxu0 %v2110
      %2156 = vmatpush.bf16.msra.mxu0 %v2109
      %2157 = vmatpush.bf16.msra.mxu0 %v2108
      %2158 = vmatpush.bf16.msra.mxu0 %v2107
      %2159 = vmatpush.bf16.msra.mxu0 %v2106
      %2160 = vmatpush.bf16.msra.mxu0 %v2105
      %2161 = vmatmul.bf16.gmra.mxu0 %v431
      %v2162 = vpop.f32.mrf.mxu0
      %v2163 = vadd.f32 0.0, %v2162
      %v2164 = vpop.f32.mrf.mxu0
      %v2165 = vadd.f32 0.0, %v2164
      %2166 = vmatmul.bf16.gmra.mxu0 %v432
      %v2167 = vpop.f32.mrf.mxu0
      %v2168 = vadd.f32 0.0, %v2167
      %v2169 = vpop.f32.mrf.mxu0
      %v2170 = vadd.f32 0.0, %v2169
      %2171 = vmatmul.bf16.gmra.mxu0 %v433
      %v2172 = vpop.f32.mrf.mxu0
      %v2173 = vadd.f32 0.0, %v2172
      %v2174 = vpop.f32.mrf.mxu0
      %v2175 = vadd.f32 0.0, %v2174
      %2176 = vmatmul.bf16.gmra.mxu0 %v434
      %v2177 = vpop.f32.mrf.mxu0
      %v2178 = vadd.f32 0.0, %v2177
      %v2179 = vpop.f32.mrf.mxu0
      %v2180 = vadd.f32 0.0, %v2179
      %2181 = vmatmul.bf16.gmra.mxu0 %v435
      %v2182 = vpop.f32.mrf.mxu0
      %v2183 = vadd.f32 0.0, %v2182
      %v2184 = vpop.f32.mrf.mxu0
      %v2185 = vadd.f32 0.0, %v2184
      %2186 = vmatmul.bf16.gmra.mxu0 %v436
      %v2187 = vpop.f32.mrf.mxu0
      %v2188 = vadd.f32 0.0, %v2187
      %v2189 = vpop.f32.mrf.mxu0
      %v2190 = vadd.f32 0.0, %v2189
      %2191 = vmatmul.bf16.gmra.mxu0 %v437
      %v2192 = vpop.f32.mrf.mxu0
      %v2193 = vadd.f32 0.0, %v2192
      %v2194 = vpop.f32.mrf.mxu0
      %v2195 = vadd.f32 0.0, %v2194
      %2196 = vmatmul.bf16.gmra.mxu0 %v438
      %v2197 = vpop.f32.mrf.mxu0
      %v2198 = vadd.f32 0.0, %v2197
      %v2199 = vpop.f32.mrf.mxu0
      %v2200 = vadd.f32 0.0, %v2199
      %2201 = vmatmul.bf16.gmra.mxu0 %v439
      %v2202 = vpop.f32.mrf.mxu0
      %v2203 = vadd.f32 0.0, %v2202
      %v2204 = vpop.f32.mrf.mxu0
      %v2205 = vadd.f32 0.0, %v2204
      %2206 = vmatmul.bf16.gmra.mxu0 %v440
      %v2207 = vpop.f32.mrf.mxu0
      %v2208 = vadd.f32 0.0, %v2207
      %v2209 = vpop.f32.mrf.mxu0
      %v2210 = vadd.f32 0.0, %v2209
      %2211 = vmatmul.bf16.gmra.mxu0 %v441
      %v2212 = vpop.f32.mrf.mxu0
      %v2213 = vadd.f32 0.0, %v2212
      %v2214 = vpop.f32.mrf.mxu0
      %v2215 = vadd.f32 0.0, %v2214
      %2216 = vmatmul.bf16.gmra.mxu0 %v442
      %v2217 = vpop.f32.mrf.mxu0
      %v2218 = vadd.f32 0.0, %v2217
      %v2219 = vpop.f32.mrf.mxu0
      %v2220 = vadd.f32 0.0, %v2219
      %2221 = vmatmul.bf16.gmra.mxu0 %v443
      %v2222 = vpop.f32.mrf.mxu0
      %v2223 = vadd.f32 0.0, %v2222
      %v2224 = vpop.f32.mrf.mxu0
      %v2225 = vadd.f32 0.0, %v2224
      %2226 = vmatmul.bf16.gmra.mxu0 %v444
      %v2227 = vpop.f32.mrf.mxu0
      %v2228 = vadd.f32 0.0, %v2227
      %v2229 = vpop.f32.mrf.mxu0
      %v2230 = vadd.f32 0.0, %v2229
      %2231 = vmatmul.bf16.gmra.mxu0 %v445
      %v2232 = vpop.f32.mrf.mxu0
      %v2233 = vadd.f32 0.0, %v2232
      %v2234 = vpop.f32.mrf.mxu0
      %v2235 = vadd.f32 0.0, %v2234
      %2236 = vmatmul.bf16.gmra.mxu0 %v446
      %v2237 = vpop.f32.mrf.mxu0
      %v2238 = vadd.f32 0.0, %v2237
      %v2239 = vpop.f32.mrf.mxu0
      %v2240 = vadd.f32 0.0, %v2239
      %2241 = vdwg.mxu0
      %2242 = vmatpush.bf16.msra.mxu0 %v2120
      %2243 = vmatpush.bf16.msra.mxu0 %v2119
      %2244 = vmatpush.bf16.msra.mxu0 %v2118
      %2245 = vmatpush.bf16.msra.mxu0 %v2117
      %2246 = vmatpush.bf16.msra.mxu0 %v2116
      %2247 = vmatpush.bf16.msra.mxu0 %v2115
      %2248 = vmatpush.bf16.msra.mxu0 %v2114
      %2249 = vmatpush.bf16.msra.mxu0 %v2113
      %2250 = vmatmul.bf16.gmra.mxu0 %v555
      %v2251 = vpop.f32.mrf.mxu0
      %v2252 = vadd.f32 %v2163, %v2251
      %v2253 = vpop.f32.mrf.mxu0
      %v2254 = vadd.f32 %v2165, %v2253
      %2255 = vmatmul.bf16.gmra.mxu0 %v567
      %v2256 = vpop.f32.mrf.mxu0
      %v2257 = vadd.f32 %v2168, %v2256
      %v2258 = vpop.f32.mrf.mxu0
      %v2259 = vadd.f32 %v2170, %v2258
      %2260 = vmatmul.bf16.gmra.mxu0 %v579
      %v2261 = vpop.f32.mrf.mxu0
      %v2262 = vadd.f32 %v2173, %v2261
      %v2263 = vpop.f32.mrf.mxu0
      %v2264 = vadd.f32 %v2175, %v2263
      %2265 = vmatmul.bf16.gmra.mxu0 %v591
      %v2266 = vpop.f32.mrf.mxu0
      %v2267 = vadd.f32 %v2178, %v2266
      %v2268 = vpop.f32.mrf.mxu0
      %v2269 = vadd.f32 %v2180, %v2268
      %2270 = vmatmul.bf16.gmra.mxu0 %v603
      %v2271 = vpop.f32.mrf.mxu0
      %v2272 = vadd.f32 %v2183, %v2271
      %v2273 = vpop.f32.mrf.mxu0
      %v2274 = vadd.f32 %v2185, %v2273
      %2275 = vmatmul.bf16.gmra.mxu0 %v615
      %v2276 = vpop.f32.mrf.mxu0
      %v2277 = vadd.f32 %v2188, %v2276
      %v2278 = vpop.f32.mrf.mxu0
      %v2279 = vadd.f32 %v2190, %v2278
      %2280 = vmatmul.bf16.gmra.mxu0 %v627
      %v2281 = vpop.f32.mrf.mxu0
      %v2282 = vadd.f32 %v2193, %v2281
      %v2283 = vpop.f32.mrf.mxu0
      %v2284 = vadd.f32 %v2195, %v2283
      %2285 = vmatmul.bf16.gmra.mxu0 %v639
      %v2286 = vpop.f32.mrf.mxu0
      %v2287 = vadd.f32 %v2198, %v2286
      %v2288 = vpop.f32.mrf.mxu0
      %v2289 = vadd.f32 %v2200, %v2288
      %2290 = vmatmul.bf16.gmra.mxu0 %v651
      %v2291 = vpop.f32.mrf.mxu0
      %v2292 = vadd.f32 %v2203, %v2291
      %v2293 = vpop.f32.mrf.mxu0
      %v2294 = vadd.f32 %v2205, %v2293
      %2295 = vmatmul.bf16.gmra.mxu0 %v663
      %v2296 = vpop.f32.mrf.mxu0
      %v2297 = vadd.f32 %v2208, %v2296
      %v2298 = vpop.f32.mrf.mxu0
      %v2299 = vadd.f32 %v2210, %v2298
      %2300 = vmatmul.bf16.gmra.mxu0 %v675
      %v2301 = vpop.f32.mrf.mxu0
      %v2302 = vadd.f32 %v2213, %v2301
      %v2303 = vpop.f32.mrf.mxu0
      %v2304 = vadd.f32 %v2215, %v2303
      %2305 = vmatmul.bf16.gmra.mxu0 %v687
      %v2306 = vpop.f32.mrf.mxu0
      %v2307 = vadd.f32 %v2218, %v2306
      %v2308 = vpop.f32.mrf.mxu0
      %v2309 = vadd.f32 %v2220, %v2308
      %2310 = vmatmul.bf16.gmra.mxu0 %v699
      %v2311 = vpop.f32.mrf.mxu0
      %v2312 = vadd.f32 %v2223, %v2311
      %v2313 = vpop.f32.mrf.mxu0
      %v2314 = vadd.f32 %v2225, %v2313
      %2315 = vmatmul.bf16.gmra.mxu0 %v711
      %v2316 = vpop.f32.mrf.mxu0
      %v2317 = vadd.f32 %v2228, %v2316
      %v2318 = vpop.f32.mrf.mxu0
      %v2319 = vadd.f32 %v2230, %v2318
      %2320 = vmatmul.bf16.gmra.mxu0 %v723
      %v2321 = vpop.f32.mrf.mxu0
      %v2322 = vadd.f32 %v2233, %v2321
      %v2323 = vpop.f32.mrf.mxu0
      %v2324 = vadd.f32 %v2235, %v2323
      %2325 = vmatmul.bf16.gmra.mxu0 %v735
      %v2326 = vpop.f32.mrf.mxu0
      %v2327 = vadd.f32 %v2238, %v2326
      %v2328 = vpop.f32.mrf.mxu0
      %v2329 = vadd.f32 %v2240, %v2328
      %2330 = vdwg.mxu0
      %2331 = vmatpush.bf16.msra.mxu0 %v2128
      %2332 = vmatpush.bf16.msra.mxu0 %v2127
      %2333 = vmatpush.bf16.msra.mxu0 %v2126
      %2334 = vmatpush.bf16.msra.mxu0 %v2125
      %2335 = vmatpush.bf16.msra.mxu0 %v2124
      %2336 = vmatpush.bf16.msra.mxu0 %v2123
      %2337 = vmatpush.bf16.msra.mxu0 %v2122
      %2338 = vmatpush.bf16.msra.mxu0 %v2121
      %2339 = vmatmul.bf16.gmra.mxu0 %v817
      %v2340 = vpop.f32.mrf.mxu0
      %v2341 = vadd.f32 %v2252, %v2340
      %v2342 = vpop.f32.mrf.mxu0
      %v2343 = vadd.f32 %v2254, %v2342
      %2344 = vmatmul.bf16.gmra.mxu0 %v820
      %v2345 = vpop.f32.mrf.mxu0
      %v2346 = vadd.f32 %v2257, %v2345
      %v2347 = vpop.f32.mrf.mxu0
      %v2348 = vadd.f32 %v2259, %v2347
      %2349 = vmatmul.bf16.gmra.mxu0 %v823
      %v2350 = vpop.f32.mrf.mxu0
      %v2351 = vadd.f32 %v2262, %v2350
      %v2352 = vpop.f32.mrf.mxu0
      %v2353 = vadd.f32 %v2264, %v2352
      %2354 = vmatmul.bf16.gmra.mxu0 %v826
      %v2355 = vpop.f32.mrf.mxu0
      %v2356 = vadd.f32 %v2267, %v2355
      %v2357 = vpop.f32.mrf.mxu0
      %v2358 = vadd.f32 %v2269, %v2357
      %2359 = vmatmul.bf16.gmra.mxu0 %v829
      %v2360 = vpop.f32.mrf.mxu0
      %v2361 = vadd.f32 %v2272, %v2360
      %v2362 = vpop.f32.mrf.mxu0
      %v2363 = vadd.f32 %v2274, %v2362
      %2364 = vmatmul.bf16.gmra.mxu0 %v832
      %v2365 = vpop.f32.mrf.mxu0
      %v2366 = vadd.f32 %v2277, %v2365
      %v2367 = vpop.f32.mrf.mxu0
      %v2368 = vadd.f32 %v2279, %v2367
      %2369 = vmatmul.bf16.gmra.mxu0 %v835
      %v2370 = vpop.f32.mrf.mxu0
      %v2371 = vadd.f32 %v2282, %v2370
      %v2372 = vpop.f32.mrf.mxu0
      %v2373 = vadd.f32 %v2284, %v2372
      %2374 = vmatmul.bf16.gmra.mxu0 %v838
      %v2375 = vpop.f32.mrf.mxu0
      %v2376 = vadd.f32 %v2287, %v2375
      %v2377 = vpop.f32.mrf.mxu0
      %v2378 = vadd.f32 %v2289, %v2377
      %2379 = vmatmul.bf16.gmra.mxu0 %v841
      %v2380 = vpop.f32.mrf.mxu0
      %v2381 = vadd.f32 %v2292, %v2380
      %v2382 = vpop.f32.mrf.mxu0
      %v2383 = vadd.f32 %v2294, %v2382
      %2384 = vmatmul.bf16.gmra.mxu0 %v844
      %v2385 = vpop.f32.mrf.mxu0
      %v2386 = vadd.f32 %v2297, %v2385
      %v2387 = vpop.f32.mrf.mxu0
      %v2388 = vadd.f32 %v2299, %v2387
      %2389 = vmatmul.bf16.gmra.mxu0 %v847
      %v2390 = vpop.f32.mrf.mxu0
      %v2391 = vadd.f32 %v2302, %v2390
      %v2392 = vpop.f32.mrf.mxu0
      %v2393 = vadd.f32 %v2304, %v2392
      %2394 = vmatmul.bf16.gmra.mxu0 %v850
      %v2395 = vpop.f32.mrf.mxu0
      %v2396 = vadd.f32 %v2307, %v2395
      %v2397 = vpop.f32.mrf.mxu0
      %v2398 = vadd.f32 %v2309, %v2397
      %2399 = vmatmul.bf16.gmra.mxu0 %v853
      %v2400 = vpop.f32.mrf.mxu0
      %v2401 = vadd.f32 %v2312, %v2400
      %v2402 = vpop.f32.mrf.mxu0
      %v2403 = vadd.f32 %v2314, %v2402
      %2404 = vmatmul.bf16.gmra.mxu0 %v856
      %v2405 = vpop.f32.mrf.mxu0
      %v2406 = vadd.f32 %v2317, %v2405
      %v2407 = vpop.f32.mrf.mxu0
      %v2408 = vadd.f32 %v2319, %v2407
      %2409 = vmatmul.bf16.gmra.mxu0 %v859
      %v2410 = vpop.f32.mrf.mxu0
      %v2411 = vadd.f32 %v2322, %v2410
      %v2412 = vpop.f32.mrf.mxu0
      %v2413 = vadd.f32 %v2324, %v2412
      %2414 = vmatmul.bf16.gmra.mxu0 %v862
      %v2415 = vpop.f32.mrf.mxu0
      %v2416 = vadd.f32 %v2327, %v2415
      %v2417 = vpop.f32.mrf.mxu0
      %v2418 = vadd.f32 %v2329, %v2417
      %2419 = vdwg.mxu0
      %v2420 = vadd.f32 %v1928, %v2341
      %v2421 = vadd.f32 %v1929, %v2343
      %v2422 = vadd.f32 %v1930, %v2346
      %v2423 = vadd.f32 %v1931, %v2348
      %v2424 = vadd.f32 %v1932, %v2351
      %v2425 = vadd.f32 %v1933, %v2353
      %v2426 = vadd.f32 %v1934, %v2356
      %v2427 = vadd.f32 %v1935, %v2358
      %v2428 = vadd.f32 %v1936, %v2361
      %v2429 = vadd.f32 %v1937, %v2363
      %v2430 = vadd.f32 %v1938, %v2366
      %v2431 = vadd.f32 %v1939, %v2368
      %v2432 = vadd.f32 %v1940, %v2371
      %v2433 = vadd.f32 %v1941, %v2373
      %v2434 = vadd.f32 %v1942, %v2376
      %v2435 = vadd.f32 %v1943, %v2378
      %v2436 = vadd.f32 %v1944, %v2381
      %v2437 = vadd.f32 %v1945, %v2383
      %v2438 = vadd.f32 %v1946, %v2386
      %v2439 = vadd.f32 %v1947, %v2388
      %v2440 = vadd.f32 %v1948, %v2391
      %v2441 = vadd.f32 %v1949, %v2393
      %v2442 = vadd.f32 %v1950, %v2396
      %v2443 = vadd.f32 %v1951, %v2398
      %v2444 = vadd.f32 %v1952, %v2401
      %v2445 = vadd.f32 %v1953, %v2403
      %v2446 = vadd.f32 %v1954, %v2406
      %v2447 = vadd.f32 %v1955, %v2408
      %v2448 = vadd.f32 %v1956, %v2411
      %v2449 = vadd.f32 %v1957, %v2413
      %v2450 = vadd.f32 %v1958, %v2416
      %v2451 = vadd.f32 %v1959, %v2418
      %2452 = vst [vmem:[#allocation2] sm:$0xff] %v2420
      %2453 = vst [vmem:[#allocation2 + $0x8] sm:$0xff] %v2421
      %2454 = vst [vmem:[#allocation2 + $0x10] sm:$0xff] %v2422
      %2455 = vst [vmem:[#allocation2 + $0x18] sm:$0xff] %v2423
      %2456 = vst [vmem:[#allocation2 + $0x20] sm:$0xff] %v2424
      %2457 = vst [vmem:[#allocation2 + $0x28] sm:$0xff] %v2425
      %2458 = vst [vmem:[#allocation2 + $0x30] sm:$0xff] %v2426
      %2459 = vst [vmem:[#allocation2 + $0x38] sm:$0xff] %v2427
      %2460 = vst [vmem:[#allocation2 + $0x40] sm:$0xff] %v2428
      %2461 = vst [vmem:[#allocation2 + $0x48] sm:$0xff] %v2429
      %2462 = vst [vmem:[#allocation2 + $0x50] sm:$0xff] %v2430
      %2463 = vst [vmem:[#allocation2 + $0x58] sm:$0xff] %v2431
      %2464 = vst [vmem:[#allocation2 + $0x60] sm:$0xff] %v2432
      %2465 = vst [vmem:[#allocation2 + $0x68] sm:$0xff] %v2433
      %2466 = vst [vmem:[#allocation2 + $0x70] sm:$0xff] %v2434
      %2467 = vst [vmem:[#allocation2 + $0x78] sm:$0xff] %v2435
      %2468 = vst [vmem:[#allocation2 + $0x80] sm:$0xff] %v2436
      %2469 = vst [vmem:[#allocation2 + $0x88] sm:$0xff] %v2437
      %2470 = vst [vmem:[#allocation2 + $0x90] sm:$0xff] %v2438
      %2471 = vst [vmem:[#allocation2 + $0x98] sm:$0xff] %v2439
      %2472 = vst [vmem:[#allocation2 + $0xa0] sm:$0xff] %v2440
      %2473 = vst [vmem:[#allocation2 + $0xa8] sm:$0xff] %v2441
      %2474 = vst [vmem:[#allocation2 + $0xb0] sm:$0xff] %v2442
      %2475 = vst [vmem:[#allocation2 + $0xb8] sm:$0xff] %v2443
      %2476 = vst [vmem:[#allocation2 + $0xc0] sm:$0xff] %v2444
      %2477 = vst [vmem:[#allocation2 + $0xc8] sm:$0xff] %v2445
      %2478 = vst [vmem:[#allocation2 + $0xd0] sm:$0xff] %v2446
      %2479 = vst [vmem:[#allocation2 + $0xd8] sm:$0xff] %v2447
      %2480 = vst [vmem:[#allocation2 + $0xe0] sm:$0xff] %v2448
      %2481 = vst [vmem:[#allocation2 + $0xe8] sm:$0xff] %v2449
      %2482 = vst [vmem:[#allocation2 + $0xf0] sm:$0xff] %v2450
      %2483 = vst [vmem:[#allocation2 + $0xf8] sm:$0xff] %v2451
      %v2484 = vld [vmem:[#allocation2] sm:$0xff]
      %v2485 = vld [vmem:[#allocation2 + $0x8] sm:$0xff]
      %v2486 = vld [vmem:[#allocation2 + $0x10] sm:$0xff]
      %v2487 = vld [vmem:[#allocation2 + $0x18] sm:$0xff]
      %v2488 = vld [vmem:[#allocation2 + $0x20] sm:$0xff]
      %v2489 = vld [vmem:[#allocation2 + $0x28] sm:$0xff]
      %v2490 = vld [vmem:[#allocation2 + $0x30] sm:$0xff]
      %v2491 = vld [vmem:[#allocation2 + $0x38] sm:$0xff]
      %v2492 = vld [vmem:[#allocation2 + $0x40] sm:$0xff]
      %v2493 = vld [vmem:[#allocation2 + $0x48] sm:$0xff]
      %v2494 = vld [vmem:[#allocation2 + $0x50] sm:$0xff]
      %v2495 = vld [vmem:[#allocation2 + $0x58] sm:$0xff]
      %v2496 = vld [vmem:[#allocation2 + $0x60] sm:$0xff]
      %v2497 = vld [vmem:[#allocation2 + $0x68] sm:$0xff]
      %v2498 = vld [vmem:[#allocation2 + $0x70] sm:$0xff]
      %v2499 = vld [vmem:[#allocation2 + $0x78] sm:$0xff]
      %v2500 = vld [vmem:[#allocation2 + $0x80] sm:$0xff]
      %v2501 = vld [vmem:[#allocation2 + $0x88] sm:$0xff]
      %v2502 = vld [vmem:[#allocation2 + $0x90] sm:$0xff]
      %v2503 = vld [vmem:[#allocation2 + $0x98] sm:$0xff]
      %v2504 = vld [vmem:[#allocation2 + $0xa0] sm:$0xff]
      %v2505 = vld [vmem:[#allocation2 + $0xa8] sm:$0xff]
      %v2506 = vld [vmem:[#allocation2 + $0xb0] sm:$0xff]
      %v2507 = vld [vmem:[#allocation2 + $0xb8] sm:$0xff]
      %v2508 = vld [vmem:[#allocation2 + $0xc0] sm:$0xff]
      %v2509 = vld [vmem:[#allocation2 + $0xc8] sm:$0xff]
      %v2510 = vld [vmem:[#allocation2 + $0xd0] sm:$0xff]
      %v2511 = vld [vmem:[#allocation2 + $0xd8] sm:$0xff]
      %v2512 = vld [vmem:[#allocation2 + $0xe0] sm:$0xff]
      %v2513 = vld [vmem:[#allocation2 + $0xe8] sm:$0xff]
      %v2514 = vld [vmem:[#allocation2 + $0xf0] sm:$0xff]
      %v2515 = vld [vmem:[#allocation2 + $0xf8] sm:$0xff]
      %v2516 = vld [vmem:[%s2] sm:$0x1]
      %v2518 = vperm.slane %v2516, 0
      %v2520 = vadd.f32 %v2484, %v2518
      %v2521 = vadd.f32 %v2485, %v2518
      %v2522 = vadd.f32 %v2486, %v2518
      %v2523 = vadd.f32 %v2487, %v2518
      %v2524 = vadd.f32 %v2488, %v2518
      %v2525 = vadd.f32 %v2489, %v2518
      %v2526 = vadd.f32 %v2490, %v2518
      %v2527 = vadd.f32 %v2491, %v2518
      %v2528 = vadd.f32 %v2492, %v2518
      %v2529 = vadd.f32 %v2493, %v2518
      %v2530 = vadd.f32 %v2494, %v2518
      %v2531 = vadd.f32 %v2495, %v2518
      %v2532 = vadd.f32 %v2496, %v2518
      %v2533 = vadd.f32 %v2497, %v2518
      %v2534 = vadd.f32 %v2498, %v2518
      %v2535 = vadd.f32 %v2499, %v2518
      %v2536 = vadd.f32 %v2500, %v2518
      %v2537 = vadd.f32 %v2501, %v2518
      %v2538 = vadd.f32 %v2502, %v2518
      %v2539 = vadd.f32 %v2503, %v2518
      %v2540 = vadd.f32 %v2504, %v2518
      %v2541 = vadd.f32 %v2505, %v2518
      %v2542 = vadd.f32 %v2506, %v2518
      %v2543 = vadd.f32 %v2507, %v2518
      %v2544 = vadd.f32 %v2508, %v2518
      %v2545 = vadd.f32 %v2509, %v2518
      %v2546 = vadd.f32 %v2510, %v2518
      %v2547 = vadd.f32 %v2511, %v2518
      %v2548 = vadd.f32 %v2512, %v2518
      %v2549 = vadd.f32 %v2513, %v2518
      %v2550 = vadd.f32 %v2514, %v2518
      %v2551 = vadd.f32 %v2515, %v2518
      %v2552 = vpack.c.bf16 %v2520, %v2520
      %v2553 = vpack.c.bf16 %v2521, %v2521
      %v2554 = vpack.c.bf16 %v2522, %v2522
      %v2555 = vpack.c.bf16 %v2523, %v2523
      %v2556 = vpack.c.bf16 %v2524, %v2524
      %v2557 = vpack.c.bf16 %v2525, %v2525
      %v2558 = vpack.c.bf16 %v2526, %v2526
      %v2559 = vpack.c.bf16 %v2527, %v2527
      %v2560 = vpack.c.bf16 %v2528, %v2528
      %v2561 = vpack.c.bf16 %v2529, %v2529
      %v2562 = vpack.c.bf16 %v2530, %v2530
      %v2563 = vpack.c.bf16 %v2531, %v2531
      %v2564 = vpack.c.bf16 %v2532, %v2532
      %v2565 = vpack.c.bf16 %v2533, %v2533
      %v2566 = vpack.c.bf16 %v2534, %v2534
      %v2567 = vpack.c.bf16 %v2535, %v2535
      %v2568 = vpack.c.bf16 %v2536, %v2536
      %v2569 = vpack.c.bf16 %v2537, %v2537
      %v2570 = vpack.c.bf16 %v2538, %v2538
      %v2571 = vpack.c.bf16 %v2539, %v2539
      %v2572 = vpack.c.bf16 %v2540, %v2540
      %v2573 = vpack.c.bf16 %v2541, %v2541
      %v2574 = vpack.c.bf16 %v2542, %v2542
      %v2575 = vpack.c.bf16 %v2543, %v2543
      %v2576 = vpack.c.bf16 %v2544, %v2544
      %v2577 = vpack.c.bf16 %v2545, %v2545
      %v2578 = vpack.c.bf16 %v2546, %v2546
      %v2579 = vpack.c.bf16 %v2547, %v2547
      %v2580 = vpack.c.bf16 %v2548, %v2548
      %v2581 = vpack.c.bf16 %v2549, %v2549
      %v2582 = vpack.c.bf16 %v2550, %v2550
      %v2583 = vpack.c.bf16 %v2551, %v2551
      %2584 = vst [vmem:[%s267] sm:$0xf] %v2552
      %2585 = vst [vmem:[%s267 + $0x4] sm:$0xf] %v2553
      %2586 = vst [vmem:[%s267 + $0x8] sm:$0xf] %v2554
      %2587 = vst [vmem:[%s267 + $0xc] sm:$0xf] %v2555
      %2588 = vst [vmem:[%s267 + $0x10] sm:$0xf] %v2556
      %2589 = vst [vmem:[%s267 + $0x14] sm:$0xf] %v2557
      %2590 = vst [vmem:[%s267 + $0x18] sm:$0xf] %v2558
      %2591 = vst [vmem:[%s267 + $0x1c] sm:$0xf] %v2559
      %2592 = vst [vmem:[%s267 + $0x20] sm:$0xf] %v2560
      %2593 = vst [vmem:[%s267 + $0x24] sm:$0xf] %v2561
      %2594 = vst [vmem:[%s267 + $0x28] sm:$0xf] %v2562
      %2595 = vst [vmem:[%s267 + $0x2c] sm:$0xf] %v2563
      %2596 = vst [vmem:[%s267 + $0x30] sm:$0xf] %v2564
      %2597 = vst [vmem:[%s267 + $0x34] sm:$0xf] %v2565
      %2598 = vst [vmem:[%s267 + $0x38] sm:$0xf] %v2566
      %2599 = vst [vmem:[%s267 + $0x3c] sm:$0xf] %v2567
      %2600 = vst [vmem:[%s267 + $0x40] sm:$0xf] %v2568
      %2601 = vst [vmem:[%s267 + $0x44] sm:$0xf] %v2569
      %2602 = vst [vmem:[%s267 + $0x48] sm:$0xf] %v2570
      %2603 = vst [vmem:[%s267 + $0x4c] sm:$0xf] %v2571
      %2604 = vst [vmem:[%s267 + $0x50] sm:$0xf] %v2572
      %2605 = vst [vmem:[%s267 + $0x54] sm:$0xf] %v2573
      %2606 = vst [vmem:[%s267 + $0x58] sm:$0xf] %v2574
      %2607 = vst [vmem:[%s267 + $0x5c] sm:$0xf] %v2575
      %2608 = vst [vmem:[%s267 + $0x60] sm:$0xf] %v2576
      %2609 = vst [vmem:[%s267 + $0x64] sm:$0xf] %v2577
      %2610 = vst [vmem:[%s267 + $0x68] sm:$0xf] %v2578
      %2611 = vst [vmem:[%s267 + $0x6c] sm:$0xf] %v2579
      %2612 = vst [vmem:[%s267 + $0x70] sm:$0xf] %v2580
      %2613 = vst [vmem:[%s267 + $0x74] sm:$0xf] %v2581
      %2614 = vst [vmem:[%s267 + $0x78] sm:$0xf] %v2582
      %2615 = vst [vmem:[%s267 + $0x7c] sm:$0xf] %v2583
      %v2616 = vadd.f32 %v2520, %v2521
      %v2617 = vadd.f32 %v2616, %v2522
      %v2618 = vadd.f32 %v2617, %v2523
      %v2619 = vadd.f32 %v2618, %v2524
      %v2620 = vadd.f32 %v2619, %v2525
      %v2621 = vadd.f32 %v2620, %v2526
      %v2622 = vadd.f32 %v2621, %v2527
      %v2623 = vadd.f32 %v2622, %v2528
      %v2624 = vadd.f32 %v2623, %v2529
      %v2625 = vadd.f32 %v2624, %v2530
      %v2626 = vadd.f32 %v2625, %v2531
      %v2627 = vadd.f32 %v2626, %v2532
      %v2628 = vadd.f32 %v2627, %v2533
      %v2629 = vadd.f32 %v2628, %v2534
      %v2630 = vadd.f32 %v2629, %v2535
      %v2631 = vadd.f32 %v2630, %v2536
      %v2632 = vadd.f32 %v2631, %v2537
      %v2633 = vadd.f32 %v2632, %v2538
      %v2634 = vadd.f32 %v2633, %v2539
      %v2635 = vadd.f32 %v2634, %v2540
      %v2636 = vadd.f32 %v2635, %v2541
      %v2637 = vadd.f32 %v2636, %v2542
      %v2638 = vadd.f32 %v2637, %v2543
      %v2639 = vadd.f32 %v2638, %v2544
      %v2640 = vadd.f32 %v2639, %v2545
      %v2641 = vadd.f32 %v2640, %v2546
      %v2642 = vadd.f32 %v2641, %v2547
      %v2643 = vadd.f32 %v2642, %v2548
      %v2644 = vadd.f32 %v2643, %v2549
      %v2645 = vadd.f32 %v2644, %v2550
      %v2646 = vadd.f32 %v2645, %v2551
      %v2647 = vrot.slane %v2646, 4
      %v2648 = vadd.f32 %v2646, %v2647
      %v2649 = vrot.slane %v2648, 2
      %v2650 = vadd.f32 %v2648, %v2649
      %v2651 = vrot.slane %v2650, 1
      %v2652 = vadd.f32 %v2650, %v2651
      %v2653 = vmul.f32 %v2652, 0.00390625
      %v2654 = vsub.f32 %v2520, %v2653
      %v2655 = vsub.f32 %v2521, %v2653
      %v2656 = vsub.f32 %v2522, %v2653
      %v2657 = vsub.f32 %v2523, %v2653
      %v2658 = vsub.f32 %v2524, %v2653
      %v2659 = vsub.f32 %v2525, %v2653
      %v2660 = vsub.f32 %v2526, %v2653
      %v2661 = vsub.f32 %v2527, %v2653
      %v2662 = vsub.f32 %v2528, %v2653
      %v2663 = vsub.f32 %v2529, %v2653
      %v2664 = vsub.f32 %v2530, %v2653
      %v2665 = vsub.f32 %v2531, %v2653
      %v2666 = vsub.f32 %v2532, %v2653
      %v2667 = vsub.f32 %v2533, %v2653
      %v2668 = vsub.f32 %v2534, %v2653
      %v2669 = vsub.f32 %v2535, %v2653
      %v2670 = vsub.f32 %v2536, %v2653
      %v2671 = vsub.f32 %v2537, %v2653
      %v2672 = vsub.f32 %v2538, %v2653
      %v2673 = vsub.f32 %v2539, %v2653
      %v2674 = vsub.f32 %v2540, %v2653
      %v2675 = vsub.f32 %v2541, %v2653
      %v2676 = vsub.f32 %v2542, %v2653
      %v2677 = vsub.f32 %v2543, %v2653
      %v2678 = vsub.f32 %v2544, %v2653
      %v2679 = vsub.f32 %v2545, %v2653
      %v2680 = vsub.f32 %v2546, %v2653
      %v2681 = vsub.f32 %v2547, %v2653
      %v2682 = vsub.f32 %v2548, %v2653
      %v2683 = vsub.f32 %v2549, %v2653
      %v2684 = vsub.f32 %v2550, %v2653
      %v2685 = vsub.f32 %v2551, %v2653
      %2686 = vst [vmem:[%s274] sm:$0x1] %v2652
      %v2687 = vmul.f32 %v2654, %v2654
      %v2688 = vmul.f32 %v2655, %v2655
      %v2689 = vmul.f32 %v2656, %v2656
      %v2690 = vmul.f32 %v2657, %v2657
      %v2691 = vmul.f32 %v2658, %v2658
      %v2692 = vmul.f32 %v2659, %v2659
      %v2693 = vmul.f32 %v2660, %v2660
      %v2694 = vmul.f32 %v2661, %v2661
      %v2695 = vmul.f32 %v2662, %v2662
      %v2696 = vmul.f32 %v2663, %v2663
      %v2697 = vmul.f32 %v2664, %v2664
      %v2698 = vmul.f32 %v2665, %v2665
      %v2699 = vmul.f32 %v2666, %v2666
      %v2700 = vmul.f32 %v2667, %v2667
      %v2701 = vmul.f32 %v2668, %v2668
      %v2702 = vmul.f32 %v2669, %v2669
      %v2703 = vmul.f32 %v2670, %v2670
      %v2704 = vmul.f32 %v2671, %v2671
      %v2705 = vmul.f32 %v2672, %v2672
      %v2706 = vmul.f32 %v2673, %v2673
      %v2707 = vmul.f32 %v2674, %v2674
      %v2708 = vmul.f32 %v2675, %v2675
      %v2709 = vmul.f32 %v2676, %v2676
      %v2710 = vmul.f32 %v2677, %v2677
      %v2711 = vmul.f32 %v2678, %v2678
      %v2712 = vmul.f32 %v2679, %v2679
      %v2713 = vmul.f32 %v2680, %v2680
      %v2714 = vmul.f32 %v2681, %v2681
      %v2715 = vmul.f32 %v2682, %v2682
      %v2716 = vmul.f32 %v2683, %v2683
      %v2717 = vmul.f32 %v2684, %v2684
      %v2718 = vmul.f32 %v2685, %v2685
      %v2719 = vadd.f32 %v2687, %v2688
      %v2720 = vadd.f32 %v2719, %v2689
      %v2721 = vadd.f32 %v2720, %v2690
      %v2722 = vadd.f32 %v2721, %v2691
      %v2723 = vadd.f32 %v2722, %v2692
      %v2724 = vadd.f32 %v2723, %v2693
      %v2725 = vadd.f32 %v2724, %v2694
      %v2726 = vadd.f32 %v2725, %v2695
      %v2727 = vadd.f32 %v2726, %v2696
      %v2728 = vadd.f32 %v2727, %v2697
      %v2729 = vadd.f32 %v2728, %v2698
      %v2730 = vadd.f32 %v2729, %v2699
      %v2731 = vadd.f32 %v2730, %v2700
      %v2732 = vadd.f32 %v2731, %v2701
      %v2733 = vadd.f32 %v2732, %v2702
      %v2734 = vadd.f32 %v2733, %v2703
      %v2735 = vadd.f32 %v2734, %v2704
      %v2736 = vadd.f32 %v2735, %v2705
      %v2737 = vadd.f32 %v2736, %v2706
      %v2738 = vadd.f32 %v2737, %v2707
      %v2739 = vadd.f32 %v2738, %v2708
      %v2740 = vadd.f32 %v2739, %v2709
      %v2741 = vadd.f32 %v2740, %v2710
      %v2742 = vadd.f32 %v2741, %v2711
      %v2743 = vadd.f32 %v2742, %v2712
      %v2744 = vadd.f32 %v2743, %v2713
      %v2745 = vadd.f32 %v2744, %v2714
      %v2746 = vadd.f32 %v2745, %v2715
      %v2747 = vadd.f32 %v2746, %v2716
      %v2748 = vadd.f32 %v2747, %v2717
      %v2749 = vadd.f32 %v2748, %v2718
      %v2750 = vrot.slane %v2749, 4
      %v2751 = vadd.f32 %v2749, %v2750
      %v2752 = vrot.slane %v2751, 2
      %v2753 = vadd.f32 %v2751, %v2752
      %v2754 = vrot.slane %v2753, 1
      %v2755 = vadd.f32 %v2753, %v2754
      %2756 = vst [vmem:[%s280] sm:$0x1] %v2755
      %s2757 = smul.u32 32, %s22
      %p2758 = scmp.lt.s32.totalorder %s21, 1
      %s2759 = scalar_select %p2758, %s21, 1
      %p2760 = scmp.lt.s32.totalorder %s2757, 31
      %s2761 = scalar_select %p2760, %s2757, 31
      %s2762 = smul.addr %s2759, 32
      %s2763 = sadd.s32 %s2761, %s2762
      %s2764 = smul.addr %s2763, 4
      %s2765 = scalar_lea.vmem %s3, %s2764
      %p2766 = scmp.lt.s32.totalorder %s21, 1
      %s2767 = scalar_select %p2766, %s21, 1
      %p2768 = scmp.lt.s32.totalorder %s22, 0
      %s2769 = scalar_select %p2768, %s22, 0
      %s2770 = sadd.s32 %s2769, %s2767
      %s2771 = scalar_lea.vmem %s4, %s2770
      %p2772 = scmp.lt.s32.totalorder %s21, 1
      %s2773 = scalar_select %p2772, %s21, 1
      %p2774 = scmp.lt.s32.totalorder %s22, 0
      %s2775 = scalar_select %p2774, %s22, 0
      %s2776 = sadd.s32 %s2775, %s2773
      %s2777 = scalar_lea.vmem %s5, %s2776
      // Predicated region
      $region33: #{_lambda_.2} parent=31 // pred_check
        %p2778 = pneg %p117
      $region34: #{_lambda_.2} parent=31 // pred_check_branch
        %2780 = sbr.rel (%p2778) target = $region36
      $region35: #{_lambda_.2} parent=31 // pred_region
        %s2781 = smul.u32 32, %s22
      $region36: #{_lambda_.2} parent=31 // pred_fallthru
        _
      // Predicated region
      $region37: #{_lambda_.2} parent=31 // pred_check
        %p2782 = pneg %p145
      $region38: #{_lambda_.2} parent=31 // pred_check_branch
        %2784 = sbr.rel (%p2782) target = $region40
      $region39: #{_lambda_.2} parent=31 // pred_region
        _
      $region40: #{_lambda_.2} parent=31 // pred_fallthru
        _
      // Predicated region
      $region41: #{_lambda_.2} parent=31 // pred_check
        %p2785 = pneg %p173
      $region42: #{_lambda_.2} parent=31 // pred_check_branch
        %2787 = sbr.rel (%p2785) target = $region44
      $region43: #{_lambda_.2} parent=31 // pred_region
        _
      $region44: #{_lambda_.2} parent=31 // pred_fallthru
        _
    $region32: #{_lambda_.2} parent=5 // pred_fallthru
      _
    %p2788 = scmp.le.s32.totalorder 2, %s12
    // Predicated region
    $region45: #{_lambda_.2} parent=5 // pred_check
      %p2789 = pneg %p2788
    $region46: #{_lambda_.2} parent=5 // pred_check_branch
      %2791 = sbr.rel (%p2789) target = $region48
    $region47: #{_lambda_.2} parent=5 // pred_region
      %s2792 = ssub.s32 %s12, 2
      // Predicated region
      $region49: #{_lambda_.2} parent=47 // pred_check
        %p2793 = pneg %p123
      $region50: #{_lambda_.2} parent=47 // pred_check_branch
        %2795 = sbr.rel (%p2793) target = $region52
      $region51: #{_lambda_.2} parent=47 // pred_region
        %s2796 = smul.u32 32, %s24
        %p2797 = scmp.lt.s32.totalorder %s23, 1
        %s2798 = scalar_select %p2797, %s23, 1
        %p2799 = scmp.lt.s32.totalorder %s2796, 31
        %s2800 = scalar_select %p2799, %s2796, 31
        %s2801 = smul.addr %s2798, 32
        %s2802 = sadd.s32 %s2800, %s2801
        %s2803 = smul.addr %s2802, 4
        %s2804 = scalar_lea.vmem %s3, %s2803
      $region52: #{_lambda_.2} parent=47 // pred_fallthru
        _
      // Predicated region
      $region53: #{_lambda_.2} parent=47 // pred_check
        %p2805 = pneg %p151
      $region54: #{_lambda_.2} parent=47 // pred_check_branch
        %2807 = sbr.rel (%p2805) target = $region56
      $region55: #{_lambda_.2} parent=47 // pred_region
        %p2808 = scmp.lt.s32.totalorder %s23, 1
        %s2809 = scalar_select %p2808, %s23, 1
        %p2810 = scmp.lt.s32.totalorder %s24, 0
        %s2811 = scalar_select %p2810, %s24, 0
        %s2812 = sadd.s32 %s2811, %s2809
        %s2813 = scalar_lea.vmem %s4, %s2812
      $region56: #{_lambda_.2} parent=47 // pred_fallthru
        _
      // Predicated region
      $region57: #{_lambda_.2} parent=47 // pred_check
        %p2814 = pneg %p179
      $region58: #{_lambda_.2} parent=47 // pred_check_branch
        %2816 = sbr.rel (%p2814) target = $region60
      $region59: #{_lambda_.2} parent=47 // pred_region
        %p2817 = scmp.lt.s32.totalorder %s23, 1
        %s2818 = scalar_select %p2817, %s23, 1
        %p2819 = scmp.lt.s32.totalorder %s24, 0
        %s2820 = scalar_select %p2819, %s24, 0
        %s2821 = sadd.s32 %s2820, %s2818
        %s2822 = scalar_lea.vmem %s5, %s2821
      $region60: #{_lambda_.2} parent=47 // pred_fallthru
        _
    $region48: #{_lambda_.2} parent=5 // pred_fallthru
      _
  $region6: #{_lambda_.2} parent=0 // loop_footer
    %s16 = sadd.s32 1, %s12
  $region7: #{_lambda_.2} parent=0 // loop_footer_branch
    %11 = sbr.rel target = $region3
  $region8: #{_lambda_.2} parent=0 // loop_exit
    _

</llo_original>
